<compile_context>
chip_gen: v5e
topology: v5e:2x2
jax: 0.10.0
libtpu: 0.0.40
codegen_flags: <defaults>
</compile_context>

<pallas_src>
import numpy as np
import jax
import jax.numpy as jnp
from jax import lax
from jax.experimental import pallas as pl
from jax.experimental.pallas import tpu as pltpu

HIDDEN = 256          # Dyns MLP hidden width
STEP_SIZE = 0.01      # odeint options={'step_size': 0.01}
N_SAMPLES = 50        # ts = torch.linspace(0.0, 4.0, 50)
T_END = 4.0


def _build_time_tables():
    """torchdiffeq fixed-grid RK4 bookkeeping (method='rk4', step_size=0.01,
    ts=linspace(0,4,50), f32), restructured as a *per-step* table so the kernel
    can interpolate samples on the fly (no trajectory scratch needed)."""
    ts = np.linspace(0.0, T_END, N_SAMPLES, dtype=np.float32)
    start, end = ts[0], ts[-1]
    niters = int(np.ceil((end - start) / np.float32(STEP_SIZE) + 1.0))
    grid = np.arange(niters, dtype=np.float32) * np.float32(STEP_SIZE) + start
    grid[-1] = end
    dts = (grid[1:] - grid[:-1]).astype(np.float32)                 # (n_steps,)
    # For sample j: first grid interval [grid[i], grid[i+1]] with grid[i+1] >= ts[j]
    sidx = np.searchsorted(grid[1:], ts, side="left")               # (N_SAMPLES,)
    denom = grid[sidx + 1] - grid[sidx]
    alpha = ((ts - grid[sidx]) / denom).astype(np.float32)          # (N_SAMPLES,)

    n_steps = int(dts.shape[0])
    step_sid = np.full((n_steps,), -1, np.int32)     # output row written at step i (-1: none)
    step_alpha = np.zeros((n_steps,), np.float32)
    # sample spacing (4/49 ~ 0.0816) > step size (0.01) -> at most one sample per step
    assert len(np.unique(sidx[1:])) == N_SAMPLES - 1
    for j in range(1, N_SAMPLES):                    # sample 0 (t=0) is dropped by forward()
        step_sid[sidx[j]] = j - 1
        step_alpha[sidx[j]] = alpha[j]
    return dts, step_sid, step_alpha


def _make_dyns_rk4_kernel(n_steps, unroll):
    def kernel(dts_ref, sid_ref, alpha_ref,                       # SMEM per-step tables
               x0_ref, w1_ref, b1_ref, w2_ref, b2_ref,
               w3_ref, b3_ref, w4t_ref, b4_ref,                   # VMEM params
               out_ref):                                          # VMEM output (n_out, 2)
        # Zero-init the merged output so every row is defined even if the
        # sample tables ever leave a step/sample unwritten.
        out_ref[...] = jnp.zeros(out_ref.shape, out_ref.dtype)

        # Hoist only the small operands into vregs; the two 256x256 bf16
        # weights stay in VMEM and are streamed by the MXU matmuls.
        w1 = w1_ref[...]      # (2, 256)  f32   (in, out) layout
        b1 = b1_ref[...]      # (1, 256)  f32
        b2 = b2_ref[...]      # (1, 256)  f32
        b3 = b3_ref[...]      # (1, 256)  f32
        w4t = w4t_ref[...]    # (2, 256)  f32   (= w4.T)
        b4 = b4_ref[...]      # (2, 1)    f32

        def mlp(y):           # y: (2, 1) f32 column state -> dx: (2, 1) f32
            # layer 1 (K=2): pure-VPU broadcast MACs (no XLU reduce, no MXU)
            h = jnp.maximum(
                y[0:1, :] * w1[0:1, :] + y[1:2, :] * w1[1:2, :] + b1, 0.0)
            # layers 2/3 (256x256): bf16 MXU matmuls, f32 accumulation
            h = jnp.maximum(
                jnp.dot(h.astype(jnp.bfloat16), w2_ref[...],
                        preferred_element_type=jnp.float32) + b2, 0.0)
            h = jnp.maximum(
                jnp.dot(h.astype(jnp.bfloat16), w3_ref[...],
                        preferred_element_type=jnp.float32) + b3, 0.0)
            # layer 4 (N=2): elementwise multiply + 256-lane reduction (no MXU)
            return jnp.sum(h * w4t, axis=1, keepdims=True) + b4

        def rk4_step(i, y):
            # torchdiffeq 'rk4' = 3/8-rule rk4_alt_step_func; dynamics t-independent.
            dt = dts_ref[i]
            k1 = mlp(y)
            k2 = mlp(y + dt * k1 * (1.0 / 3.0))
            k3 = mlp(y + dt * (k2 - k1 * (1.0 / 3.0)))
            k4 = mlp(y + dt * (k1 - k2 + k3))
            y1 = y + dt * 0.125 * (k1 + 3.0 * (k2 + k3) + k4)

            # On-the-fly linear interpolation at the (at most one) sample time
            # that falls inside [grid[i], grid[i+1]].
            sid = sid_ref[i]

            @pl.when(sid >= 0)
            def _():
                v = y + alpha_ref[i] * (y1 - y)         # (2, 1)
                out_ref[pl.ds(sid, 1), 0:1] = v[0:1, :]
                out_ref[pl.ds(sid, 1), 1:2] = v[1:2, :]

            return y1

        def outer(o, y):
            base = o * unroll
            for u in range(unroll):                      # manual unroll (straight-line)
                y = rk4_step(base + u, y)
            return y

        lax.fori_loop(0, n_steps // unroll, outer, x0_ref[...])

    return kernel


def dyns_solver_forward(state, params):
    """JAX/Pallas equivalent of DynsSolver.forward(state) -> (None, pos)."""
    x0, _w = state                      # w has zero derivative; not returned by forward()
    w1, b1, w2, b2, w3, b3, w4, b4 = params

    dts_np, sid_np, alpha_np = _build_time_tables()
    n_steps = int(dts_np.shape[0])
    n_out = N_SAMPLES - 1
    unroll = 4 if n_steps % 4 == 0 else (2 if n_steps % 2 == 0 else 1)

    # Column-state layout: x0 as (2,1); nn.Linear weights stored as (in, out);
    # w4 transposed to (2, 256) so layer 4 becomes a lane reduction.
    x0c = jnp.asarray(x0, jnp.float32).reshape(2, 1)
    w1f = jnp.asarray(w1, jnp.float32)                       # (2, 256)
    b1f = jnp.asarray(b1, jnp.float32).reshape(1, HIDDEN)
    w2b = jnp.asarray(w2).astype(jnp.bfloat16)               # (256, 256) bf16
    b2f = jnp.asarray(b2, jnp.float32).reshape(1, HIDDEN)
    w3b = jnp.asarray(w3).astype(jnp.bfloat16)               # (256, 256) bf16
    b3f = jnp.asarray(b3, jnp.float32).reshape(1, HIDDEN)
    w4t = jnp.asarray(w4, jnp.float32).T                     # (2, 256)
    b4c = jnp.asarray(b4, jnp.float32).reshape(2, 1)

    smem = pl.BlockSpec(memory_space=pltpu.MemorySpace.SMEM)
    vmem = pl.BlockSpec(memory_space=pltpu.MemorySpace.VMEM)

    out = pl.pallas_call(
        _make_dyns_rk4_kernel(n_steps, unroll),
        out_shape=jax.ShapeDtypeStruct((n_out, 2), jnp.float32),
        in_specs=[smem, smem, smem] + [vmem] * 9,
        out_specs=vmem,
    )(jnp.asarray(dts_np), jnp.asarray(sid_np), jnp.asarray(alpha_np),
      x0c, w1f, b1f, w2b, b2f, w3b, b3f, w4t, b4c)

    pos = out.reshape(n_out, 1, 2)
    return None, pos


def _init_linear(key, fan_in, fan_out):
    # PyTorch nn.Linear default: U(-1/sqrt(fan_in), 1/sqrt(fan_in)) for W and b.
    kw, kb = jax.random.split(key)
    bound = 1.0 / np.sqrt(fan_in)
    w = jax.random.uniform(kw, (fan_in, fan_out), jnp.float32, -bound, bound)
    b = jax.random.uniform(kb, (1, fan_out), jnp.float32, -bound, bound)
    return w, b


def _round_to_bf16_f32(x):
    """Round-to-nearest-even f32 -> bf16, returned as f32 (matches XLA convert)."""
    x = np.ascontiguousarray(np.asarray(x, np.float32))
    u = x.view(np.uint32)
    bias = ((u >> np.uint32(16)) & np.uint32(1)) + np.uint32(0x7FFF)
    r = (u + bias) & np.uint32(0xFFFF0000)
    return r.view(np.float32)


def _reference_forward_np(x0, params, dts, step_sid, step_alpha):
    """Pure-numpy reference of the same RK4 integration, with the same bf16
    rounding applied to the two 256x256 layers (for verification)."""
    w1, b1, w2, b2, w3, b3, w4, b4 = [np.asarray(p, np.float32) for p in params]
    w2b = _round_to_bf16_f32(w2)
    w3b = _round_to_bf16_f32(w3)
    one_third = np.float32(1.0 / 3.0)
    eighth = np.float32(0.125)

    def mlp(x):
        h = np.maximum(x @ w1 + b1, 0.0)
        h = np.maximum(_round_to_bf16_f32(h) @ w2b + b2, 0.0)
        h = np.maximum(_round_to_bf16_f32(h) @ w3b + b3, 0.0)
        return h @ w4 + b4

    y = np.asarray(x0, np.float32).reshape(1, 2)
    out = np.zeros((N_SAMPLES - 1, 1, 2), np.float32)
    for i in range(dts.shape[0]):
        dt = np.float32(dts[i])
        k1 = mlp(y)
        k2 = mlp(y + dt * k1 * one_third)
        k3 = mlp(y + dt * (k2 - k1 * one_third))
        k4 = mlp(y + dt * (k1 - k2 + k3))
        y1 = y + dt * eighth * (k1 + np.float32(3.0) * (k2 + k3) + k4)
        sid = int(step_sid[i])
        if sid >= 0:
            out[sid] = y + np.float32(step_alpha[i]) * (y1 - y)
        y = y1
    return out  # (49, 1, 2)


if __name__ == "__main__":
    key = jax.random.PRNGKey(0)
    kx, k1, k2, k3, k4 = jax.random.split(key, 5)

    # Inputs implied by the training loop: x0 = pos[0][0] of shape (1, 2),
    # w = one-hot mode indicator of shape (3,) (unused by forward()).
    x0 = jax.random.normal(kx, (1, 2), jnp.float32)
    w = jnp.zeros((3,), jnp.float32).at[0].set(1.0)

    # Dyns.mlp parameters: Linear(2,256), Linear(256,256), Linear(256,256), Linear(256,2)
    w1, b1 = _init_linear(k1, 2, HIDDEN)
    w2, b2 = _init_linear(k2, HIDDEN, HIDDEN)
    w3, b3 = _init_linear(k3, HIDDEN, HIDDEN)
    w4, b4 = _init_linear(k4, HIDDEN, 2)
    params = (w1, b1, w2, b2, w3, b3, w4, b4)

    _, pos = dyns_solver_forward((x0, w), params)
    pos = jax.block_until_ready(pos)

    assert pos.shape == (N_SAMPLES - 1, 1, 2), pos.shape
    assert np.all(np.isfinite(np.asarray(pos)))

    dts_np, sid_np, alpha_np = _build_time_tables()
    ref = _reference_forward_np(np.asarray(x0), [np.asarray(p) for p in params],
                                dts_np, sid_np, alpha_np)
    np.testing.assert_allclose(np.asarray(pos), ref, rtol=1e-2, atol=1e-2)

    print("KERNEL_OK")
</pallas_src>

<mosaic_0001>
module attributes {stable_mosaic.version = 11 : i64} {
  func.func @kernel(%arg0: memref<400xf32, #tpu.memory_space<smem>>, %arg1: memref<400xi32, #tpu.memory_space<smem>>, %arg2: memref<400xf32, #tpu.memory_space<smem>>, %arg3: memref<2x1xf32, #tpu.memory_space<vmem>>, %arg4: memref<2x256xf32, #tpu.memory_space<vmem>>, %arg5: memref<1x256xf32, #tpu.memory_space<vmem>>, %arg6: memref<256x256xbf16, #tpu.memory_space<vmem>>, %arg7: memref<1x256xf32, #tpu.memory_space<vmem>>, %arg8: memref<256x256xbf16, #tpu.memory_space<vmem>>, %arg9: memref<1x256xf32, #tpu.memory_space<vmem>>, %arg10: memref<2x256xf32, #tpu.memory_space<vmem>>, %arg11: memref<2x1xf32, #tpu.memory_space<vmem>>, %arg12: memref<49x2xf32, #tpu.memory_space<vmem>>) attributes {dimension_semantics = [], scalar_prefetch = 0 : i64, scratch_operands = 0 : i64, tpu.core_type = #tpu.core_type<tc>} {
    %cst = arith.constant 0.000000e+00 : f32
    %0 = vector.broadcast %cst : f32 to vector<49x2xf32>
    %c0 = arith.constant 0 : index
    %c0_0 = arith.constant 0 : index
    %1 = vector.load %arg12[%c0, %c0_0] : memref<49x2xf32, #tpu.memory_space<vmem>>, vector<49x2xf32>
    tpu.vector_store %arg12[%c0, %c0_0], %0 {strides = array<i32>} : memref<49x2xf32, #tpu.memory_space<vmem>>, vector<49x2xf32>,
    %c0_1 = arith.constant 0 : index
    %c0_2 = arith.constant 0 : index
    %2 = vector.load %arg4[%c0_1, %c0_2] : memref<2x256xf32, #tpu.memory_space<vmem>>, vector<2x256xf32>
    %c0_3 = arith.constant 0 : index
    %c0_4 = arith.constant 0 : index
    %3 = vector.load %arg5[%c0_3, %c0_4] : memref<1x256xf32, #tpu.memory_space<vmem>>, vector<1x256xf32>
    %c0_5 = arith.constant 0 : index
    %c0_6 = arith.constant 0 : index
    %4 = vector.load %arg7[%c0_5, %c0_6] : memref<1x256xf32, #tpu.memory_space<vmem>>, vector<1x256xf32>
    %c0_7 = arith.constant 0 : index
    %c0_8 = arith.constant 0 : index
    %5 = vector.load %arg9[%c0_7, %c0_8] : memref<1x256xf32, #tpu.memory_space<vmem>>, vector<1x256xf32>
    %c0_9 = arith.constant 0 : index
    %c0_10 = arith.constant 0 : index
    %6 = vector.load %arg10[%c0_9, %c0_10] : memref<2x256xf32, #tpu.memory_space<vmem>>, vector<2x256xf32>
    %c0_11 = arith.constant 0 : index
    %c0_12 = arith.constant 0 : index
    %7 = vector.load %arg11[%c0_11, %c0_12] : memref<2x1xf32, #tpu.memory_space<vmem>>, vector<2x1xf32>
    %c0_13 = arith.constant 0 : index
    %c0_14 = arith.constant 0 : index
    %8 = vector.load %arg3[%c0_13, %c0_14] : memref<2x1xf32, #tpu.memory_space<vmem>>, vector<2x1xf32>
    %c0_i32 = arith.constant 0 : i32
    %c100_i32 = arith.constant 100 : i32
    %9 = arith.addi %c0_i32, %c100_i32 : i32
    %c1_i32 = arith.constant 1 : i32
    %10 = scf.for %arg13 = %c0_i32 to %9 step %c1_i32 iter_args(%arg14 = %8) -> (vector<2x1xf32>)  : i32 {
      %c4_i32 = arith.constant 4 : i32
      %11 = arith.muli %arg13, %c4_i32 : i32
      %c0_i32_16 = arith.constant 0 : i32
      %12 = arith.addi %11, %c0_i32_16 : i32
      %13 = arith.index_cast %12 : i32 to index
      %14 = memref.load %arg0[%13] : memref<400xf32, #tpu.memory_space<smem>>
      %15 = vector.extract_strided_slice %arg14 {offsets = [0, 0], sizes = [1, 1], strides = [1, 1]} : vector<2x1xf32> to vector<1x1xf32>
      %16 = vector.extract_strided_slice %2 {offsets = [0, 0], sizes = [1, 256], strides = [1, 1]} : vector<2x256xf32> to vector<1x256xf32>
      %17 = vector.broadcast %15 : vector<1x1xf32> to vector<1x256xf32>
      %18 = arith.mulf %17, %16 : vector<1x256xf32>
      %19 = vector.extract_strided_slice %arg14 {offsets = [1, 0], sizes = [1, 1], strides = [1, 1]} : vector<2x1xf32> to vector<1x1xf32>
      %20 = vector.extract_strided_slice %2 {offsets = [1, 0], sizes = [1, 256], strides = [1, 1]} : vector<2x256xf32> to vector<1x256xf32>
      %21 = vector.broadcast %19 : vector<1x1xf32> to vector<1x256xf32>
      %22 = arith.mulf %21, %20 : vector<1x256xf32>
      %23 = arith.addf %18, %22 : vector<1x256xf32>
      %24 = arith.addf %23, %3 : vector<1x256xf32>
      %cst_17 = arith.constant 0.000000e+00 : f32
      %25 = vector.broadcast %cst_17 : f32 to vector<1x256xf32>
      %26 = arith.maximumf %24, %25 : vector<1x256xf32>
      %27 = arith.truncf %26 : vector<1x256xf32> to vector<1x256xbf16>
      %c0_18 = arith.constant 0 : index
      %c0_19 = arith.constant 0 : index
      %28 = vector.load %arg6[%c0_18, %c0_19] : memref<256x256xbf16, #tpu.memory_space<vmem>>, vector<256x256xbf16>
      %cst_20 = arith.constant dense<0.000000e+00> : vector<1x256xf32>
      %29 = tpu.matmul %27, %28, %cst_20 {dimension_numbers = #tpu.dot_dimension_numbers<[1], [0], [0], [1], [0, 0, 1, 1], [], []>} : vector<1x256xbf16>, vector<256x256xbf16>, vector<1x256xf32> -> vector<1x256xf32>
      %30 = arith.addf %29, %4 : vector<1x256xf32>
      %cst_21 = arith.constant 0.000000e+00 : f32
      %31 = vector.broadcast %cst_21 : f32 to vector<1x256xf32>
      %32 = arith.maximumf %30, %31 : vector<1x256xf32>
      %33 = arith.truncf %32 : vector<1x256xf32> to vector<1x256xbf16>
      %c0_22 = arith.constant 0 : index
      %c0_23 = arith.constant 0 : index
      %34 = vector.load %arg8[%c0_22, %c0_23] : memref<256x256xbf16, #tpu.memory_space<vmem>>, vector<256x256xbf16>
      %cst_24 = arith.constant dense<0.000000e+00> : vector<1x256xf32>
      %35 = tpu.matmul %33, %34, %cst_24 {dimension_numbers = #tpu.dot_dimension_numbers<[1], [0], [0], [1], [0, 0, 1, 1], [], []>} : vector<1x256xbf16>, vector<256x256xbf16>, vector<1x256xf32> -> vector<1x256xf32>
      %36 = arith.addf %35, %5 : vector<1x256xf32>
      %cst_25 = arith.constant 0.000000e+00 : f32
      %37 = vector.broadcast %cst_25 : f32 to vector<1x256xf32>
      %38 = arith.maximumf %36, %37 : vector<1x256xf32>
      %39 = vector.broadcast %38 : vector<1x256xf32> to vector<2x256xf32>
      %40 = arith.mulf %39, %6 : vector<2x256xf32>
      %cst_26 = arith.constant dense<0.000000e+00> : vector<2xf32>
      %41 = vector.multi_reduction <add>, %40, %cst_26 [1] : vector<2x256xf32> to vector<2xf32>
      %42 = vector.shape_cast %41 : vector<2xf32> to vector<2x1xf32>
      %43 = arith.addf %42, %7 : vector<2x1xf32>
      %44 = vector.broadcast %14 : f32 to vector<2x1xf32>
      %45 = arith.mulf %44, %43 : vector<2x1xf32>
      %cst_27 = arith.constant 0.333333343 : f32
      %46 = vector.broadcast %cst_27 : f32 to vector<2x1xf32>
      %47 = arith.mulf %45, %46 : vector<2x1xf32>
      %48 = arith.addf %arg14, %47 : vector<2x1xf32>
      %49 = vector.extract_strided_slice %48 {offsets = [0, 0], sizes = [1, 1], strides = [1, 1]} : vector<2x1xf32> to vector<1x1xf32>
      %50 = vector.extract_strided_slice %2 {offsets = [0, 0], sizes = [1, 256], strides = [1, 1]} : vector<2x256xf32> to vector<1x256xf32>
      %51 = vector.broadcast %49 : vector<1x1xf32> to vector<1x256xf32>
      %52 = arith.mulf %51, %50 : vector<1x256xf32>
      %53 = vector.extract_strided_slice %48 {offsets = [1, 0], sizes = [1, 1], strides = [1, 1]} : vector<2x1xf32> to vector<1x1xf32>
      %54 = vector.extract_strided_slice %2 {offsets = [1, 0], sizes = [1, 256], strides = [1, 1]} : vector<2x256xf32> to vector<1x256xf32>
      %55 = vector.broadcast %53 : vector<1x1xf32> to vector<1x256xf32>
      %56 = arith.mulf %55, %54 : vector<1x256xf32>
      %57 = arith.addf %52, %56 : vector<1x256xf32>
      %58 = arith.addf %57, %3 : vector<1x256xf32>
      %cst_28 = arith.constant 0.000000e+00 : f32
      %59 = vector.broadcast %cst_28 : f32 to vector<1x256xf32>
      %60 = arith.maximumf %58, %59 : vector<1x256xf32>
      %61 = arith.truncf %60 : vector<1x256xf32> to vector<1x256xbf16>
      %c0_29 = arith.constant 0 : index
      %c0_30 = arith.constant 0 : index
      %62 = vector.load %arg6[%c0_29, %c0_30] : memref<256x256xbf16, #tpu.memory_space<vmem>>, vector<256x256xbf16>
      %cst_31 = arith.constant dense<0.000000e+00> : vector<1x256xf32>
      %63 = tpu.matmul %61, %62, %cst_31 {dimension_numbers = #tpu.dot_dimension_numbers<[1], [0], [0], [1], [0, 0, 1, 1], [], []>} : vector<1x256xbf16>, vector<256x256xbf16>, vector<1x256xf32> -> vector<1x256xf32>
      %64 = arith.addf %63, %4 : vector<1x256xf32>
      %cst_32 = arith.constant 0.000000e+00 : f32
      %65 = vector.broadcast %cst_32 : f32 to vector<1x256xf32>
      %66 = arith.maximumf %64, %65 : vector<1x256xf32>
      %67 = arith.truncf %66 : vector<1x256xf32> to vector<1x256xbf16>
      %c0_33 = arith.constant 0 : index
      %c0_34 = arith.constant 0 : index
      %68 = vector.load %arg8[%c0_33, %c0_34] : memref<256x256xbf16, #tpu.memory_space<vmem>>, vector<256x256xbf16>
      %cst_35 = arith.constant dense<0.000000e+00> : vector<1x256xf32>
      %69 = tpu.matmul %67, %68, %cst_35 {dimension_numbers = #tpu.dot_dimension_numbers<[1], [0], [0], [1], [0, 0, 1, 1], [], []>} : vector<1x256xbf16>, vector<256x256xbf16>, vector<1x256xf32> -> vector<1x256xf32>
      %70 = arith.addf %69, %5 : vector<1x256xf32>
      %cst_36 = arith.constant 0.000000e+00 : f32
      %71 = vector.broadcast %cst_36 : f32 to vector<1x256xf32>
      %72 = arith.maximumf %70, %71 : vector<1x256xf32>
      %73 = vector.broadcast %72 : vector<1x256xf32> to vector<2x256xf32>
      %74 = arith.mulf %73, %6 : vector<2x256xf32>
      %cst_37 = arith.constant dense<0.000000e+00> : vector<2xf32>
      %75 = vector.multi_reduction <add>, %74, %cst_37 [1] : vector<2x256xf32> to vector<2xf32>
      %76 = vector.shape_cast %75 : vector<2xf32> to vector<2x1xf32>
      %77 = arith.addf %76, %7 : vector<2x1xf32>
      %cst_38 = arith.constant 0.333333343 : f32
      %78 = vector.broadcast %cst_38 : f32 to vector<2x1xf32>
      %79 = arith.mulf %43, %78 : vector<2x1xf32>
      %80 = arith.subf %77, %79 : vector<2x1xf32>
      %81 = vector.broadcast %14 : f32 to vector<2x1xf32>
      %82 = arith.mulf %81, %80 : vector<2x1xf32>
      %83 = arith.addf %arg14, %82 : vector<2x1xf32>
      %84 = vector.extract_strided_slice %83 {offsets = [0, 0], sizes = [1, 1], strides = [1, 1]} : vector<2x1xf32> to vector<1x1xf32>
      %85 = vector.extract_strided_slice %2 {offsets = [0, 0], sizes = [1, 256], strides = [1, 1]} : vector<2x256xf32> to vector<1x256xf32>
      %86 = vector.broadcast %84 : vector<1x1xf32> to vector<1x256xf32>
      %87 = arith.mulf %86, %85 : vector<1x256xf32>
      %88 = vector.extract_strided_slice %83 {offsets = [1, 0], sizes = [1, 1], strides = [1, 1]} : vector<2x1xf32> to vector<1x1xf32>
      %89 = vector.extract_strided_slice %2 {offsets = [1, 0], sizes = [1, 256], strides = [1, 1]} : vector<2x256xf32> to vector<1x256xf32>
      %90 = vector.broadcast %88 : vector<1x1xf32> to vector<1x256xf32>
      %91 = arith.mulf %90, %89 : vector<1x256xf32>
      %92 = arith.addf %87, %91 : vector<1x256xf32>
      %93 = arith.addf %92, %3 : vector<1x256xf32>
      %cst_39 = arith.constant 0.000000e+00 : f32
      %94 = vector.broadcast %cst_39 : f32 to vector<1x256xf32>
      %95 = arith.maximumf %93, %94 : vector<1x256xf32>
      %96 = arith.truncf %95 : vector<1x256xf32> to vector<1x256xbf16>
      %c0_40 = arith.constant 0 : index
      %c0_41 = arith.constant 0 : index
      %97 = vector.load %arg6[%c0_40, %c0_41] : memref<256x256xbf16, #tpu.memory_space<vmem>>, vector<256x256xbf16>
      %cst_42 = arith.constant dense<0.000000e+00> : vector<1x256xf32>
      %98 = tpu.matmul %96, %97, %cst_42 {dimension_numbers = #tpu.dot_dimension_numbers<[1], [0], [0], [1], [0, 0, 1, 1], [], []>} : vector<1x256xbf16>, vector<256x256xbf16>, vector<1x256xf32> -> vector<1x256xf32>
      %99 = arith.addf %98, %4 : vector<1x256xf32>
      %cst_43 = arith.constant 0.000000e+00 : f32
      %100 = vector.broadcast %cst_43 : f32 to vector<1x256xf32>
      %101 = arith.maximumf %99, %100 : vector<1x256xf32>
      %102 = arith.truncf %101 : vector<1x256xf32> to vector<1x256xbf16>
      %c0_44 = arith.constant 0 : index
      %c0_45 = arith.constant 0 : index
      %103 = vector.load %arg8[%c0_44, %c0_45] : memref<256x256xbf16, #tpu.memory_space<vmem>>, vector<256x256xbf16>
      %cst_46 = arith.constant dense<0.000000e+00> : vector<1x256xf32>
      %104 = tpu.matmul %102, %103, %cst_46 {dimension_numbers = #tpu.dot_dimension_numbers<[1], [0], [0], [1], [0, 0, 1, 1], [], []>} : vector<1x256xbf16>, vector<256x256xbf16>, vector<1x256xf32> -> vector<1x256xf32>
      %105 = arith.addf %104, %5 : vector<1x256xf32>
      %cst_47 = arith.constant 0.000000e+00 : f32
      %106 = vector.broadcast %cst_47 : f32 to vector<1x256xf32>
      %107 = arith.maximumf %105, %106 : vector<1x256xf32>
      %108 = vector.broadcast %107 : vector<1x256xf32> to vector<2x256xf32>
      %109 = arith.mulf %108, %6 : vector<2x256xf32>
      %cst_48 = arith.constant dense<0.000000e+00> : vector<2xf32>
      %110 = vector.multi_reduction <add>, %109, %cst_48 [1] : vector<2x256xf32> to vector<2xf32>
      %111 = vector.shape_cast %110 : vector<2xf32> to vector<2x1xf32>
      %112 = arith.addf %111, %7 : vector<2x1xf32>
      %113 = arith.subf %43, %77 : vector<2x1xf32>
      %114 = arith.addf %113, %112 : vector<2x1xf32>
      %115 = vector.broadcast %14 : f32 to vector<2x1xf32>
      %116 = arith.mulf %115, %114 : vector<2x1xf32>
      %117 = arith.addf %arg14, %116 : vector<2x1xf32>
      %118 = vector.extract_strided_slice %117 {offsets = [0, 0], sizes = [1, 1], strides = [1, 1]} : vector<2x1xf32> to vector<1x1xf32>
      %119 = vector.extract_strided_slice %2 {offsets = [0, 0], sizes = [1, 256], strides = [1, 1]} : vector<2x256xf32> to vector<1x256xf32>
      %120 = vector.broadcast %118 : vector<1x1xf32> to vector<1x256xf32>
      %121 = arith.mulf %120, %119 : vector<1x256xf32>
      %122 = vector.extract_strided_slice %117 {offsets = [1, 0], sizes = [1, 1], strides = [1, 1]} : vector<2x1xf32> to vector<1x1xf32>
      %123 = vector.extract_strided_slice %2 {offsets = [1, 0], sizes = [1, 256], strides = [1, 1]} : vector<2x256xf32> to vector<1x256xf32>
      %124 = vector.broadcast %122 : vector<1x1xf32> to vector<1x256xf32>
      %125 = arith.mulf %124, %123 : vector<1x256xf32>
      %126 = arith.addf %121, %125 : vector<1x256xf32>
      %127 = arith.addf %126, %3 : vector<1x256xf32>
      %cst_49 = arith.constant 0.000000e+00 : f32
      %128 = vector.broadcast %cst_49 : f32 to vector<1x256xf32>
      %129 = arith.maximumf %127, %128 : vector<1x256xf32>
      %130 = arith.truncf %129 : vector<1x256xf32> to vector<1x256xbf16>
      %c0_50 = arith.constant 0 : index
      %c0_51 = arith.constant 0 : index
      %131 = vector.load %arg6[%c0_50, %c0_51] : memref<256x256xbf16, #tpu.memory_space<vmem>>, vector<256x256xbf16>
      %cst_52 = arith.constant dense<0.000000e+00> : vector<1x256xf32>
      %132 = tpu.matmul %130, %131, %cst_52 {dimension_numbers = #tpu.dot_dimension_numbers<[1], [0], [0], [1], [0, 0, 1, 1], [], []>} : vector<1x256xbf16>, vector<256x256xbf16>, vector<1x256xf32> -> vector<1x256xf32>
      %133 = arith.addf %132, %4 : vector<1x256xf32>
      %cst_53 = arith.constant 0.000000e+00 : f32
      %134 = vector.broadcast %cst_53 : f32 to vector<1x256xf32>
      %135 = arith.maximumf %133, %134 : vector<1x256xf32>
      %136 = arith.truncf %135 : vector<1x256xf32> to vector<1x256xbf16>
      %c0_54 = arith.constant 0 : index
      %c0_55 = arith.constant 0 : index
      %137 = vector.load %arg8[%c0_54, %c0_55] : memref<256x256xbf16, #tpu.memory_space<vmem>>, vector<256x256xbf16>
      %cst_56 = arith.constant dense<0.000000e+00> : vector<1x256xf32>
      %138 = tpu.matmul %136, %137, %cst_56 {dimension_numbers = #tpu.dot_dimension_numbers<[1], [0], [0], [1], [0, 0, 1, 1], [], []>} : vector<1x256xbf16>, vector<256x256xbf16>, vector<1x256xf32> -> vector<1x256xf32>
      %139 = arith.addf %138, %5 : vector<1x256xf32>
      %cst_57 = arith.constant 0.000000e+00 : f32
      %140 = vector.broadcast %cst_57 : f32 to vector<1x256xf32>
      %141 = arith.maximumf %139, %140 : vector<1x256xf32>
      %142 = vector.broadcast %141 : vector<1x256xf32> to vector<2x256xf32>
      %143 = arith.mulf %142, %6 : vector<2x256xf32>
      %cst_58 = arith.constant dense<0.000000e+00> : vector<2xf32>
      %144 = vector.multi_reduction <add>, %143, %cst_58 [1] : vector<2x256xf32> to vector<2xf32>
      %145 = vector.shape_cast %144 : vector<2xf32> to vector<2x1xf32>
      %146 = arith.addf %145, %7 : vector<2x1xf32>
      %cst_59 = arith.constant 1.250000e-01 : f32
      %147 = arith.mulf %14, %cst_59 : f32
      %148 = arith.addf %77, %112 : vector<2x1xf32>
      %cst_60 = arith.constant 3.000000e+00 : f32
      %149 = vector.broadcast %cst_60 : f32 to vector<2x1xf32>
      %150 = arith.mulf %149, %148 : vector<2x1xf32>
      %151 = arith.addf %43, %150 : vector<2x1xf32>
      %152 = arith.addf %151, %146 : vector<2x1xf32>
      %153 = vector.broadcast %147 : f32 to vector<2x1xf32>
      %154 = arith.mulf %153, %152 : vector<2x1xf32>
      %155 = arith.addf %arg14, %154 : vector<2x1xf32>
      %156 = arith.index_cast %12 : i32 to index
      %157 = memref.load %arg1[%156] : memref<400xi32, #tpu.memory_space<smem>>
      %c0_i32_61 = arith.constant 0 : i32
      %158 = arith.cmpi sge, %157, %c0_i32_61 : i32
      %159 = arith.extui %158 : i1 to i32
      %c0_i32_62 = arith.constant 0 : i32
      %160 = arith.cmpi ne, %159, %c0_i32_62 : i32
      scf.if %160 {
        %608 = arith.index_cast %12 : i32 to index
        %609 = memref.load %arg2[%608] : memref<400xf32, #tpu.memory_space<smem>>
        %610 = arith.subf %155, %arg14 : vector<2x1xf32>
        %611 = vector.broadcast %609 : f32 to vector<2x1xf32>
        %612 = arith.mulf %611, %610 : vector<2x1xf32>
        %613 = arith.addf %arg14, %612 : vector<2x1xf32>
        %614 = vector.extract_strided_slice %613 {offsets = [0, 0], sizes = [1, 1], strides = [1, 1]} : vector<2x1xf32> to vector<1x1xf32>
        %615 = arith.index_cast %157 : i32 to index
        %c0_202 = arith.constant 0 : index
        %616 = vector.load %arg12[%615, %c0_202] : memref<49x2xf32, #tpu.memory_space<vmem>>, vector<1x1xf32>
        tpu.vector_store %arg12[%615, %c0_202], %614 {strides = array<i32>} : memref<49x2xf32, #tpu.memory_space<vmem>>, vector<1x1xf32>,
        %617 = vector.extract_strided_slice %613 {offsets = [1, 0], sizes = [1, 1], strides = [1, 1]} : vector<2x1xf32> to vector<1x1xf32>
        %618 = arith.index_cast %157 : i32 to index
        %c1 = arith.constant 1 : index
        %619 = vector.load %arg12[%618, %c1] : memref<49x2xf32, #tpu.memory_space<vmem>>, vector<1x1xf32>
        tpu.vector_store %arg12[%618, %c1], %617 {strides = array<i32>} : memref<49x2xf32, #tpu.memory_space<vmem>>, vector<1x1xf32>,
      } else {
      }
      %c1_i32_63 = arith.constant 1 : i32
      %161 = arith.addi %11, %c1_i32_63 : i32
      %162 = arith.index_cast %161 : i32 to index
      %163 = memref.load %arg0[%162] : memref<400xf32, #tpu.memory_space<smem>>
      %164 = vector.extract_strided_slice %155 {offsets = [0, 0], sizes = [1, 1], strides = [1, 1]} : vector<2x1xf32> to vector<1x1xf32>
      %165 = vector.extract_strided_slice %2 {offsets = [0, 0], sizes = [1, 256], strides = [1, 1]} : vector<2x256xf32> to vector<1x256xf32>
      %166 = vector.broadcast %164 : vector<1x1xf32> to vector<1x256xf32>
      %167 = arith.mulf %166, %165 : vector<1x256xf32>
      %168 = vector.extract_strided_slice %155 {offsets = [1, 0], sizes = [1, 1], strides = [1, 1]} : vector<2x1xf32> to vector<1x1xf32>
      %169 = vector.extract_strided_slice %2 {offsets = [1, 0], sizes = [1, 256], strides = [1, 1]} : vector<2x256xf32> to vector<1x256xf32>
      %170 = vector.broadcast %168 : vector<1x1xf32> to vector<1x256xf32>
      %171 = arith.mulf %170, %169 : vector<1x256xf32>
      %172 = arith.addf %167, %171 : vector<1x256xf32>
      %173 = arith.addf %172, %3 : vector<1x256xf32>
      %cst_64 = arith.constant 0.000000e+00 : f32
      %174 = vector.broadcast %cst_64 : f32 to vector<1x256xf32>
      %175 = arith.maximumf %173, %174 : vector<1x256xf32>
      %176 = arith.truncf %175 : vector<1x256xf32> to vector<1x256xbf16>
      %c0_65 = arith.constant 0 : index
      %c0_66 = arith.constant 0 : index
      %177 = vector.load %arg6[%c0_65, %c0_66] : memref<256x256xbf16, #tpu.memory_space<vmem>>, vector<256x256xbf16>
      %cst_67 = arith.constant dense<0.000000e+00> : vector<1x256xf32>
      %178 = tpu.matmul %176, %177, %cst_67 {dimension_numbers = #tpu.dot_dimension_numbers<[1], [0], [0], [1], [0, 0, 1, 1], [], []>} : vector<1x256xbf16>, vector<256x256xbf16>, vector<1x256xf32> -> vector<1x256xf32>
      %179 = arith.addf %178, %4 : vector<1x256xf32>
      %cst_68 = arith.constant 0.000000e+00 : f32
      %180 = vector.broadcast %cst_68 : f32 to vector<1x256xf32>
      %181 = arith.maximumf %179, %180 : vector<1x256xf32>
      %182 = arith.truncf %181 : vector<1x256xf32> to vector<1x256xbf16>
      %c0_69 = arith.constant 0 : index
      %c0_70 = arith.constant 0 : index
      %183 = vector.load %arg8[%c0_69, %c0_70] : memref<256x256xbf16, #tpu.memory_space<vmem>>, vector<256x256xbf16>
      %cst_71 = arith.constant dense<0.000000e+00> : vector<1x256xf32>
      %184 = tpu.matmul %182, %183, %cst_71 {dimension_numbers = #tpu.dot_dimension_numbers<[1], [0], [0], [1], [0, 0, 1, 1], [], []>} : vector<1x256xbf16>, vector<256x256xbf16>, vector<1x256xf32> -> vector<1x256xf32>
      %185 = arith.addf %184, %5 : vector<1x256xf32>
      %cst_72 = arith.constant 0.000000e+00 : f32
      %186 = vector.broadcast %cst_72 : f32 to vector<1x256xf32>
      %187 = arith.maximumf %185, %186 : vector<1x256xf32>
      %188 = vector.broadcast %187 : vector<1x256xf32> to vector<2x256xf32>
      %189 = arith.mulf %188, %6 : vector<2x256xf32>
      %cst_73 = arith.constant dense<0.000000e+00> : vector<2xf32>
      %190 = vector.multi_reduction <add>, %189, %cst_73 [1] : vector<2x256xf32> to vector<2xf32>
      %191 = vector.shape_cast %190 : vector<2xf32> to vector<2x1xf32>
      %192 = arith.addf %191, %7 : vector<2x1xf32>
      %193 = vector.broadcast %163 : f32 to vector<2x1xf32>
      %194 = arith.mulf %193, %192 : vector<2x1xf32>
      %cst_74 = arith.constant 0.333333343 : f32
      %195 = vector.broadcast %cst_74 : f32 to vector<2x1xf32>
      %196 = arith.mulf %194, %195 : vector<2x1xf32>
      %197 = arith.addf %155, %196 : vector<2x1xf32>
      %198 = vector.extract_strided_slice %197 {offsets = [0, 0], sizes = [1, 1], strides = [1, 1]} : vector<2x1xf32> to vector<1x1xf32>
      %199 = vector.extract_strided_slice %2 {offsets = [0, 0], sizes = [1, 256], strides = [1, 1]} : vector<2x256xf32> to vector<1x256xf32>
      %200 = vector.broadcast %198 : vector<1x1xf32> to vector<1x256xf32>
      %201 = arith.mulf %200, %199 : vector<1x256xf32>
      %202 = vector.extract_strided_slice %197 {offsets = [1, 0], sizes = [1, 1], strides = [1, 1]} : vector<2x1xf32> to vector<1x1xf32>
      %203 = vector.extract_strided_slice %2 {offsets = [1, 0], sizes = [1, 256], strides = [1, 1]} : vector<2x256xf32> to vector<1x256xf32>
      %204 = vector.broadcast %202 : vector<1x1xf32> to vector<1x256xf32>
      %205 = arith.mulf %204, %203 : vector<1x256xf32>
      %206 = arith.addf %201, %205 : vector<1x256xf32>
      %207 = arith.addf %206, %3 : vector<1x256xf32>
      %cst_75 = arith.constant 0.000000e+00 : f32
      %208 = vector.broadcast %cst_75 : f32 to vector<1x256xf32>
      %209 = arith.maximumf %207, %208 : vector<1x256xf32>
      %210 = arith.truncf %209 : vector<1x256xf32> to vector<1x256xbf16>
      %c0_76 = arith.constant 0 : index
      %c0_77 = arith.constant 0 : index
      %211 = vector.load %arg6[%c0_76, %c0_77] : memref<256x256xbf16, #tpu.memory_space<vmem>>, vector<256x256xbf16>
      %cst_78 = arith.constant dense<0.000000e+00> : vector<1x256xf32>
      %212 = tpu.matmul %210, %211, %cst_78 {dimension_numbers = #tpu.dot_dimension_numbers<[1], [0], [0], [1], [0, 0, 1, 1], [], []>} : vector<1x256xbf16>, vector<256x256xbf16>, vector<1x256xf32> -> vector<1x256xf32>
      %213 = arith.addf %212, %4 : vector<1x256xf32>
      %cst_79 = arith.constant 0.000000e+00 : f32
      %214 = vector.broadcast %cst_79 : f32 to vector<1x256xf32>
      %215 = arith.maximumf %213, %214 : vector<1x256xf32>
      %216 = arith.truncf %215 : vector<1x256xf32> to vector<1x256xbf16>
      %c0_80 = arith.constant 0 : index
      %c0_81 = arith.constant 0 : index
      %217 = vector.load %arg8[%c0_80, %c0_81] : memref<256x256xbf16, #tpu.memory_space<vmem>>, vector<256x256xbf16>
      %cst_82 = arith.constant dense<0.000000e+00> : vector<1x256xf32>
      %218 = tpu.matmul %216, %217, %cst_82 {dimension_numbers = #tpu.dot_dimension_numbers<[1], [0], [0], [1], [0, 0, 1, 1], [], []>} : vector<1x256xbf16>, vector<256x256xbf16>, vector<1x256xf32> -> vector<1x256xf32>
      %219 = arith.addf %218, %5 : vector<1x256xf32>
      %cst_83 = arith.constant 0.000000e+00 : f32
      %220 = vector.broadcast %cst_83 : f32 to vector<1x256xf32>
      %221 = arith.maximumf %219, %220 : vector<1x256xf32>
      %222 = vector.broadcast %221 : vector<1x256xf32> to vector<2x256xf32>
      %223 = arith.mulf %222, %6 : vector<2x256xf32>
      %cst_84 = arith.constant dense<0.000000e+00> : vector<2xf32>
      %224 = vector.multi_reduction <add>, %223, %cst_84 [1] : vector<2x256xf32> to vector<2xf32>
      %225 = vector.shape_cast %224 : vector<2xf32> to vector<2x1xf32>
      %226 = arith.addf %225, %7 : vector<2x1xf32>
      %cst_85 = arith.constant 0.333333343 : f32
      %227 = vector.broadcast %cst_85 : f32 to vector<2x1xf32>
      %228 = arith.mulf %192, %227 : vector<2x1xf32>
      %229 = arith.subf %226, %228 : vector<2x1xf32>
      %230 = vector.broadcast %163 : f32 to vector<2x1xf32>
      %231 = arith.mulf %230, %229 : vector<2x1xf32>
      %232 = arith.addf %155, %231 : vector<2x1xf32>
      %233 = vector.extract_strided_slice %232 {offsets = [0, 0], sizes = [1, 1], strides = [1, 1]} : vector<2x1xf32> to vector<1x1xf32>
      %234 = vector.extract_strided_slice %2 {offsets = [0, 0], sizes = [1, 256], strides = [1, 1]} : vector<2x256xf32> to vector<1x256xf32>
      %235 = vector.broadcast %233 : vector<1x1xf32> to vector<1x256xf32>
      %236 = arith.mulf %235, %234 : vector<1x256xf32>
      %237 = vector.extract_strided_slice %232 {offsets = [1, 0], sizes = [1, 1], strides = [1, 1]} : vector<2x1xf32> to vector<1x1xf32>
      %238 = vector.extract_strided_slice %2 {offsets = [1, 0], sizes = [1, 256], strides = [1, 1]} : vector<2x256xf32> to vector<1x256xf32>
      %239 = vector.broadcast %237 : vector<1x1xf32> to vector<1x256xf32>
      %240 = arith.mulf %239, %238 : vector<1x256xf32>
      %241 = arith.addf %236, %240 : vector<1x256xf32>
      %242 = arith.addf %241, %3 : vector<1x256xf32>
      %cst_86 = arith.constant 0.000000e+00 : f32
      %243 = vector.broadcast %cst_86 : f32 to vector<1x256xf32>
      %244 = arith.maximumf %242, %243 : vector<1x256xf32>
      %245 = arith.truncf %244 : vector<1x256xf32> to vector<1x256xbf16>
      %c0_87 = arith.constant 0 : index
      %c0_88 = arith.constant 0 : index
      %246 = vector.load %arg6[%c0_87, %c0_88] : memref<256x256xbf16, #tpu.memory_space<vmem>>, vector<256x256xbf16>
      %cst_89 = arith.constant dense<0.000000e+00> : vector<1x256xf32>
      %247 = tpu.matmul %245, %246, %cst_89 {dimension_numbers = #tpu.dot_dimension_numbers<[1], [0], [0], [1], [0, 0, 1, 1], [], []>} : vector<1x256xbf16>, vector<256x256xbf16>, vector<1x256xf32> -> vector<1x256xf32>
      %248 = arith.addf %247, %4 : vector<1x256xf32>
      %cst_90 = arith.constant 0.000000e+00 : f32
      %249 = vector.broadcast %cst_90 : f32 to vector<1x256xf32>
      %250 = arith.maximumf %248, %249 : vector<1x256xf32>
      %251 = arith.truncf %250 : vector<1x256xf32> to vector<1x256xbf16>
      %c0_91 = arith.constant 0 : index
      %c0_92 = arith.constant 0 : index
      %252 = vector.load %arg8[%c0_91, %c0_92] : memref<256x256xbf16, #tpu.memory_space<vmem>>, vector<256x256xbf16>
      %cst_93 = arith.constant dense<0.000000e+00> : vector<1x256xf32>
      %253 = tpu.matmul %251, %252, %cst_93 {dimension_numbers = #tpu.dot_dimension_numbers<[1], [0], [0], [1], [0, 0, 1, 1], [], []>} : vector<1x256xbf16>, vector<256x256xbf16>, vector<1x256xf32> -> vector<1x256xf32>
      %254 = arith.addf %253, %5 : vector<1x256xf32>
      %cst_94 = arith.constant 0.000000e+00 : f32
      %255 = vector.broadcast %cst_94 : f32 to vector<1x256xf32>
      %256 = arith.maximumf %254, %255 : vector<1x256xf32>
      %257 = vector.broadcast %256 : vector<1x256xf32> to vector<2x256xf32>
      %258 = arith.mulf %257, %6 : vector<2x256xf32>
      %cst_95 = arith.constant dense<0.000000e+00> : vector<2xf32>
      %259 = vector.multi_reduction <add>, %258, %cst_95 [1] : vector<2x256xf32> to vector<2xf32>
      %260 = vector.shape_cast %259 : vector<2xf32> to vector<2x1xf32>
      %261 = arith.addf %260, %7 : vector<2x1xf32>
      %262 = arith.subf %192, %226 : vector<2x1xf32>
      %263 = arith.addf %262, %261 : vector<2x1xf32>
      %264 = vector.broadcast %163 : f32 to vector<2x1xf32>
      %265 = arith.mulf %264, %263 : vector<2x1xf32>
      %266 = arith.addf %155, %265 : vector<2x1xf32>
      %267 = vector.extract_strided_slice %266 {offsets = [0, 0], sizes = [1, 1], strides = [1, 1]} : vector<2x1xf32> to vector<1x1xf32>
      %268 = vector.extract_strided_slice %2 {offsets = [0, 0], sizes = [1, 256], strides = [1, 1]} : vector<2x256xf32> to vector<1x256xf32>
      %269 = vector.broadcast %267 : vector<1x1xf32> to vector<1x256xf32>
      %270 = arith.mulf %269, %268 : vector<1x256xf32>
      %271 = vector.extract_strided_slice %266 {offsets = [1, 0], sizes = [1, 1], strides = [1, 1]} : vector<2x1xf32> to vector<1x1xf32>
      %272 = vector.extract_strided_slice %2 {offsets = [1, 0], sizes = [1, 256], strides = [1, 1]} : vector<2x256xf32> to vector<1x256xf32>
      %273 = vector.broadcast %271 : vector<1x1xf32> to vector<1x256xf32>
      %274 = arith.mulf %273, %272 : vector<1x256xf32>
      %275 = arith.addf %270, %274 : vector<1x256xf32>
      %276 = arith.addf %275, %3 : vector<1x256xf32>
      %cst_96 = arith.constant 0.000000e+00 : f32
      %277 = vector.broadcast %cst_96 : f32 to vector<1x256xf32>
      %278 = arith.maximumf %276, %277 : vector<1x256xf32>
      %279 = arith.truncf %278 : vector<1x256xf32> to vector<1x256xbf16>
      %c0_97 = arith.constant 0 : index
      %c0_98 = arith.constant 0 : index
      %280 = vector.load %arg6[%c0_97, %c0_98] : memref<256x256xbf16, #tpu.memory_space<vmem>>, vector<256x256xbf16>
      %cst_99 = arith.constant dense<0.000000e+00> : vector<1x256xf32>
      %281 = tpu.matmul %279, %280, %cst_99 {dimension_numbers = #tpu.dot_dimension_numbers<[1], [0], [0], [1], [0, 0, 1, 1], [], []>} : vector<1x256xbf16>, vector<256x256xbf16>, vector<1x256xf32> -> vector<1x256xf32>
      %282 = arith.addf %281, %4 : vector<1x256xf32>
      %cst_100 = arith.constant 0.000000e+00 : f32
      %283 = vector.broadcast %cst_100 : f32 to vector<1x256xf32>
      %284 = arith.maximumf %282, %283 : vector<1x256xf32>
      %285 = arith.truncf %284 : vector<1x256xf32> to vector<1x256xbf16>
      %c0_101 = arith.constant 0 : index
      %c0_102 = arith.constant 0 : index
      %286 = vector.load %arg8[%c0_101, %c0_102] : memref<256x256xbf16, #tpu.memory_space<vmem>>, vector<256x256xbf16>
      %cst_103 = arith.constant dense<0.000000e+00> : vector<1x256xf32>
      %287 = tpu.matmul %285, %286, %cst_103 {dimension_numbers = #tpu.dot_dimension_numbers<[1], [0], [0], [1], [0, 0, 1, 1], [], []>} : vector<1x256xbf16>, vector<256x256xbf16>, vector<1x256xf32> -> vector<1x256xf32>
      %288 = arith.addf %287, %5 : vector<1x256xf32>
      %cst_104 = arith.constant 0.000000e+00 : f32
      %289 = vector.broadcast %cst_104 : f32 to vector<1x256xf32>
      %290 = arith.maximumf %288, %289 : vector<1x256xf32>
      %291 = vector.broadcast %290 : vector<1x256xf32> to vector<2x256xf32>
      %292 = arith.mulf %291, %6 : vector<2x256xf32>
      %cst_105 = arith.constant dense<0.000000e+00> : vector<2xf32>
      %293 = vector.multi_reduction <add>, %292, %cst_105 [1] : vector<2x256xf32> to vector<2xf32>
      %294 = vector.shape_cast %293 : vector<2xf32> to vector<2x1xf32>
      %295 = arith.addf %294, %7 : vector<2x1xf32>
      %cst_106 = arith.constant 1.250000e-01 : f32
      %296 = arith.mulf %163, %cst_106 : f32
      %297 = arith.addf %226, %261 : vector<2x1xf32>
      %cst_107 = arith.constant 3.000000e+00 : f32
      %298 = vector.broadcast %cst_107 : f32 to vector<2x1xf32>
      %299 = arith.mulf %298, %297 : vector<2x1xf32>
      %300 = arith.addf %192, %299 : vector<2x1xf32>
      %301 = arith.addf %300, %295 : vector<2x1xf32>
      %302 = vector.broadcast %296 : f32 to vector<2x1xf32>
      %303 = arith.mulf %302, %301 : vector<2x1xf32>
      %304 = arith.addf %155, %303 : vector<2x1xf32>
      %305 = arith.index_cast %161 : i32 to index
      %306 = memref.load %arg1[%305] : memref<400xi32, #tpu.memory_space<smem>>
      %c0_i32_108 = arith.constant 0 : i32
      %307 = arith.cmpi sge, %306, %c0_i32_108 : i32
      %308 = arith.extui %307 : i1 to i32
      %c0_i32_109 = arith.constant 0 : i32
      %309 = arith.cmpi ne, %308, %c0_i32_109 : i32
      scf.if %309 {
        %608 = arith.index_cast %161 : i32 to index
        %609 = memref.load %arg2[%608] : memref<400xf32, #tpu.memory_space<smem>>
        %610 = arith.subf %304, %155 : vector<2x1xf32>
        %611 = vector.broadcast %609 : f32 to vector<2x1xf32>
        %612 = arith.mulf %611, %610 : vector<2x1xf32>
        %613 = arith.addf %155, %612 : vector<2x1xf32>
        %614 = vector.extract_strided_slice %613 {offsets = [0, 0], sizes = [1, 1], strides = [1, 1]} : vector<2x1xf32> to vector<1x1xf32>
        %615 = arith.index_cast %306 : i32 to index
        %c0_202 = arith.constant 0 : index
        %616 = vector.load %arg12[%615, %c0_202] : memref<49x2xf32, #tpu.memory_space<vmem>>, vector<1x1xf32>
        tpu.vector_store %arg12[%615, %c0_202], %614 {strides = array<i32>} : memref<49x2xf32, #tpu.memory_space<vmem>>, vector<1x1xf32>,
        %617 = vector.extract_strided_slice %613 {offsets = [1, 0], sizes = [1, 1], strides = [1, 1]} : vector<2x1xf32> to vector<1x1xf32>
        %618 = arith.index_cast %306 : i32 to index
        %c1 = arith.constant 1 : index
        %619 = vector.load %arg12[%618, %c1] : memref<49x2xf32, #tpu.memory_space<vmem>>, vector<1x1xf32>
        tpu.vector_store %arg12[%618, %c1], %617 {strides = array<i32>} : memref<49x2xf32, #tpu.memory_space<vmem>>, vector<1x1xf32>,
      } else {
      }
      %c2_i32 = arith.constant 2 : i32
      %310 = arith.addi %11, %c2_i32 : i32
      %311 = arith.index_cast %310 : i32 to index
      %312 = memref.load %arg0[%311] : memref<400xf32, #tpu.memory_space<smem>>
      %313 = vector.extract_strided_slice %304 {offsets = [0, 0], sizes = [1, 1], strides = [1, 1]} : vector<2x1xf32> to vector<1x1xf32>
      %314 = vector.extract_strided_slice %2 {offsets = [0, 0], sizes = [1, 256], strides = [1, 1]} : vector<2x256xf32> to vector<1x256xf32>
      %315 = vector.broadcast %313 : vector<1x1xf32> to vector<1x256xf32>
      %316 = arith.mulf %315, %314 : vector<1x256xf32>
      %317 = vector.extract_strided_slice %304 {offsets = [1, 0], sizes = [1, 1], strides = [1, 1]} : vector<2x1xf32> to vector<1x1xf32>
      %318 = vector.extract_strided_slice %2 {offsets = [1, 0], sizes = [1, 256], strides = [1, 1]} : vector<2x256xf32> to vector<1x256xf32>
      %319 = vector.broadcast %317 : vector<1x1xf32> to vector<1x256xf32>
      %320 = arith.mulf %319, %318 : vector<1x256xf32>
      %321 = arith.addf %316, %320 : vector<1x256xf32>
      %322 = arith.addf %321, %3 : vector<1x256xf32>
      %cst_110 = arith.constant 0.000000e+00 : f32
      %323 = vector.broadcast %cst_110 : f32 to vector<1x256xf32>
      %324 = arith.maximumf %322, %323 : vector<1x256xf32>
      %325 = arith.truncf %324 : vector<1x256xf32> to vector<1x256xbf16>
      %c0_111 = arith.constant 0 : index
      %c0_112 = arith.constant 0 : index
      %326 = vector.load %arg6[%c0_111, %c0_112] : memref<256x256xbf16, #tpu.memory_space<vmem>>, vector<256x256xbf16>
      %cst_113 = arith.constant dense<0.000000e+00> : vector<1x256xf32>
      %327 = tpu.matmul %325, %326, %cst_113 {dimension_numbers = #tpu.dot_dimension_numbers<[1], [0], [0], [1], [0, 0, 1, 1], [], []>} : vector<1x256xbf16>, vector<256x256xbf16>, vector<1x256xf32> -> vector<1x256xf32>
      %328 = arith.addf %327, %4 : vector<1x256xf32>
      %cst_114 = arith.constant 0.000000e+00 : f32
      %329 = vector.broadcast %cst_114 : f32 to vector<1x256xf32>
      %330 = arith.maximumf %328, %329 : vector<1x256xf32>
      %331 = arith.truncf %330 : vector<1x256xf32> to vector<1x256xbf16>
      %c0_115 = arith.constant 0 : index
      %c0_116 = arith.constant 0 : index
      %332 = vector.load %arg8[%c0_115, %c0_116] : memref<256x256xbf16, #tpu.memory_space<vmem>>, vector<256x256xbf16>
      %cst_117 = arith.constant dense<0.000000e+00> : vector<1x256xf32>
      %333 = tpu.matmul %331, %332, %cst_117 {dimension_numbers = #tpu.dot_dimension_numbers<[1], [0], [0], [1], [0, 0, 1, 1], [], []>} : vector<1x256xbf16>, vector<256x256xbf16>, vector<1x256xf32> -> vector<1x256xf32>
      %334 = arith.addf %333, %5 : vector<1x256xf32>
      %cst_118 = arith.constant 0.000000e+00 : f32
      %335 = vector.broadcast %cst_118 : f32 to vector<1x256xf32>
      %336 = arith.maximumf %334, %335 : vector<1x256xf32>
      %337 = vector.broadcast %336 : vector<1x256xf32> to vector<2x256xf32>
      %338 = arith.mulf %337, %6 : vector<2x256xf32>
      %cst_119 = arith.constant dense<0.000000e+00> : vector<2xf32>
      %339 = vector.multi_reduction <add>, %338, %cst_119 [1] : vector<2x256xf32> to vector<2xf32>
      %340 = vector.shape_cast %339 : vector<2xf32> to vector<2x1xf32>
      %341 = arith.addf %340, %7 : vector<2x1xf32>
      %342 = vector.broadcast %312 : f32 to vector<2x1xf32>
      %343 = arith.mulf %342, %341 : vector<2x1xf32>
      %cst_120 = arith.constant 0.333333343 : f32
      %344 = vector.broadcast %cst_120 : f32 to vector<2x1xf32>
      %345 = arith.mulf %343, %344 : vector<2x1xf32>
      %346 = arith.addf %304, %345 : vector<2x1xf32>
      %347 = vector.extract_strided_slice %346 {offsets = [0, 0], sizes = [1, 1], strides = [1, 1]} : vector<2x1xf32> to vector<1x1xf32>
      %348 = vector.extract_strided_slice %2 {offsets = [0, 0], sizes = [1, 256], strides = [1, 1]} : vector<2x256xf32> to vector<1x256xf32>
      %349 = vector.broadcast %347 : vector<1x1xf32> to vector<1x256xf32>
      %350 = arith.mulf %349, %348 : vector<1x256xf32>
      %351 = vector.extract_strided_slice %346 {offsets = [1, 0], sizes = [1, 1], strides = [1, 1]} : vector<2x1xf32> to vector<1x1xf32>
      %352 = vector.extract_strided_slice %2 {offsets = [1, 0], sizes = [1, 256], strides = [1, 1]} : vector<2x256xf32> to vector<1x256xf32>
      %353 = vector.broadcast %351 : vector<1x1xf32> to vector<1x256xf32>
      %354 = arith.mulf %353, %352 : vector<1x256xf32>
      %355 = arith.addf %350, %354 : vector<1x256xf32>
      %356 = arith.addf %355, %3 : vector<1x256xf32>
      %cst_121 = arith.constant 0.000000e+00 : f32
      %357 = vector.broadcast %cst_121 : f32 to vector<1x256xf32>
      %358 = arith.maximumf %356, %357 : vector<1x256xf32>
      %359 = arith.truncf %358 : vector<1x256xf32> to vector<1x256xbf16>
      %c0_122 = arith.constant 0 : index
      %c0_123 = arith.constant 0 : index
      %360 = vector.load %arg6[%c0_122, %c0_123] : memref<256x256xbf16, #tpu.memory_space<vmem>>, vector<256x256xbf16>
      %cst_124 = arith.constant dense<0.000000e+00> : vector<1x256xf32>
      %361 = tpu.matmul %359, %360, %cst_124 {dimension_numbers = #tpu.dot_dimension_numbers<[1], [0], [0], [1], [0, 0, 1, 1], [], []>} : vector<1x256xbf16>, vector<256x256xbf16>, vector<1x256xf32> -> vector<1x256xf32>
      %362 = arith.addf %361, %4 : vector<1x256xf32>
      %cst_125 = arith.constant 0.000000e+00 : f32
      %363 = vector.broadcast %cst_125 : f32 to vector<1x256xf32>
      %364 = arith.maximumf %362, %363 : vector<1x256xf32>
      %365 = arith.truncf %364 : vector<1x256xf32> to vector<1x256xbf16>
      %c0_126 = arith.constant 0 : index
      %c0_127 = arith.constant 0 : index
      %366 = vector.load %arg8[%c0_126, %c0_127] : memref<256x256xbf16, #tpu.memory_space<vmem>>, vector<256x256xbf16>
      %cst_128 = arith.constant dense<0.000000e+00> : vector<1x256xf32>
      %367 = tpu.matmul %365, %366, %cst_128 {dimension_numbers = #tpu.dot_dimension_numbers<[1], [0], [0], [1], [0, 0, 1, 1], [], []>} : vector<1x256xbf16>, vector<256x256xbf16>, vector<1x256xf32> -> vector<1x256xf32>
      %368 = arith.addf %367, %5 : vector<1x256xf32>
      %cst_129 = arith.constant 0.000000e+00 : f32
      %369 = vector.broadcast %cst_129 : f32 to vector<1x256xf32>
      %370 = arith.maximumf %368, %369 : vector<1x256xf32>
      %371 = vector.broadcast %370 : vector<1x256xf32> to vector<2x256xf32>
      %372 = arith.mulf %371, %6 : vector<2x256xf32>
      %cst_130 = arith.constant dense<0.000000e+00> : vector<2xf32>
      %373 = vector.multi_reduction <add>, %372, %cst_130 [1] : vector<2x256xf32> to vector<2xf32>
      %374 = vector.shape_cast %373 : vector<2xf32> to vector<2x1xf32>
      %375 = arith.addf %374, %7 : vector<2x1xf32>
      %cst_131 = arith.constant 0.333333343 : f32
      %376 = vector.broadcast %cst_131 : f32 to vector<2x1xf32>
      %377 = arith.mulf %341, %376 : vector<2x1xf32>
      %378 = arith.subf %375, %377 : vector<2x1xf32>
      %379 = vector.broadcast %312 : f32 to vector<2x1xf32>
      %380 = arith.mulf %379, %378 : vector<2x1xf32>
      %381 = arith.addf %304, %380 : vector<2x1xf32>
      %382 = vector.extract_strided_slice %381 {offsets = [0, 0], sizes = [1, 1], strides = [1, 1]} : vector<2x1xf32> to vector<1x1xf32>
      %383 = vector.extract_strided_slice %2 {offsets = [0, 0], sizes = [1, 256], strides = [1, 1]} : vector<2x256xf32> to vector<1x256xf32>
      %384 = vector.broadcast %382 : vector<1x1xf32> to vector<1x256xf32>
      %385 = arith.mulf %384, %383 : vector<1x256xf32>
      %386 = vector.extract_strided_slice %381 {offsets = [1, 0], sizes = [1, 1], strides = [1, 1]} : vector<2x1xf32> to vector<1x1xf32>
      %387 = vector.extract_strided_slice %2 {offsets = [1, 0], sizes = [1, 256], strides = [1, 1]} : vector<2x256xf32> to vector<1x256xf32>
      %388 = vector.broadcast %386 : vector<1x1xf32> to vector<1x256xf32>
      %389 = arith.mulf %388, %387 : vector<1x256xf32>
      %390 = arith.addf %385, %389 : vector<1x256xf32>
      %391 = arith.addf %390, %3 : vector<1x256xf32>
      %cst_132 = arith.constant 0.000000e+00 : f32
      %392 = vector.broadcast %cst_132 : f32 to vector<1x256xf32>
      %393 = arith.maximumf %391, %392 : vector<1x256xf32>
      %394 = arith.truncf %393 : vector<1x256xf32> to vector<1x256xbf16>
      %c0_133 = arith.constant 0 : index
      %c0_134 = arith.constant 0 : index
      %395 = vector.load %arg6[%c0_133, %c0_134] : memref<256x256xbf16, #tpu.memory_space<vmem>>, vector<256x256xbf16>
      %cst_135 = arith.constant dense<0.000000e+00> : vector<1x256xf32>
      %396 = tpu.matmul %394, %395, %cst_135 {dimension_numbers = #tpu.dot_dimension_numbers<[1], [0], [0], [1], [0, 0, 1, 1], [], []>} : vector<1x256xbf16>, vector<256x256xbf16>, vector<1x256xf32> -> vector<1x256xf32>
      %397 = arith.addf %396, %4 : vector<1x256xf32>
      %cst_136 = arith.constant 0.000000e+00 : f32
      %398 = vector.broadcast %cst_136 : f32 to vector<1x256xf32>
      %399 = arith.maximumf %397, %398 : vector<1x256xf32>
      %400 = arith.truncf %399 : vector<1x256xf32> to vector<1x256xbf16>
      %c0_137 = arith.constant 0 : index
      %c0_138 = arith.constant 0 : index
      %401 = vector.load %arg8[%c0_137, %c0_138] : memref<256x256xbf16, #tpu.memory_space<vmem>>, vector<256x256xbf16>
      %cst_139 = arith.constant dense<0.000000e+00> : vector<1x256xf32>
      %402 = tpu.matmul %400, %401, %cst_139 {dimension_numbers = #tpu.dot_dimension_numbers<[1], [0], [0], [1], [0, 0, 1, 1], [], []>} : vector<1x256xbf16>, vector<256x256xbf16>, vector<1x256xf32> -> vector<1x256xf32>
      %403 = arith.addf %402, %5 : vector<1x256xf32>
      %cst_140 = arith.constant 0.000000e+00 : f32
      %404 = vector.broadcast %cst_140 : f32 to vector<1x256xf32>
      %405 = arith.maximumf %403, %404 : vector<1x256xf32>
      %406 = vector.broadcast %405 : vector<1x256xf32> to vector<2x256xf32>
      %407 = arith.mulf %406, %6 : vector<2x256xf32>
      %cst_141 = arith.constant dense<0.000000e+00> : vector<2xf32>
      %408 = vector.multi_reduction <add>, %407, %cst_141 [1] : vector<2x256xf32> to vector<2xf32>
      %409 = vector.shape_cast %408 : vector<2xf32> to vector<2x1xf32>
      %410 = arith.addf %409, %7 : vector<2x1xf32>
      %411 = arith.subf %341, %375 : vector<2x1xf32>
      %412 = arith.addf %411, %410 : vector<2x1xf32>
      %413 = vector.broadcast %312 : f32 to vector<2x1xf32>
      %414 = arith.mulf %413, %412 : vector<2x1xf32>
      %415 = arith.addf %304, %414 : vector<2x1xf32>
      %416 = vector.extract_strided_slice %415 {offsets = [0, 0], sizes = [1, 1], strides = [1, 1]} : vector<2x1xf32> to vector<1x1xf32>
      %417 = vector.extract_strided_slice %2 {offsets = [0, 0], sizes = [1, 256], strides = [1, 1]} : vector<2x256xf32> to vector<1x256xf32>
      %418 = vector.broadcast %416 : vector<1x1xf32> to vector<1x256xf32>
      %419 = arith.mulf %418, %417 : vector<1x256xf32>
      %420 = vector.extract_strided_slice %415 {offsets = [1, 0], sizes = [1, 1], strides = [1, 1]} : vector<2x1xf32> to vector<1x1xf32>
      %421 = vector.extract_strided_slice %2 {offsets = [1, 0], sizes = [1, 256], strides = [1, 1]} : vector<2x256xf32> to vector<1x256xf32>
      %422 = vector.broadcast %420 : vector<1x1xf32> to vector<1x256xf32>
      %423 = arith.mulf %422, %421 : vector<1x256xf32>
      %424 = arith.addf %419, %423 : vector<1x256xf32>
      %425 = arith.addf %424, %3 : vector<1x256xf32>
      %cst_142 = arith.constant 0.000000e+00 : f32
      %426 = vector.broadcast %cst_142 : f32 to vector<1x256xf32>
      %427 = arith.maximumf %425, %426 : vector<1x256xf32>
      %428 = arith.truncf %427 : vector<1x256xf32> to vector<1x256xbf16>
      %c0_143 = arith.constant 0 : index
      %c0_144 = arith.constant 0 : index
      %429 = vector.load %arg6[%c0_143, %c0_144] : memref<256x256xbf16, #tpu.memory_space<vmem>>, vector<256x256xbf16>
      %cst_145 = arith.constant dense<0.000000e+00> : vector<1x256xf32>
      %430 = tpu.matmul %428, %429, %cst_145 {dimension_numbers = #tpu.dot_dimension_numbers<[1], [0], [0], [1], [0, 0, 1, 1], [], []>} : vector<1x256xbf16>, vector<256x256xbf16>, vector<1x256xf32> -> vector<1x256xf32>
      %431 = arith.addf %430, %4 : vector<1x256xf32>
      %cst_146 = arith.constant 0.000000e+00 : f32
      %432 = vector.broadcast %cst_146 : f32 to vector<1x256xf32>
      %433 = arith.maximumf %431, %432 : vector<1x256xf32>
      %434 = arith.truncf %433 : vector<1x256xf32> to vector<1x256xbf16>
      %c0_147 = arith.constant 0 : index
      %c0_148 = arith.constant 0 : index
      %435 = vector.load %arg8[%c0_147, %c0_148] : memref<256x256xbf16, #tpu.memory_space<vmem>>, vector<256x256xbf16>
      %cst_149 = arith.constant dense<0.000000e+00> : vector<1x256xf32>
      %436 = tpu.matmul %434, %435, %cst_149 {dimension_numbers = #tpu.dot_dimension_numbers<[1], [0], [0], [1], [0, 0, 1, 1], [], []>} : vector<1x256xbf16>, vector<256x256xbf16>, vector<1x256xf32> -> vector<1x256xf32>
      %437 = arith.addf %436, %5 : vector<1x256xf32>
      %cst_150 = arith.constant 0.000000e+00 : f32
      %438 = vector.broadcast %cst_150 : f32 to vector<1x256xf32>
      %439 = arith.maximumf %437, %438 : vector<1x256xf32>
      %440 = vector.broadcast %439 : vector<1x256xf32> to vector<2x256xf32>
      %441 = arith.mulf %440, %6 : vector<2x256xf32>
      %cst_151 = arith.constant dense<0.000000e+00> : vector<2xf32>
      %442 = vector.multi_reduction <add>, %441, %cst_151 [1] : vector<2x256xf32> to vector<2xf32>
      %443 = vector.shape_cast %442 : vector<2xf32> to vector<2x1xf32>
      %444 = arith.addf %443, %7 : vector<2x1xf32>
      %cst_152 = arith.constant 1.250000e-01 : f32
      %445 = arith.mulf %312, %cst_152 : f32
      %446 = arith.addf %375, %410 : vector<2x1xf32>
      %cst_153 = arith.constant 3.000000e+00 : f32
      %447 = vector.broadcast %cst_153 : f32 to vector<2x1xf32>
      %448 = arith.mulf %447, %446 : vector<2x1xf32>
      %449 = arith.addf %341, %448 : vector<2x1xf32>
      %450 = arith.addf %449, %444 : vector<2x1xf32>
      %451 = vector.broadcast %445 : f32 to vector<2x1xf32>
      %452 = arith.mulf %451, %450 : vector<2x1xf32>
      %453 = arith.addf %304, %452 : vector<2x1xf32>
      %454 = arith.index_cast %310 : i32 to index
      %455 = memref.load %arg1[%454] : memref<400xi32, #tpu.memory_space<smem>>
      %c0_i32_154 = arith.constant 0 : i32
      %456 = arith.cmpi sge, %455, %c0_i32_154 : i32
      %457 = arith.extui %456 : i1 to i32
      %c0_i32_155 = arith.constant 0 : i32
      %458 = arith.cmpi ne, %457, %c0_i32_155 : i32
      scf.if %458 {
        %608 = arith.index_cast %310 : i32 to index
        %609 = memref.load %arg2[%608] : memref<400xf32, #tpu.memory_space<smem>>
        %610 = arith.subf %453, %304 : vector<2x1xf32>
        %611 = vector.broadcast %609 : f32 to vector<2x1xf32>
        %612 = arith.mulf %611, %610 : vector<2x1xf32>
        %613 = arith.addf %304, %612 : vector<2x1xf32>
        %614 = vector.extract_strided_slice %613 {offsets = [0, 0], sizes = [1, 1], strides = [1, 1]} : vector<2x1xf32> to vector<1x1xf32>
        %615 = arith.index_cast %455 : i32 to index
        %c0_202 = arith.constant 0 : index
        %616 = vector.load %arg12[%615, %c0_202] : memref<49x2xf32, #tpu.memory_space<vmem>>, vector<1x1xf32>
        tpu.vector_store %arg12[%615, %c0_202], %614 {strides = array<i32>} : memref<49x2xf32, #tpu.memory_space<vmem>>, vector<1x1xf32>,
        %617 = vector.extract_strided_slice %613 {offsets = [1, 0], sizes = [1, 1], strides = [1, 1]} : vector<2x1xf32> to vector<1x1xf32>
        %618 = arith.index_cast %455 : i32 to index
        %c1 = arith.constant 1 : index
        %619 = vector.load %arg12[%618, %c1] : memref<49x2xf32, #tpu.memory_space<vmem>>, vector<1x1xf32>
        tpu.vector_store %arg12[%618, %c1], %617 {strides = array<i32>} : memref<49x2xf32, #tpu.memory_space<vmem>>, vector<1x1xf32>,
      } else {
      }
      %c3_i32 = arith.constant 3 : i32
      %459 = arith.addi %11, %c3_i32 : i32
      %460 = arith.index_cast %459 : i32 to index
      %461 = memref.load %arg0[%460] : memref<400xf32, #tpu.memory_space<smem>>
      %462 = vector.extract_strided_slice %453 {offsets = [0, 0], sizes = [1, 1], strides = [1, 1]} : vector<2x1xf32> to vector<1x1xf32>
      %463 = vector.extract_strided_slice %2 {offsets = [0, 0], sizes = [1, 256], strides = [1, 1]} : vector<2x256xf32> to vector<1x256xf32>
      %464 = vector.broadcast %462 : vector<1x1xf32> to vector<1x256xf32>
      %465 = arith.mulf %464, %463 : vector<1x256xf32>
      %466 = vector.extract_strided_slice %453 {offsets = [1, 0], sizes = [1, 1], strides = [1, 1]} : vector<2x1xf32> to vector<1x1xf32>
      %467 = vector.extract_strided_slice %2 {offsets = [1, 0], sizes = [1, 256], strides = [1, 1]} : vector<2x256xf32> to vector<1x256xf32>
      %468 = vector.broadcast %466 : vector<1x1xf32> to vector<1x256xf32>
      %469 = arith.mulf %468, %467 : vector<1x256xf32>
      %470 = arith.addf %465, %469 : vector<1x256xf32>
      %471 = arith.addf %470, %3 : vector<1x256xf32>
      %cst_156 = arith.constant 0.000000e+00 : f32
      %472 = vector.broadcast %cst_156 : f32 to vector<1x256xf32>
      %473 = arith.maximumf %471, %472 : vector<1x256xf32>
      %474 = arith.truncf %473 : vector<1x256xf32> to vector<1x256xbf16>
      %c0_157 = arith.constant 0 : index
      %c0_158 = arith.constant 0 : index
      %475 = vector.load %arg6[%c0_157, %c0_158] : memref<256x256xbf16, #tpu.memory_space<vmem>>, vector<256x256xbf16>
      %cst_159 = arith.constant dense<0.000000e+00> : vector<1x256xf32>
      %476 = tpu.matmul %474, %475, %cst_159 {dimension_numbers = #tpu.dot_dimension_numbers<[1], [0], [0], [1], [0, 0, 1, 1], [], []>} : vector<1x256xbf16>, vector<256x256xbf16>, vector<1x256xf32> -> vector<1x256xf32>
      %477 = arith.addf %476, %4 : vector<1x256xf32>
      %cst_160 = arith.constant 0.000000e+00 : f32
      %478 = vector.broadcast %cst_160 : f32 to vector<1x256xf32>
      %479 = arith.maximumf %477, %478 : vector<1x256xf32>
      %480 = arith.truncf %479 : vector<1x256xf32> to vector<1x256xbf16>
      %c0_161 = arith.constant 0 : index
      %c0_162 = arith.constant 0 : index
      %481 = vector.load %arg8[%c0_161, %c0_162] : memref<256x256xbf16, #tpu.memory_space<vmem>>, vector<256x256xbf16>
      %cst_163 = arith.constant dense<0.000000e+00> : vector<1x256xf32>
      %482 = tpu.matmul %480, %481, %cst_163 {dimension_numbers = #tpu.dot_dimension_numbers<[1], [0], [0], [1], [0, 0, 1, 1], [], []>} : vector<1x256xbf16>, vector<256x256xbf16>, vector<1x256xf32> -> vector<1x256xf32>
      %483 = arith.addf %482, %5 : vector<1x256xf32>
      %cst_164 = arith.constant 0.000000e+00 : f32
      %484 = vector.broadcast %cst_164 : f32 to vector<1x256xf32>
      %485 = arith.maximumf %483, %484 : vector<1x256xf32>
      %486 = vector.broadcast %485 : vector<1x256xf32> to vector<2x256xf32>
      %487 = arith.mulf %486, %6 : vector<2x256xf32>
      %cst_165 = arith.constant dense<0.000000e+00> : vector<2xf32>
      %488 = vector.multi_reduction <add>, %487, %cst_165 [1] : vector<2x256xf32> to vector<2xf32>
      %489 = vector.shape_cast %488 : vector<2xf32> to vector<2x1xf32>
      %490 = arith.addf %489, %7 : vector<2x1xf32>
      %491 = vector.broadcast %461 : f32 to vector<2x1xf32>
      %492 = arith.mulf %491, %490 : vector<2x1xf32>
      %cst_166 = arith.constant 0.333333343 : f32
      %493 = vector.broadcast %cst_166 : f32 to vector<2x1xf32>
      %494 = arith.mulf %492, %493 : vector<2x1xf32>
      %495 = arith.addf %453, %494 : vector<2x1xf32>
      %496 = vector.extract_strided_slice %495 {offsets = [0, 0], sizes = [1, 1], strides = [1, 1]} : vector<2x1xf32> to vector<1x1xf32>
      %497 = vector.extract_strided_slice %2 {offsets = [0, 0], sizes = [1, 256], strides = [1, 1]} : vector<2x256xf32> to vector<1x256xf32>
      %498 = vector.broadcast %496 : vector<1x1xf32> to vector<1x256xf32>
      %499 = arith.mulf %498, %497 : vector<1x256xf32>
      %500 = vector.extract_strided_slice %495 {offsets = [1, 0], sizes = [1, 1], strides = [1, 1]} : vector<2x1xf32> to vector<1x1xf32>
      %501 = vector.extract_strided_slice %2 {offsets = [1, 0], sizes = [1, 256], strides = [1, 1]} : vector<2x256xf32> to vector<1x256xf32>
      %502 = vector.broadcast %500 : vector<1x1xf32> to vector<1x256xf32>
      %503 = arith.mulf %502, %501 : vector<1x256xf32>
      %504 = arith.addf %499, %503 : vector<1x256xf32>
      %505 = arith.addf %504, %3 : vector<1x256xf32>
      %cst_167 = arith.constant 0.000000e+00 : f32
      %506 = vector.broadcast %cst_167 : f32 to vector<1x256xf32>
      %507 = arith.maximumf %505, %506 : vector<1x256xf32>
      %508 = arith.truncf %507 : vector<1x256xf32> to vector<1x256xbf16>
      %c0_168 = arith.constant 0 : index
      %c0_169 = arith.constant 0 : index
      %509 = vector.load %arg6[%c0_168, %c0_169] : memref<256x256xbf16, #tpu.memory_space<vmem>>, vector<256x256xbf16>
      %cst_170 = arith.constant dense<0.000000e+00> : vector<1x256xf32>
      %510 = tpu.matmul %508, %509, %cst_170 {dimension_numbers = #tpu.dot_dimension_numbers<[1], [0], [0], [1], [0, 0, 1, 1], [], []>} : vector<1x256xbf16>, vector<256x256xbf16>, vector<1x256xf32> -> vector<1x256xf32>
      %511 = arith.addf %510, %4 : vector<1x256xf32>
      %cst_171 = arith.constant 0.000000e+00 : f32
      %512 = vector.broadcast %cst_171 : f32 to vector<1x256xf32>
      %513 = arith.maximumf %511, %512 : vector<1x256xf32>
      %514 = arith.truncf %513 : vector<1x256xf32> to vector<1x256xbf16>
      %c0_172 = arith.constant 0 : index
      %c0_173 = arith.constant 0 : index
      %515 = vector.load %arg8[%c0_172, %c0_173] : memref<256x256xbf16, #tpu.memory_space<vmem>>, vector<256x256xbf16>
      %cst_174 = arith.constant dense<0.000000e+00> : vector<1x256xf32>
      %516 = tpu.matmul %514, %515, %cst_174 {dimension_numbers = #tpu.dot_dimension_numbers<[1], [0], [0], [1], [0, 0, 1, 1], [], []>} : vector<1x256xbf16>, vector<256x256xbf16>, vector<1x256xf32> -> vector<1x256xf32>
      %517 = arith.addf %516, %5 : vector<1x256xf32>
      %cst_175 = arith.constant 0.000000e+00 : f32
      %518 = vector.broadcast %cst_175 : f32 to vector<1x256xf32>
      %519 = arith.maximumf %517, %518 : vector<1x256xf32>
      %520 = vector.broadcast %519 : vector<1x256xf32> to vector<2x256xf32>
      %521 = arith.mulf %520, %6 : vector<2x256xf32>
      %cst_176 = arith.constant dense<0.000000e+00> : vector<2xf32>
      %522 = vector.multi_reduction <add>, %521, %cst_176 [1] : vector<2x256xf32> to vector<2xf32>
      %523 = vector.shape_cast %522 : vector<2xf32> to vector<2x1xf32>
      %524 = arith.addf %523, %7 : vector<2x1xf32>
      %cst_177 = arith.constant 0.333333343 : f32
      %525 = vector.broadcast %cst_177 : f32 to vector<2x1xf32>
      %526 = arith.mulf %490, %525 : vector<2x1xf32>
      %527 = arith.subf %524, %526 : vector<2x1xf32>
      %528 = vector.broadcast %461 : f32 to vector<2x1xf32>
      %529 = arith.mulf %528, %527 : vector<2x1xf32>
      %530 = arith.addf %453, %529 : vector<2x1xf32>
      %531 = vector.extract_strided_slice %530 {offsets = [0, 0], sizes = [1, 1], strides = [1, 1]} : vector<2x1xf32> to vector<1x1xf32>
      %532 = vector.extract_strided_slice %2 {offsets = [0, 0], sizes = [1, 256], strides = [1, 1]} : vector<2x256xf32> to vector<1x256xf32>
      %533 = vector.broadcast %531 : vector<1x1xf32> to vector<1x256xf32>
      %534 = arith.mulf %533, %532 : vector<1x256xf32>
      %535 = vector.extract_strided_slice %530 {offsets = [1, 0], sizes = [1, 1], strides = [1, 1]} : vector<2x1xf32> to vector<1x1xf32>
      %536 = vector.extract_strided_slice %2 {offsets = [1, 0], sizes = [1, 256], strides = [1, 1]} : vector<2x256xf32> to vector<1x256xf32>
      %537 = vector.broadcast %535 : vector<1x1xf32> to vector<1x256xf32>
      %538 = arith.mulf %537, %536 : vector<1x256xf32>
      %539 = arith.addf %534, %538 : vector<1x256xf32>
      %540 = arith.addf %539, %3 : vector<1x256xf32>
      %cst_178 = arith.constant 0.000000e+00 : f32
      %541 = vector.broadcast %cst_178 : f32 to vector<1x256xf32>
      %542 = arith.maximumf %540, %541 : vector<1x256xf32>
      %543 = arith.truncf %542 : vector<1x256xf32> to vector<1x256xbf16>
      %c0_179 = arith.constant 0 : index
      %c0_180 = arith.constant 0 : index
      %544 = vector.load %arg6[%c0_179, %c0_180] : memref<256x256xbf16, #tpu.memory_space<vmem>>, vector<256x256xbf16>
      %cst_181 = arith.constant dense<0.000000e+00> : vector<1x256xf32>
      %545 = tpu.matmul %543, %544, %cst_181 {dimension_numbers = #tpu.dot_dimension_numbers<[1], [0], [0], [1], [0, 0, 1, 1], [], []>} : vector<1x256xbf16>, vector<256x256xbf16>, vector<1x256xf32> -> vector<1x256xf32>
      %546 = arith.addf %545, %4 : vector<1x256xf32>
      %cst_182 = arith.constant 0.000000e+00 : f32
      %547 = vector.broadcast %cst_182 : f32 to vector<1x256xf32>
      %548 = arith.maximumf %546, %547 : vector<1x256xf32>
      %549 = arith.truncf %548 : vector<1x256xf32> to vector<1x256xbf16>
      %c0_183 = arith.constant 0 : index
      %c0_184 = arith.constant 0 : index
      %550 = vector.load %arg8[%c0_183, %c0_184] : memref<256x256xbf16, #tpu.memory_space<vmem>>, vector<256x256xbf16>
      %cst_185 = arith.constant dense<0.000000e+00> : vector<1x256xf32>
      %551 = tpu.matmul %549, %550, %cst_185 {dimension_numbers = #tpu.dot_dimension_numbers<[1], [0], [0], [1], [0, 0, 1, 1], [], []>} : vector<1x256xbf16>, vector<256x256xbf16>, vector<1x256xf32> -> vector<1x256xf32>
      %552 = arith.addf %551, %5 : vector<1x256xf32>
      %cst_186 = arith.constant 0.000000e+00 : f32
      %553 = vector.broadcast %cst_186 : f32 to vector<1x256xf32>
      %554 = arith.maximumf %552, %553 : vector<1x256xf32>
      %555 = vector.broadcast %554 : vector<1x256xf32> to vector<2x256xf32>
      %556 = arith.mulf %555, %6 : vector<2x256xf32>
      %cst_187 = arith.constant dense<0.000000e+00> : vector<2xf32>
      %557 = vector.multi_reduction <add>, %556, %cst_187 [1] : vector<2x256xf32> to vector<2xf32>
      %558 = vector.shape_cast %557 : vector<2xf32> to vector<2x1xf32>
      %559 = arith.addf %558, %7 : vector<2x1xf32>
      %560 = arith.subf %490, %524 : vector<2x1xf32>
      %561 = arith.addf %560, %559 : vector<2x1xf32>
      %562 = vector.broadcast %461 : f32 to vector<2x1xf32>
      %563 = arith.mulf %562, %561 : vector<2x1xf32>
      %564 = arith.addf %453, %563 : vector<2x1xf32>
      %565 = vector.extract_strided_slice %564 {offsets = [0, 0], sizes = [1, 1], strides = [1, 1]} : vector<2x1xf32> to vector<1x1xf32>
      %566 = vector.extract_strided_slice %2 {offsets = [0, 0], sizes = [1, 256], strides = [1, 1]} : vector<2x256xf32> to vector<1x256xf32>
      %567 = vector.broadcast %565 : vector<1x1xf32> to vector<1x256xf32>
      %568 = arith.mulf %567, %566 : vector<1x256xf32>
      %569 = vector.extract_strided_slice %564 {offsets = [1, 0], sizes = [1, 1], strides = [1, 1]} : vector<2x1xf32> to vector<1x1xf32>
      %570 = vector.extract_strided_slice %2 {offsets = [1, 0], sizes = [1, 256], strides = [1, 1]} : vector<2x256xf32> to vector<1x256xf32>
      %571 = vector.broadcast %569 : vector<1x1xf32> to vector<1x256xf32>
      %572 = arith.mulf %571, %570 : vector<1x256xf32>
      %573 = arith.addf %568, %572 : vector<1x256xf32>
      %574 = arith.addf %573, %3 : vector<1x256xf32>
      %cst_188 = arith.constant 0.000000e+00 : f32
      %575 = vector.broadcast %cst_188 : f32 to vector<1x256xf32>
      %576 = arith.maximumf %574, %575 : vector<1x256xf32>
      %577 = arith.truncf %576 : vector<1x256xf32> to vector<1x256xbf16>
      %c0_189 = arith.constant 0 : index
      %c0_190 = arith.constant 0 : index
      %578 = vector.load %arg6[%c0_189, %c0_190] : memref<256x256xbf16, #tpu.memory_space<vmem>>, vector<256x256xbf16>
      %cst_191 = arith.constant dense<0.000000e+00> : vector<1x256xf32>
      %579 = tpu.matmul %577, %578, %cst_191 {dimension_numbers = #tpu.dot_dimension_numbers<[1], [0], [0], [1], [0, 0, 1, 1], [], []>} : vector<1x256xbf16>, vector<256x256xbf16>, vector<1x256xf32> -> vector<1x256xf32>
      %580 = arith.addf %579, %4 : vector<1x256xf32>
      %cst_192 = arith.constant 0.000000e+00 : f32
      %581 = vector.broadcast %cst_192 : f32 to vector<1x256xf32>
      %582 = arith.maximumf %580, %581 : vector<1x256xf32>
      %583 = arith.truncf %582 : vector<1x256xf32> to vector<1x256xbf16>
      %c0_193 = arith.constant 0 : index
      %c0_194 = arith.constant 0 : index
      %584 = vector.load %arg8[%c0_193, %c0_194] : memref<256x256xbf16, #tpu.memory_space<vmem>>, vector<256x256xbf16>
      %cst_195 = arith.constant dense<0.000000e+00> : vector<1x256xf32>
      %585 = tpu.matmul %583, %584, %cst_195 {dimension_numbers = #tpu.dot_dimension_numbers<[1], [0], [0], [1], [0, 0, 1, 1], [], []>} : vector<1x256xbf16>, vector<256x256xbf16>, vector<1x256xf32> -> vector<1x256xf32>
      %586 = arith.addf %585, %5 : vector<1x256xf32>
      %cst_196 = arith.constant 0.000000e+00 : f32
      %587 = vector.broadcast %cst_196 : f32 to vector<1x256xf32>
      %588 = arith.maximumf %586, %587 : vector<1x256xf32>
      %589 = vector.broadcast %588 : vector<1x256xf32> to vector<2x256xf32>
      %590 = arith.mulf %589, %6 : vector<2x256xf32>
      %cst_197 = arith.constant dense<0.000000e+00> : vector<2xf32>
      %591 = vector.multi_reduction <add>, %590, %cst_197 [1] : vector<2x256xf32> to vector<2xf32>
      %592 = vector.shape_cast %591 : vector<2xf32> to vector<2x1xf32>
      %593 = arith.addf %592, %7 : vector<2x1xf32>
      %cst_198 = arith.constant 1.250000e-01 : f32
      %594 = arith.mulf %461, %cst_198 : f32
      %595 = arith.addf %524, %559 : vector<2x1xf32>
      %cst_199 = arith.constant 3.000000e+00 : f32
      %596 = vector.broadcast %cst_199 : f32 to vector<2x1xf32>
      %597 = arith.mulf %596, %595 : vector<2x1xf32>
      %598 = arith.addf %490, %597 : vector<2x1xf32>
      %599 = arith.addf %598, %593 : vector<2x1xf32>
      %600 = vector.broadcast %594 : f32 to vector<2x1xf32>
      %601 = arith.mulf %600, %599 : vector<2x1xf32>
      %602 = arith.addf %453, %601 : vector<2x1xf32>
      %603 = arith.index_cast %459 : i32 to index
      %604 = memref.load %arg1[%603] : memref<400xi32, #tpu.memory_space<smem>>
      %c0_i32_200 = arith.constant 0 : i32
      %605 = arith.cmpi sge, %604, %c0_i32_200 : i32
      %606 = arith.extui %605 : i1 to i32
      %c0_i32_201 = arith.constant 0 : i32
      %607 = arith.cmpi ne, %606, %c0_i32_201 : i32
      scf.if %607 {
        %608 = arith.index_cast %459 : i32 to index
        %609 = memref.load %arg2[%608] : memref<400xf32, #tpu.memory_space<smem>>
        %610 = arith.subf %602, %453 : vector<2x1xf32>
        %611 = vector.broadcast %609 : f32 to vector<2x1xf32>
        %612 = arith.mulf %611, %610 : vector<2x1xf32>
        %613 = arith.addf %453, %612 : vector<2x1xf32>
        %614 = vector.extract_strided_slice %613 {offsets = [0, 0], sizes = [1, 1], strides = [1, 1]} : vector<2x1xf32> to vector<1x1xf32>
        %615 = arith.index_cast %604 : i32 to index
        %c0_202 = arith.constant 0 : index
        %616 = vector.load %arg12[%615, %c0_202] : memref<49x2xf32, #tpu.memory_space<vmem>>, vector<1x1xf32>
        tpu.vector_store %arg12[%615, %c0_202], %614 {strides = array<i32>} : memref<49x2xf32, #tpu.memory_space<vmem>>, vector<1x1xf32>,
        %617 = vector.extract_strided_slice %613 {offsets = [1, 0], sizes = [1, 1], strides = [1, 1]} : vector<2x1xf32> to vector<1x1xf32>
        %618 = arith.index_cast %604 : i32 to index
        %c1 = arith.constant 1 : index
        %619 = vector.load %arg12[%618, %c1] : memref<49x2xf32, #tpu.memory_space<vmem>>, vector<1x1xf32>
        tpu.vector_store %arg12[%618, %c1], %617 {strides = array<i32>} : memref<49x2xf32, #tpu.memory_space<vmem>>, vector<1x1xf32>,
      } else {
      }
      scf.yield %602 : vector<2x1xf32>
    }
    %c100_i32_15 = arith.constant 100 : i32
    return
  }
}

</mosaic_0001>

<llo_original>
// kernel: tpu_custom_call.1
$region0: #{tpu_custom_call.1}
  #allocation0 [shape = 'u32[]', space=smem, size = 0x4, offset = 0x4, fixed_abs, tag = 'smem constant byte address 0x4 - core index']
  #allocation1 [shape = 'u32[72,128]{1,0:T(1,128)}', space=vmem, size = 0x9000, scoped, tag = 'internal scratch']
  %s0 = inlined_call_operand.vmem [shape: f32[400], index: 0, kind: input, shape index: {}]
  %s1 = inlined_call_operand.hbm [shape: s32[400], index: 1, kind: input, shape index: {}]
  %s2 = inlined_call_operand.hbm [shape: f32[400], index: 2, kind: input, shape index: {}]
  %s3 = inlined_call_operand.vmem [shape: f32[2,1], index: 3, kind: input, shape index: {}]
  %s4 = inlined_call_operand.hbm [shape: f32[2,256], index: 4, kind: input, shape index: {}]
  %s5 = inlined_call_operand.hbm [shape: f32[1,256], index: 5, kind: input, shape index: {}]
  %s6 = inlined_call_operand.hbm [shape: bf16[256,256], index: 6, kind: input, shape index: {}]
  %s7 = inlined_call_operand.hbm [shape: f32[1,256], index: 7, kind: input, shape index: {}]
  %s8 = inlined_call_operand.hbm [shape: bf16[256,256], index: 8, kind: input, shape index: {}]
  %s9 = inlined_call_operand.vmem [shape: f32[1,256], index: 9, kind: input, shape index: {}]
  %s10 = inlined_call_operand.vmem [shape: f32[2,256], index: 10, kind: input, shape index: {}]
  %s11 = inlined_call_operand.vmem [shape: f32[2,1], index: 11, kind: input, shape index: {}]
  %s12 = inlined_call_operand.vmem [shape: f32[49,2], index: 12, kind: output, shape index: {}]
  %s13 = sld [smem:[#allocation0]]
  $region113: #{tpu_custom_call.1} parent=0
    _
  %s15 = ssub.s32 1, %s13
  %s16 = scalar_select 0, %s15, %s13
  $region1: #{tpu_custom_call.1} parent=0
    #allocation2 [shape = 'u8[2048]{0}', space=smem, size = 0x800, scoped, tag = 'input window, operand 0, single buffered']
    #allocation3 [shape = 's32[1]{0}', space=sflag, size = 0x4, scoped, tag = 'scoped memory for tpu_custom_call.1']
    #allocation4 [shape = 's32[1]{0}', space=sflag, size = 0x4, scoped, tag = 'scoped memory for tpu_custom_call.1']
    #allocation5 [shape = 's32[1]{0}', space=sflag, size = 0x4, scoped, tag = 'scoped memory for tpu_custom_call.1']
    #allocation6 [shape = 'u8[2048]{0}', space=smem, size = 0x800, scoped, tag = 'input window, operand 1, single buffered']
    #allocation7 [shape = 'u8[2048]{0}', space=smem, size = 0x800, scoped, tag = 'input window, operand 2, single buffered']
    #allocation8 [shape = 's32[1]{0}', space=sflag, size = 0x4, scoped, tag = 'scoped memory for tpu_custom_call.1']
    #allocation9 [shape = 'u8[2048]{0}', space=vmem, size = 0x800, scoped, tag = 'input window, operand 4, single buffered']
    #allocation10 [shape = 'u8[1024]{0}', space=vmem, size = 0x400, scoped, tag = 'input window, operand 5, single buffered']
    #allocation11 [shape = 's32[1]{0}', space=sflag, size = 0x4, scoped, tag = 'scoped memory for tpu_custom_call.1']
    #allocation12 [shape = 'u8[131072]{0}', space=vmem, size = 0x20000, scoped, tag = 'input window, operand 6, single buffered']
    #allocation13 [shape = 'u8[1024]{0}', space=vmem, size = 0x400, scoped, tag = 'input window, operand 7, single buffered']
    #allocation14 [shape = 's32[1]{0}', space=sflag, size = 0x4, scoped, tag = 'scoped memory for tpu_custom_call.1']
    #allocation15 [shape = 'u8[131072]{0}', space=vmem, size = 0x20000, scoped, tag = 'input window, operand 8, single buffered']
    %17 = vsyncpa [#allocation5], 0
    %18 = vsyncpa [#allocation4], 0
    %19 = vsyncpa [#allocation8], 0
    %20 = vsyncpa [#allocation3], 0
    %21 = vsyncpa [#allocation11], 0
    %22 = vsyncpa [#allocation14], 0
    // Predicated region
    $region2: #{tpu_custom_call.1} parent=1 // pred_check
      _
    $region3: #{tpu_custom_call.1} parent=1 // pred_check_branch
      %24 = sbr.rel (0) target = $region5
    $region4: #{tpu_custom_call.1} parent=1 // pred_region
      %26 = vsyncadd [#allocation5], 0
      %s28 = sshll.u32 %s0, 4
      %s29 = int_to_ptr.vmem [resolvable:$true] %s28
      %31 = dma.vmem_to_smem %s29, 64, [#allocation2], [#allocation5]
    $region5: #{tpu_custom_call.1} parent=1 // pred_fallthru
      _
    // Predicated region
    $region6: #{tpu_custom_call.1} parent=1 // pred_check
      _
    $region7: #{tpu_custom_call.1} parent=1 // pred_check_branch
      %33 = sbr.rel (0) target = $region9
    $region8: #{tpu_custom_call.1} parent=1 // pred_region
      %35 = vsyncadd [#allocation4], 0
      %s37 = sshll.u32 %s1, 4
      %s38 = int_to_ptr.hbm [resolvable:$true] %s37
      %40 = dma.hbm_to_smem %s38, 64, [#allocation6], [#allocation4]
    $region9: #{tpu_custom_call.1} parent=1 // pred_fallthru
      _
    // Predicated region
    $region10: #{tpu_custom_call.1} parent=1 // pred_check
      _
    $region11: #{tpu_custom_call.1} parent=1 // pred_check_branch
      %42 = sbr.rel (0) target = $region13
    $region12: #{tpu_custom_call.1} parent=1 // pred_region
      %44 = vsyncadd [#allocation8], 0
      %s46 = sshll.u32 %s2, 4
      %s47 = int_to_ptr.hbm [resolvable:$true] %s46
      %49 = dma.hbm_to_smem %s47, 64, [#allocation7], [#allocation8]
    $region13: #{tpu_custom_call.1} parent=1 // pred_fallthru
      _
    // Predicated region
    $region14: #{tpu_custom_call.1} parent=1 // pred_check
      _
    $region15: #{tpu_custom_call.1} parent=1 // pred_check_branch
      %51 = sbr.rel (0) target = $region17
    $region16: #{tpu_custom_call.1} parent=1 // pred_region
      _
    $region17: #{tpu_custom_call.1} parent=1 // pred_fallthru
      _
    // Predicated region
    $region18: #{tpu_custom_call.1} parent=1 // pred_check
      _
    $region19: #{tpu_custom_call.1} parent=1 // pred_check_branch
      %53 = sbr.rel (0) target = $region21
    $region20: #{tpu_custom_call.1} parent=1 // pred_region
      %55 = vsyncadd [#allocation3], 0
      %s57 = sshll.u32 %s4, 4
      %s58 = int_to_ptr.hbm [resolvable:$true] %s57
      %s59 = sshll.u32 [#allocation9], 4
      %s60 = int_to_ptr.vmem [resolvable:$true] %s59
      %62 = dma.hbm_to_vmem [thread:$0]  %s58, 64, %s60, [#allocation3]
    $region21: #{tpu_custom_call.1} parent=1 // pred_fallthru
      _
    // Predicated region
    $region22: #{tpu_custom_call.1} parent=1 // pred_check
      _
    $region23: #{tpu_custom_call.1} parent=1 // pred_check_branch
      %64 = sbr.rel (0) target = $region25
    $region24: #{tpu_custom_call.1} parent=1 // pred_region
      %66 = vsyncadd [#allocation11], 0
      %s68 = sshll.u32 %s5, 4
      %s69 = int_to_ptr.hbm [resolvable:$true] %s68
      %s70 = sshll.u32 [#allocation10], 4
      %s71 = int_to_ptr.vmem [resolvable:$true] %s70
      %73 = dma.hbm_to_vmem [thread:$0]  %s69, 32, %s71, [#allocation11]
    $region25: #{tpu_custom_call.1} parent=1 // pred_fallthru
      _
    // Predicated region
    $region26: #{tpu_custom_call.1} parent=1 // pred_check
      _
    $region27: #{tpu_custom_call.1} parent=1 // pred_check_branch
      %75 = sbr.rel (0) target = $region29
    $region28: #{tpu_custom_call.1} parent=1 // pred_region
      %77 = vsyncadd [#allocation11], 0
      %s78 = sshll.u32 %s6, 4
      %s79 = int_to_ptr.hbm [resolvable:$true] %s78
      %s80 = sshll.u32 [#allocation12], 4
      %s81 = int_to_ptr.vmem [resolvable:$true] %s80
      %86 = dma.hbm_to_vmem [thread:$0]  %s79, 4096, %s81, [#allocation11], 128, 128, 8
    $region29: #{tpu_custom_call.1} parent=1 // pred_fallthru
      _
    // Predicated region
    $region30: #{tpu_custom_call.1} parent=1 // pred_check
      _
    $region31: #{tpu_custom_call.1} parent=1 // pred_check_branch
      %88 = sbr.rel (0) target = $region33
    $region32: #{tpu_custom_call.1} parent=1 // pred_region
      %90 = vsyncadd [#allocation14], 0
      %s92 = sshll.u32 %s7, 4
      %s93 = int_to_ptr.hbm [resolvable:$true] %s92
      %s94 = sshll.u32 [#allocation13], 4
      %s95 = int_to_ptr.vmem [resolvable:$true] %s94
      %97 = dma.hbm_to_vmem [thread:$0]  %s93, 32, %s95, [#allocation14]
    $region33: #{tpu_custom_call.1} parent=1 // pred_fallthru
      _
    // Predicated region
    $region34: #{tpu_custom_call.1} parent=1 // pred_check
      _
    $region35: #{tpu_custom_call.1} parent=1 // pred_check_branch
      %99 = sbr.rel (0) target = $region37
    $region36: #{tpu_custom_call.1} parent=1 // pred_region
      %101 = vsyncadd [#allocation14], 0
      %s102 = sshll.u32 %s8, 4
      %s103 = int_to_ptr.hbm [resolvable:$true] %s102
      %s104 = sshll.u32 [#allocation15], 4
      %s105 = int_to_ptr.vmem [resolvable:$true] %s104
      %110 = dma.hbm_to_vmem [thread:$0]  %s103, 4096, %s105, [#allocation14], 128, 128, 8
    $region37: #{tpu_custom_call.1} parent=1 // pred_fallthru
      _
    // Predicated region
    $region38: #{tpu_custom_call.1} parent=1 // pred_check
      _
    $region39: #{tpu_custom_call.1} parent=1 // pred_check_branch
      %112 = sbr.rel (0) target = $region41
    $region40: #{tpu_custom_call.1} parent=1 // pred_region
      _
    $region41: #{tpu_custom_call.1} parent=1 // pred_fallthru
      _
    // Predicated region
    $region42: #{tpu_custom_call.1} parent=1 // pred_check
      _
    $region43: #{tpu_custom_call.1} parent=1 // pred_check_branch
      %114 = sbr.rel (0) target = $region45
    $region44: #{tpu_custom_call.1} parent=1 // pred_region
      _
    $region45: #{tpu_custom_call.1} parent=1 // pred_fallthru
      _
    // Predicated region
    $region46: #{tpu_custom_call.1} parent=1 // pred_check
      _
    $region47: #{tpu_custom_call.1} parent=1 // pred_check_branch
      %116 = sbr.rel (0) target = $region49
    $region48: #{tpu_custom_call.1} parent=1 // pred_region
      _
    $region49: #{tpu_custom_call.1} parent=1 // pred_fallthru
      _
    // Predicated region
    $region50: #{tpu_custom_call.1} parent=1 // pred_check
      _
    $region51: #{tpu_custom_call.1} parent=1 // pred_check_branch
      %118 = sbr.rel (0) target = $region53
    $region52: #{tpu_custom_call.1} parent=1 // pred_region
      %120 = dma.done [#allocation5], 64
    $region53: #{tpu_custom_call.1} parent=1 // pred_fallthru
      _
    // Predicated region
    $region54: #{tpu_custom_call.1} parent=1 // pred_check
      _
    $region55: #{tpu_custom_call.1} parent=1 // pred_check_branch
      %122 = sbr.rel (0) target = $region57
    $region56: #{tpu_custom_call.1} parent=1 // pred_region
      %124 = dma.done [#allocation4], 64
    $region57: #{tpu_custom_call.1} parent=1 // pred_fallthru
      _
    // Predicated region
    $region58: #{tpu_custom_call.1} parent=1 // pred_check
      _
    $region59: #{tpu_custom_call.1} parent=1 // pred_check_branch
      %126 = sbr.rel (0) target = $region61
    $region60: #{tpu_custom_call.1} parent=1 // pred_region
      %128 = dma.done [#allocation8], 64
    $region61: #{tpu_custom_call.1} parent=1 // pred_fallthru
      _
    // Predicated region
    $region62: #{tpu_custom_call.1} parent=1 // pred_check
      _
    $region63: #{tpu_custom_call.1} parent=1 // pred_check_branch
      %130 = sbr.rel (0) target = $region65
    $region64: #{tpu_custom_call.1} parent=1 // pred_region
      %132 = dma.done [#allocation3], 64
    $region65: #{tpu_custom_call.1} parent=1 // pred_fallthru
      _
    // Predicated region
    $region66: #{tpu_custom_call.1} parent=1 // pred_check
      _
    $region67: #{tpu_custom_call.1} parent=1 // pred_check_branch
      %134 = sbr.rel (0) target = $region69
    $region68: #{tpu_custom_call.1} parent=1 // pred_region
      %136 = dma.done [#allocation11], 32
    $region69: #{tpu_custom_call.1} parent=1 // pred_fallthru
      _
    // Predicated region
    $region70: #{tpu_custom_call.1} parent=1 // pred_check
      _
    $region71: #{tpu_custom_call.1} parent=1 // pred_check_branch
      %138 = sbr.rel (0) target = $region73
    $region72: #{tpu_custom_call.1} parent=1 // pred_region
      %140 = dma.done [#allocation11], 4096
    $region73: #{tpu_custom_call.1} parent=1 // pred_fallthru
      _
    // Predicated region
    $region74: #{tpu_custom_call.1} parent=1 // pred_check
      _
    $region75: #{tpu_custom_call.1} parent=1 // pred_check_branch
      %142 = sbr.rel (0) target = $region77
    $region76: #{tpu_custom_call.1} parent=1 // pred_region
      %144 = dma.done [#allocation14], 32
    $region77: #{tpu_custom_call.1} parent=1 // pred_fallthru
      _
    // Predicated region
    $region78: #{tpu_custom_call.1} parent=1 // pred_check
      _
    $region79: #{tpu_custom_call.1} parent=1 // pred_check_branch
      %146 = sbr.rel (0) target = $region81
    $region80: #{tpu_custom_call.1} parent=1 // pred_region
      %148 = dma.done [#allocation14], 4096
    $region81: #{tpu_custom_call.1} parent=1 // pred_fallthru
      _
    %149 = sfence
    %vm150 = vcmask 15360
    %151 = vst.msk [vmem:[%s12] sm:$0xff] %vm150, 0.0
    %152 = vst.msk [vmem:[%s12 + $0x8] sm:$0xff] %vm150, 0.0
    %153 = vst.msk [vmem:[%s12 + $0x10] sm:$0xff] %vm150, 0.0
    %154 = vst.msk [vmem:[%s12 + $0x18] sm:$0xff] %vm150, 0.0
    %155 = vst.msk [vmem:[%s12 + $0x20] sm:$0xff] %vm150, 0.0
    %156 = vst.msk [vmem:[%s12 + $0x28] sm:$0xff] %vm150, 0.0
    %vm157 = vcmask 8192
    %158 = vst.msk [vmem:[%s12 + $0x30] sm:$0x1] %vm157, 0.0
    %v159 = vld [vmem:[#allocation9] sm:$0xf]
    %v160 = vld [vmem:[#allocation10] sm:$0x3]
    %v161 = vld [vmem:[#allocation13] sm:$0x3]
    %v162 = vld [vmem:[%s9] sm:$0x3]
    %v163 = vld [vmem:[%s10] sm:$0xf]
    %v164 = vld [vmem:[%s11] sm:$0x3]
    %v165 = vld [vmem:[%s3] sm:$0x3]
    loop: start=0, step=1, limit=100
    $region82: #{tpu_custom_call.1} parent=1 // loop_pre_header
      _
    $region83: #{tpu_custom_call.1} parent=1 // loop_header
      %s167 = sphi 0, %s171
      %p168 = scmp.ge.s32.totalorder %s167, 100
      %v172 = vphi %v165, %v4247
    $region84: #{tpu_custom_call.1} parent=1 // loop_header_branch
      %170 = sbr.rel (%p168) target = $region88
    $region85: #{tpu_custom_call.1} parent=1 // loop_body
      %s173 = smul.u32 %s167, 4
      %s174 = sld [smem:[#allocation2 + %s173]]
      %176 = vset.pattern.permute.xlu0 0
      %177 = vperm.xlu0 %176, %v172
      %v178 = vpop.permute.xlu0 %177
      %v181 = vperm.slane %v159, 0
      %v182 = vperm.slane %v159, 2
      %v185 = vmul.f32 %v178, %v181
      %v186 = vmul.f32 %v178, %v182
      %v187 = vperm.slane %v159, 1
      %v188 = vperm.slane %v159, 3
      %v191 = vmul.f32 %v178, %v187
      %v192 = vmul.f32 %v178, %v188
      %v195 = vrot.slane %v191, 1
      %v196 = vrot.slane %v192, 1
      %v199 = vadd.f32 %v185, %v195
      %v200 = vadd.f32 %v186, %v196
      %v202 = vperm.slane %v160, 0
      %v203 = vperm.slane %v160, 1
      %v206 = vadd.f32 %v199, %v202
      %v207 = vadd.f32 %v200, %v203
      %v208 = vmax.f32 %v206, 0.0
      %v209 = vmax.f32 %v207, 0.0
      %v210 = vpack.c.bf16 %v208, %v208
      %v211 = vpack.c.bf16 %v209, %v209
      %v212 = vld [vmem:[#allocation12] sm:$0xff]
      %v213 = vld [vmem:[#allocation12 + $0x8] sm:$0xff]
      %v214 = vld [vmem:[#allocation12 + $0x10] sm:$0xff]
      %v215 = vld [vmem:[#allocation12 + $0x18] sm:$0xff]
      %v216 = vld [vmem:[#allocation12 + $0x20] sm:$0xff]
      %v217 = vld [vmem:[#allocation12 + $0x28] sm:$0xff]
      %v218 = vld [vmem:[#allocation12 + $0x30] sm:$0xff]
      %v219 = vld [vmem:[#allocation12 + $0x38] sm:$0xff]
      %v220 = vld [vmem:[#allocation12 + $0x40] sm:$0xff]
      %v221 = vld [vmem:[#allocation12 + $0x48] sm:$0xff]
      %v222 = vld [vmem:[#allocation12 + $0x50] sm:$0xff]
      %v223 = vld [vmem:[#allocation12 + $0x58] sm:$0xff]
      %v224 = vld [vmem:[#allocation12 + $0x60] sm:$0xff]
      %v225 = vld [vmem:[#allocation12 + $0x68] sm:$0xff]
      %v226 = vld [vmem:[#allocation12 + $0x70] sm:$0xff]
      %v227 = vld [vmem:[#allocation12 + $0x78] sm:$0xff]
      %v228 = vld [vmem:[#allocation12 + $0x80] sm:$0xff]
      %v229 = vld [vmem:[#allocation12 + $0x88] sm:$0xff]
      %v230 = vld [vmem:[#allocation12 + $0x90] sm:$0xff]
      %v231 = vld [vmem:[#allocation12 + $0x98] sm:$0xff]
      %v232 = vld [vmem:[#allocation12 + $0xa0] sm:$0xff]
      %v233 = vld [vmem:[#allocation12 + $0xa8] sm:$0xff]
      %v234 = vld [vmem:[#allocation12 + $0xb0] sm:$0xff]
      %v235 = vld [vmem:[#allocation12 + $0xb8] sm:$0xff]
      %v236 = vld [vmem:[#allocation12 + $0xc0] sm:$0xff]
      %v237 = vld [vmem:[#allocation12 + $0xc8] sm:$0xff]
      %v238 = vld [vmem:[#allocation12 + $0xd0] sm:$0xff]
      %v239 = vld [vmem:[#allocation12 + $0xd8] sm:$0xff]
      %v240 = vld [vmem:[#allocation12 + $0xe0] sm:$0xff]
      %v241 = vld [vmem:[#allocation12 + $0xe8] sm:$0xff]
      %v242 = vld [vmem:[#allocation12 + $0xf0] sm:$0xff]
      %v243 = vld [vmem:[#allocation12 + $0xf8] sm:$0xff]
      %v276 = vunpack.c.l.b16 %v212
      %v277 = vunpack.c.h.b16 %v212
      %v278 = vunpack.c.l.b16 %v213
      %v279 = vunpack.c.h.b16 %v213
      %v280 = vunpack.c.l.b16 %v214
      %v281 = vunpack.c.h.b16 %v214
      %v282 = vunpack.c.l.b16 %v215
      %v283 = vunpack.c.h.b16 %v215
      %v284 = vunpack.c.l.b16 %v216
      %v285 = vunpack.c.h.b16 %v216
      %v286 = vunpack.c.l.b16 %v217
      %v287 = vunpack.c.h.b16 %v217
      %v288 = vunpack.c.l.b16 %v218
      %v289 = vunpack.c.h.b16 %v218
      %v290 = vunpack.c.l.b16 %v219
      %v291 = vunpack.c.h.b16 %v219
      %v292 = vunpack.c.l.b16 %v220
      %v293 = vunpack.c.h.b16 %v220
      %v294 = vunpack.c.l.b16 %v221
      %v295 = vunpack.c.h.b16 %v221
      %v296 = vunpack.c.l.b16 %v222
      %v297 = vunpack.c.h.b16 %v222
      %v298 = vunpack.c.l.b16 %v223
      %v299 = vunpack.c.h.b16 %v223
      %v300 = vunpack.c.l.b16 %v224
      %v301 = vunpack.c.h.b16 %v224
      %v302 = vunpack.c.l.b16 %v225
      %v303 = vunpack.c.h.b16 %v225
      %v304 = vunpack.c.l.b16 %v226
      %v305 = vunpack.c.h.b16 %v226
      %v306 = vunpack.c.l.b16 %v227
      %v307 = vunpack.c.h.b16 %v227
      %v308 = vunpack.c.l.b16 %v228
      %v309 = vunpack.c.h.b16 %v228
      %v310 = vunpack.c.l.b16 %v229
      %v311 = vunpack.c.h.b16 %v229
      %v312 = vunpack.c.l.b16 %v230
      %v313 = vunpack.c.h.b16 %v230
      %v314 = vunpack.c.l.b16 %v231
      %v315 = vunpack.c.h.b16 %v231
      %v316 = vunpack.c.l.b16 %v232
      %v317 = vunpack.c.h.b16 %v232
      %v318 = vunpack.c.l.b16 %v233
      %v319 = vunpack.c.h.b16 %v233
      %v320 = vunpack.c.l.b16 %v234
      %v321 = vunpack.c.h.b16 %v234
      %v322 = vunpack.c.l.b16 %v235
      %v323 = vunpack.c.h.b16 %v235
      %v324 = vunpack.c.l.b16 %v236
      %v325 = vunpack.c.h.b16 %v236
      %v326 = vunpack.c.l.b16 %v237
      %v327 = vunpack.c.h.b16 %v237
      %v328 = vunpack.c.l.b16 %v238
      %v329 = vunpack.c.h.b16 %v238
      %v330 = vunpack.c.l.b16 %v239
      %v331 = vunpack.c.h.b16 %v239
      %v332 = vunpack.c.l.b16 %v240
      %v333 = vunpack.c.h.b16 %v240
      %v334 = vunpack.c.l.b16 %v241
      %v335 = vunpack.c.h.b16 %v241
      %v336 = vunpack.c.l.b16 %v242
      %v337 = vunpack.c.h.b16 %v242
      %v338 = vunpack.c.l.b16 %v243
      %v339 = vunpack.c.h.b16 %v243
      %v340 = vpack.c.b16 %v278, %v276
      %v341 = vpack.c.b16 %v279, %v277
      %v342 = vpack.c.b16 %v282, %v280
      %v343 = vpack.c.b16 %v283, %v281
      %v344 = vpack.c.b16 %v286, %v284
      %v345 = vpack.c.b16 %v287, %v285
      %v346 = vpack.c.b16 %v290, %v288
      %v347 = vpack.c.b16 %v291, %v289
      %v348 = vpack.c.b16 %v294, %v292
      %v349 = vpack.c.b16 %v295, %v293
      %v350 = vpack.c.b16 %v298, %v296
      %v351 = vpack.c.b16 %v299, %v297
      %v352 = vpack.c.b16 %v302, %v300
      %v353 = vpack.c.b16 %v303, %v301
      %v354 = vpack.c.b16 %v306, %v304
      %v355 = vpack.c.b16 %v307, %v305
      %v356 = vpack.c.b16 %v310, %v308
      %v357 = vpack.c.b16 %v311, %v309
      %v358 = vpack.c.b16 %v314, %v312
      %v359 = vpack.c.b16 %v315, %v313
      %v360 = vpack.c.b16 %v318, %v316
      %v361 = vpack.c.b16 %v319, %v317
      %v362 = vpack.c.b16 %v322, %v320
      %v363 = vpack.c.b16 %v323, %v321
      %v364 = vpack.c.b16 %v326, %v324
      %v365 = vpack.c.b16 %v327, %v325
      %v366 = vpack.c.b16 %v330, %v328
      %v367 = vpack.c.b16 %v331, %v329
      %v368 = vpack.c.b16 %v334, %v332
      %v369 = vpack.c.b16 %v335, %v333
      %v370 = vpack.c.b16 %v338, %v336
      %v371 = vpack.c.b16 %v339, %v337
      %v405 = vperm.slane %v161, 0
      %v406 = vperm.slane %v161, 1
      %409 = vmatpush.bf16.msra.mxu0 %v354
      %410 = vmatpush.bf16.msra.mxu0 %v352
      %411 = vmatpush.bf16.msra.mxu0 %v350
      %412 = vmatpush.bf16.msra.mxu0 %v348
      %413 = vmatpush.bf16.msra.mxu0 %v346
      %414 = vmatpush.bf16.msra.mxu0 %v344
      %415 = vmatpush.bf16.msra.mxu0 %v342
      %416 = vmatpush.bf16.msra.mxu0 %v340
      %417 = vmatmul.bf16.gmra.mxu0 %v210
      %v418 = vpop.f32.mrf.mxu0
      %v419 = vadd.f32 %v405, %v418
      %v420 = vpop.f32.mrf.mxu0
      %421 = vdwg.mxu0
      %422 = vmatpush.bf16.msra.mxu0 %v370
      %423 = vmatpush.bf16.msra.mxu0 %v368
      %424 = vmatpush.bf16.msra.mxu0 %v366
      %425 = vmatpush.bf16.msra.mxu0 %v364
      %426 = vmatpush.bf16.msra.mxu0 %v362
      %427 = vmatpush.bf16.msra.mxu0 %v360
      %428 = vmatpush.bf16.msra.mxu0 %v358
      %429 = vmatpush.bf16.msra.mxu0 %v356
      %430 = vmatmul.bf16.gmra.mxu0 %v211
      %v431 = vpop.f32.mrf.mxu0
      %v432 = vadd.f32 %v419, %v431
      %v433 = vpop.f32.mrf.mxu0
      %434 = vdwg.mxu0
      %435 = vmatpush.bf16.msra.mxu0 %v355
      %436 = vmatpush.bf16.msra.mxu0 %v353
      %437 = vmatpush.bf16.msra.mxu0 %v351
      %438 = vmatpush.bf16.msra.mxu0 %v349
      %439 = vmatpush.bf16.msra.mxu0 %v347
      %440 = vmatpush.bf16.msra.mxu0 %v345
      %441 = vmatpush.bf16.msra.mxu0 %v343
      %442 = vmatpush.bf16.msra.mxu0 %v341
      %443 = vmatmul.bf16.gmra.mxu0 %v210
      %v444 = vpop.f32.mrf.mxu0
      %v445 = vadd.f32 %v406, %v444
      %v446 = vpop.f32.mrf.mxu0
      %447 = vdwg.mxu0
      %448 = vmatpush.bf16.msra.mxu0 %v371
      %449 = vmatpush.bf16.msra.mxu0 %v369
      %450 = vmatpush.bf16.msra.mxu0 %v367
      %451 = vmatpush.bf16.msra.mxu0 %v365
      %452 = vmatpush.bf16.msra.mxu0 %v363
      %453 = vmatpush.bf16.msra.mxu0 %v361
      %454 = vmatpush.bf16.msra.mxu0 %v359
      %455 = vmatpush.bf16.msra.mxu0 %v357
      %456 = vmatmul.bf16.gmra.mxu0 %v211
      %v457 = vpop.f32.mrf.mxu0
      %v458 = vadd.f32 %v445, %v457
      %v459 = vpop.f32.mrf.mxu0
      %460 = vdwg.mxu0
      %v461 = vmax.f32 %v432, 0.0
      %v462 = vmax.f32 %v458, 0.0
      %v463 = vpack.c.bf16 %v461, %v461
      %v464 = vpack.c.bf16 %v462, %v462
      %v465 = vld [vmem:[#allocation15] sm:$0xff]
      %v466 = vld [vmem:[#allocation15 + $0x8] sm:$0xff]
      %v467 = vld [vmem:[#allocation15 + $0x10] sm:$0xff]
      %v468 = vld [vmem:[#allocation15 + $0x18] sm:$0xff]
      %v469 = vld [vmem:[#allocation15 + $0x20] sm:$0xff]
      %v470 = vld [vmem:[#allocation15 + $0x28] sm:$0xff]
      %v471 = vld [vmem:[#allocation15 + $0x30] sm:$0xff]
      %v472 = vld [vmem:[#allocation15 + $0x38] sm:$0xff]
      %v473 = vld [vmem:[#allocation15 + $0x40] sm:$0xff]
      %v474 = vld [vmem:[#allocation15 + $0x48] sm:$0xff]
      %v475 = vld [vmem:[#allocation15 + $0x50] sm:$0xff]
      %v476 = vld [vmem:[#allocation15 + $0x58] sm:$0xff]
      %v477 = vld [vmem:[#allocation15 + $0x60] sm:$0xff]
      %v478 = vld [vmem:[#allocation15 + $0x68] sm:$0xff]
      %v479 = vld [vmem:[#allocation15 + $0x70] sm:$0xff]
      %v480 = vld [vmem:[#allocation15 + $0x78] sm:$0xff]
      %v481 = vld [vmem:[#allocation15 + $0x80] sm:$0xff]
      %v482 = vld [vmem:[#allocation15 + $0x88] sm:$0xff]
      %v483 = vld [vmem:[#allocation15 + $0x90] sm:$0xff]
      %v484 = vld [vmem:[#allocation15 + $0x98] sm:$0xff]
      %v485 = vld [vmem:[#allocation15 + $0xa0] sm:$0xff]
      %v486 = vld [vmem:[#allocation15 + $0xa8] sm:$0xff]
      %v487 = vld [vmem:[#allocation15 + $0xb0] sm:$0xff]
      %v488 = vld [vmem:[#allocation15 + $0xb8] sm:$0xff]
      %v489 = vld [vmem:[#allocation15 + $0xc0] sm:$0xff]
      %v490 = vld [vmem:[#allocation15 + $0xc8] sm:$0xff]
      %v491 = vld [vmem:[#allocation15 + $0xd0] sm:$0xff]
      %v492 = vld [vmem:[#allocation15 + $0xd8] sm:$0xff]
      %v493 = vld [vmem:[#allocation15 + $0xe0] sm:$0xff]
      %v494 = vld [vmem:[#allocation15 + $0xe8] sm:$0xff]
      %v495 = vld [vmem:[#allocation15 + $0xf0] sm:$0xff]
      %v496 = vld [vmem:[#allocation15 + $0xf8] sm:$0xff]
      %v529 = vunpack.c.l.b16 %v465
      %v530 = vunpack.c.h.b16 %v465
      %v531 = vunpack.c.l.b16 %v466
      %v532 = vunpack.c.h.b16 %v466
      %v533 = vunpack.c.l.b16 %v467
      %v534 = vunpack.c.h.b16 %v467
      %v535 = vunpack.c.l.b16 %v468
      %v536 = vunpack.c.h.b16 %v468
      %v537 = vunpack.c.l.b16 %v469
      %v538 = vunpack.c.h.b16 %v469
      %v539 = vunpack.c.l.b16 %v470
      %v540 = vunpack.c.h.b16 %v470
      %v541 = vunpack.c.l.b16 %v471
      %v542 = vunpack.c.h.b16 %v471
      %v543 = vunpack.c.l.b16 %v472
      %v544 = vunpack.c.h.b16 %v472
      %v545 = vunpack.c.l.b16 %v473
      %v546 = vunpack.c.h.b16 %v473
      %v547 = vunpack.c.l.b16 %v474
      %v548 = vunpack.c.h.b16 %v474
      %v549 = vunpack.c.l.b16 %v475
      %v550 = vunpack.c.h.b16 %v475
      %v551 = vunpack.c.l.b16 %v476
      %v552 = vunpack.c.h.b16 %v476
      %v553 = vunpack.c.l.b16 %v477
      %v554 = vunpack.c.h.b16 %v477
      %v555 = vunpack.c.l.b16 %v478
      %v556 = vunpack.c.h.b16 %v478
      %v557 = vunpack.c.l.b16 %v479
      %v558 = vunpack.c.h.b16 %v479
      %v559 = vunpack.c.l.b16 %v480
      %v560 = vunpack.c.h.b16 %v480
      %v561 = vunpack.c.l.b16 %v481
      %v562 = vunpack.c.h.b16 %v481
      %v563 = vunpack.c.l.b16 %v482
      %v564 = vunpack.c.h.b16 %v482
      %v565 = vunpack.c.l.b16 %v483
      %v566 = vunpack.c.h.b16 %v483
      %v567 = vunpack.c.l.b16 %v484
      %v568 = vunpack.c.h.b16 %v484
      %v569 = vunpack.c.l.b16 %v485
      %v570 = vunpack.c.h.b16 %v485
      %v571 = vunpack.c.l.b16 %v486
      %v572 = vunpack.c.h.b16 %v486
      %v573 = vunpack.c.l.b16 %v487
      %v574 = vunpack.c.h.b16 %v487
      %v575 = vunpack.c.l.b16 %v488
      %v576 = vunpack.c.h.b16 %v488
      %v577 = vunpack.c.l.b16 %v489
      %v578 = vunpack.c.h.b16 %v489
      %v579 = vunpack.c.l.b16 %v490
      %v580 = vunpack.c.h.b16 %v490
      %v581 = vunpack.c.l.b16 %v491
      %v582 = vunpack.c.h.b16 %v491
      %v583 = vunpack.c.l.b16 %v492
      %v584 = vunpack.c.h.b16 %v492
      %v585 = vunpack.c.l.b16 %v493
      %v586 = vunpack.c.h.b16 %v493
      %v587 = vunpack.c.l.b16 %v494
      %v588 = vunpack.c.h.b16 %v494
      %v589 = vunpack.c.l.b16 %v495
      %v590 = vunpack.c.h.b16 %v495
      %v591 = vunpack.c.l.b16 %v496
      %v592 = vunpack.c.h.b16 %v496
      %v593 = vpack.c.b16 %v531, %v529
      %v594 = vpack.c.b16 %v532, %v530
      %v595 = vpack.c.b16 %v535, %v533
      %v596 = vpack.c.b16 %v536, %v534
      %v597 = vpack.c.b16 %v539, %v537
      %v598 = vpack.c.b16 %v540, %v538
      %v599 = vpack.c.b16 %v543, %v541
      %v600 = vpack.c.b16 %v544, %v542
      %v601 = vpack.c.b16 %v547, %v545
      %v602 = vpack.c.b16 %v548, %v546
      %v603 = vpack.c.b16 %v551, %v549
      %v604 = vpack.c.b16 %v552, %v550
      %v605 = vpack.c.b16 %v555, %v553
      %v606 = vpack.c.b16 %v556, %v554
      %v607 = vpack.c.b16 %v559, %v557
      %v608 = vpack.c.b16 %v560, %v558
      %v609 = vpack.c.b16 %v563, %v561
      %v610 = vpack.c.b16 %v564, %v562
      %v611 = vpack.c.b16 %v567, %v565
      %v612 = vpack.c.b16 %v568, %v566
      %v613 = vpack.c.b16 %v571, %v569
      %v614 = vpack.c.b16 %v572, %v570
      %v615 = vpack.c.b16 %v575, %v573
      %v616 = vpack.c.b16 %v576, %v574
      %v617 = vpack.c.b16 %v579, %v577
      %v618 = vpack.c.b16 %v580, %v578
      %v619 = vpack.c.b16 %v583, %v581
      %v620 = vpack.c.b16 %v584, %v582
      %v621 = vpack.c.b16 %v587, %v585
      %v622 = vpack.c.b16 %v588, %v586
      %v623 = vpack.c.b16 %v591, %v589
      %v624 = vpack.c.b16 %v592, %v590
      %v658 = vperm.slane %v162, 0
      %v659 = vperm.slane %v162, 1
      %662 = vmatpush.bf16.msra.mxu0 %v607
      %663 = vmatpush.bf16.msra.mxu0 %v605
      %664 = vmatpush.bf16.msra.mxu0 %v603
      %665 = vmatpush.bf16.msra.mxu0 %v601
      %666 = vmatpush.bf16.msra.mxu0 %v599
      %667 = vmatpush.bf16.msra.mxu0 %v597
      %668 = vmatpush.bf16.msra.mxu0 %v595
      %669 = vmatpush.bf16.msra.mxu0 %v593
      %670 = vmatmul.bf16.gmra.mxu0 %v463
      %v671 = vpop.f32.mrf.mxu0
      %v672 = vadd.f32 %v658, %v671
      %v673 = vpop.f32.mrf.mxu0
      %674 = vdwg.mxu0
      %675 = vmatpush.bf16.msra.mxu0 %v623
      %676 = vmatpush.bf16.msra.mxu0 %v621
      %677 = vmatpush.bf16.msra.mxu0 %v619
      %678 = vmatpush.bf16.msra.mxu0 %v617
      %679 = vmatpush.bf16.msra.mxu0 %v615
      %680 = vmatpush.bf16.msra.mxu0 %v613
      %681 = vmatpush.bf16.msra.mxu0 %v611
      %682 = vmatpush.bf16.msra.mxu0 %v609
      %683 = vmatmul.bf16.gmra.mxu0 %v464
      %v684 = vpop.f32.mrf.mxu0
      %v685 = vadd.f32 %v672, %v684
      %v686 = vpop.f32.mrf.mxu0
      %687 = vdwg.mxu0
      %688 = vmatpush.bf16.msra.mxu0 %v608
      %689 = vmatpush.bf16.msra.mxu0 %v606
      %690 = vmatpush.bf16.msra.mxu0 %v604
      %691 = vmatpush.bf16.msra.mxu0 %v602
      %692 = vmatpush.bf16.msra.mxu0 %v600
      %693 = vmatpush.bf16.msra.mxu0 %v598
      %694 = vmatpush.bf16.msra.mxu0 %v596
      %695 = vmatpush.bf16.msra.mxu0 %v594
      %696 = vmatmul.bf16.gmra.mxu0 %v463
      %v697 = vpop.f32.mrf.mxu0
      %v698 = vadd.f32 %v659, %v697
      %v699 = vpop.f32.mrf.mxu0
      %700 = vdwg.mxu0
      %701 = vmatpush.bf16.msra.mxu0 %v624
      %702 = vmatpush.bf16.msra.mxu0 %v622
      %703 = vmatpush.bf16.msra.mxu0 %v620
      %704 = vmatpush.bf16.msra.mxu0 %v618
      %705 = vmatpush.bf16.msra.mxu0 %v616
      %706 = vmatpush.bf16.msra.mxu0 %v614
      %707 = vmatpush.bf16.msra.mxu0 %v612
      %708 = vmatpush.bf16.msra.mxu0 %v610
      %709 = vmatmul.bf16.gmra.mxu0 %v464
      %v710 = vpop.f32.mrf.mxu0
      %v711 = vadd.f32 %v698, %v710
      %v712 = vpop.f32.mrf.mxu0
      %713 = vdwg.mxu0
      %v714 = vmax.f32 %v685, 0.0
      %v715 = vmax.f32 %v711, 0.0
      %v716 = vperm.slane %v714, 0
      %v717 = vperm.slane %v715, 0
      %719 = vst [vmem:[#allocation1] ss:$4 sm:$0xff] %v163
      %v720 = vld.sshfl [vmem:[#allocation1] sm:$0xff pattern:$0x73625140]
      %v721 = vld.sshfl [vmem:[#allocation1 + $0x8] sm:$0xff pattern:$0x73625140]
      %v724 = vmul.f32 %v716, %v720
      %v725 = vmul.f32 %v717, %v721
      %vm726 = vcmask 1041408
      %v727 = vsel %vm726, %v724, 0.0
      %v728 = vsel %vm726, %v725, 0.0
      %v729 = vadd.f32 %v727, %v728
      %730 = vadd.xlane.f32.xlu0 %v729
      %v731 = vpop.xlane.xlu0 %730
      %v732 = vadd.f32 %v731, %v164
      %v733 = vstv %s174
      %v734 = vmul.f32 %v733, %v732
      %v735 = vmul.f32 %v734, 0.33333334
      %v736 = vadd.f32 %v172, %v735
      %738 = vset.pattern.permute.xlu0 0
      %739 = vperm.xlu0 %738, %v736
      %v740 = vpop.permute.xlu0 %739
      %v742 = vmul.f32 %v740, %v181
      %v743 = vmul.f32 %v740, %v182
      %v744 = vmul.f32 %v740, %v187
      %v745 = vmul.f32 %v740, %v188
      %v748 = vrot.slane %v744, 1
      %v749 = vrot.slane %v745, 1
      %v752 = vadd.f32 %v742, %v748
      %v753 = vadd.f32 %v743, %v749
      %v754 = vadd.f32 %v752, %v202
      %v755 = vadd.f32 %v753, %v203
      %v756 = vmax.f32 %v754, 0.0
      %v757 = vmax.f32 %v755, 0.0
      %v758 = vpack.c.bf16 %v756, %v756
      %v759 = vpack.c.bf16 %v757, %v757
      %760 = vmatpush.bf16.msra.mxu0 %v354
      %761 = vmatpush.bf16.msra.mxu0 %v352
      %762 = vmatpush.bf16.msra.mxu0 %v350
      %763 = vmatpush.bf16.msra.mxu0 %v348
      %764 = vmatpush.bf16.msra.mxu0 %v346
      %765 = vmatpush.bf16.msra.mxu0 %v344
      %766 = vmatpush.bf16.msra.mxu0 %v342
      %767 = vmatpush.bf16.msra.mxu0 %v340
      %768 = vmatmul.bf16.gmra.mxu0 %v758
      %v769 = vpop.f32.mrf.mxu0
      %v770 = vadd.f32 %v405, %v769
      %v771 = vpop.f32.mrf.mxu0
      %772 = vdwg.mxu0
      %773 = vmatpush.bf16.msra.mxu0 %v370
      %774 = vmatpush.bf16.msra.mxu0 %v368
      %775 = vmatpush.bf16.msra.mxu0 %v366
      %776 = vmatpush.bf16.msra.mxu0 %v364
      %777 = vmatpush.bf16.msra.mxu0 %v362
      %778 = vmatpush.bf16.msra.mxu0 %v360
      %779 = vmatpush.bf16.msra.mxu0 %v358
      %780 = vmatpush.bf16.msra.mxu0 %v356
      %781 = vmatmul.bf16.gmra.mxu0 %v759
      %v782 = vpop.f32.mrf.mxu0
      %v783 = vadd.f32 %v770, %v782
      %v784 = vpop.f32.mrf.mxu0
      %785 = vdwg.mxu0
      %786 = vmatpush.bf16.msra.mxu0 %v355
      %787 = vmatpush.bf16.msra.mxu0 %v353
      %788 = vmatpush.bf16.msra.mxu0 %v351
      %789 = vmatpush.bf16.msra.mxu0 %v349
      %790 = vmatpush.bf16.msra.mxu0 %v347
      %791 = vmatpush.bf16.msra.mxu0 %v345
      %792 = vmatpush.bf16.msra.mxu0 %v343
      %793 = vmatpush.bf16.msra.mxu0 %v341
      %794 = vmatmul.bf16.gmra.mxu0 %v758
      %v795 = vpop.f32.mrf.mxu0
      %v796 = vadd.f32 %v406, %v795
      %v797 = vpop.f32.mrf.mxu0
      %798 = vdwg.mxu0
      %799 = vmatpush.bf16.msra.mxu0 %v371
      %800 = vmatpush.bf16.msra.mxu0 %v369
      %801 = vmatpush.bf16.msra.mxu0 %v367
      %802 = vmatpush.bf16.msra.mxu0 %v365
      %803 = vmatpush.bf16.msra.mxu0 %v363
      %804 = vmatpush.bf16.msra.mxu0 %v361
      %805 = vmatpush.bf16.msra.mxu0 %v359
      %806 = vmatpush.bf16.msra.mxu0 %v357
      %807 = vmatmul.bf16.gmra.mxu0 %v759
      %v808 = vpop.f32.mrf.mxu0
      %v809 = vadd.f32 %v796, %v808
      %v810 = vpop.f32.mrf.mxu0
      %811 = vdwg.mxu0
      %v812 = vmax.f32 %v783, 0.0
      %v813 = vmax.f32 %v809, 0.0
      %v814 = vpack.c.bf16 %v812, %v812
      %v815 = vpack.c.bf16 %v813, %v813
      %816 = vmatpush.bf16.msra.mxu0 %v607
      %817 = vmatpush.bf16.msra.mxu0 %v605
      %818 = vmatpush.bf16.msra.mxu0 %v603
      %819 = vmatpush.bf16.msra.mxu0 %v601
      %820 = vmatpush.bf16.msra.mxu0 %v599
      %821 = vmatpush.bf16.msra.mxu0 %v597
      %822 = vmatpush.bf16.msra.mxu0 %v595
      %823 = vmatpush.bf16.msra.mxu0 %v593
      %824 = vmatmul.bf16.gmra.mxu0 %v814
      %v825 = vpop.f32.mrf.mxu0
      %v826 = vadd.f32 %v658, %v825
      %v827 = vpop.f32.mrf.mxu0
      %828 = vdwg.mxu0
      %829 = vmatpush.bf16.msra.mxu0 %v623
      %830 = vmatpush.bf16.msra.mxu0 %v621
      %831 = vmatpush.bf16.msra.mxu0 %v619
      %832 = vmatpush.bf16.msra.mxu0 %v617
      %833 = vmatpush.bf16.msra.mxu0 %v615
      %834 = vmatpush.bf16.msra.mxu0 %v613
      %835 = vmatpush.bf16.msra.mxu0 %v611
      %836 = vmatpush.bf16.msra.mxu0 %v609
      %837 = vmatmul.bf16.gmra.mxu0 %v815
      %v838 = vpop.f32.mrf.mxu0
      %v839 = vadd.f32 %v826, %v838
      %v840 = vpop.f32.mrf.mxu0
      %841 = vdwg.mxu0
      %842 = vmatpush.bf16.msra.mxu0 %v608
      %843 = vmatpush.bf16.msra.mxu0 %v606
      %844 = vmatpush.bf16.msra.mxu0 %v604
      %845 = vmatpush.bf16.msra.mxu0 %v602
      %846 = vmatpush.bf16.msra.mxu0 %v600
      %847 = vmatpush.bf16.msra.mxu0 %v598
      %848 = vmatpush.bf16.msra.mxu0 %v596
      %849 = vmatpush.bf16.msra.mxu0 %v594
      %850 = vmatmul.bf16.gmra.mxu0 %v814
      %v851 = vpop.f32.mrf.mxu0
      %v852 = vadd.f32 %v659, %v851
      %v853 = vpop.f32.mrf.mxu0
      %854 = vdwg.mxu0
      %855 = vmatpush.bf16.msra.mxu0 %v624
      %856 = vmatpush.bf16.msra.mxu0 %v622
      %857 = vmatpush.bf16.msra.mxu0 %v620
      %858 = vmatpush.bf16.msra.mxu0 %v618
      %859 = vmatpush.bf16.msra.mxu0 %v616
      %860 = vmatpush.bf16.msra.mxu0 %v614
      %861 = vmatpush.bf16.msra.mxu0 %v612
      %862 = vmatpush.bf16.msra.mxu0 %v610
      %863 = vmatmul.bf16.gmra.mxu0 %v815
      %v864 = vpop.f32.mrf.mxu0
      %v865 = vadd.f32 %v852, %v864
      %v866 = vpop.f32.mrf.mxu0
      %867 = vdwg.mxu0
      %v868 = vmax.f32 %v839, 0.0
      %v869 = vmax.f32 %v865, 0.0
      %v870 = vperm.slane %v868, 0
      %v871 = vperm.slane %v869, 0
      %872 = vst [vmem:[#allocation1] ss:$4 sm:$0xff] %v163
      %v873 = vld.sshfl [vmem:[#allocation1] sm:$0xff pattern:$0x73625140]
      %v874 = vld.sshfl [vmem:[#allocation1 + $0x8] sm:$0xff pattern:$0x73625140]
      %v877 = vmul.f32 %v870, %v873
      %v878 = vmul.f32 %v871, %v874
      %v879 = vsel %vm726, %v877, 0.0
      %v880 = vsel %vm726, %v878, 0.0
      %v881 = vadd.f32 %v879, %v880
      %882 = vadd.xlane.f32.xlu0 %v881
      %v883 = vpop.xlane.xlu0 %882
      %v884 = vadd.f32 %v883, %v164
      %v885 = vmul.f32 %v732, 0.33333334
      %v886 = vsub.f32 %v884, %v885
      %v887 = vmul.f32 %v733, %v886
      %v888 = vadd.f32 %v172, %v887
      %890 = vset.pattern.permute.xlu0 0
      %891 = vperm.xlu0 %890, %v888
      %v892 = vpop.permute.xlu0 %891
      %v894 = vmul.f32 %v892, %v181
      %v895 = vmul.f32 %v892, %v182
      %v896 = vmul.f32 %v892, %v187
      %v897 = vmul.f32 %v892, %v188
      %v900 = vrot.slane %v896, 1
      %v901 = vrot.slane %v897, 1
      %v904 = vadd.f32 %v894, %v900
      %v905 = vadd.f32 %v895, %v901
      %v906 = vadd.f32 %v904, %v202
      %v907 = vadd.f32 %v905, %v203
      %v908 = vmax.f32 %v906, 0.0
      %v909 = vmax.f32 %v907, 0.0
      %v910 = vpack.c.bf16 %v908, %v908
      %v911 = vpack.c.bf16 %v909, %v909
      %912 = vmatpush.bf16.msra.mxu0 %v354
      %913 = vmatpush.bf16.msra.mxu0 %v352
      %914 = vmatpush.bf16.msra.mxu0 %v350
      %915 = vmatpush.bf16.msra.mxu0 %v348
      %916 = vmatpush.bf16.msra.mxu0 %v346
      %917 = vmatpush.bf16.msra.mxu0 %v344
      %918 = vmatpush.bf16.msra.mxu0 %v342
      %919 = vmatpush.bf16.msra.mxu0 %v340
      %920 = vmatmul.bf16.gmra.mxu0 %v910
      %v921 = vpop.f32.mrf.mxu0
      %v922 = vadd.f32 %v405, %v921
      %v923 = vpop.f32.mrf.mxu0
      %924 = vdwg.mxu0
      %925 = vmatpush.bf16.msra.mxu0 %v370
      %926 = vmatpush.bf16.msra.mxu0 %v368
      %927 = vmatpush.bf16.msra.mxu0 %v366
      %928 = vmatpush.bf16.msra.mxu0 %v364
      %929 = vmatpush.bf16.msra.mxu0 %v362
      %930 = vmatpush.bf16.msra.mxu0 %v360
      %931 = vmatpush.bf16.msra.mxu0 %v358
      %932 = vmatpush.bf16.msra.mxu0 %v356
      %933 = vmatmul.bf16.gmra.mxu0 %v911
      %v934 = vpop.f32.mrf.mxu0
      %v935 = vadd.f32 %v922, %v934
      %v936 = vpop.f32.mrf.mxu0
      %937 = vdwg.mxu0
      %938 = vmatpush.bf16.msra.mxu0 %v355
      %939 = vmatpush.bf16.msra.mxu0 %v353
      %940 = vmatpush.bf16.msra.mxu0 %v351
      %941 = vmatpush.bf16.msra.mxu0 %v349
      %942 = vmatpush.bf16.msra.mxu0 %v347
      %943 = vmatpush.bf16.msra.mxu0 %v345
      %944 = vmatpush.bf16.msra.mxu0 %v343
      %945 = vmatpush.bf16.msra.mxu0 %v341
      %946 = vmatmul.bf16.gmra.mxu0 %v910
      %v947 = vpop.f32.mrf.mxu0
      %v948 = vadd.f32 %v406, %v947
      %v949 = vpop.f32.mrf.mxu0
      %950 = vdwg.mxu0
      %951 = vmatpush.bf16.msra.mxu0 %v371
      %952 = vmatpush.bf16.msra.mxu0 %v369
      %953 = vmatpush.bf16.msra.mxu0 %v367
      %954 = vmatpush.bf16.msra.mxu0 %v365
      %955 = vmatpush.bf16.msra.mxu0 %v363
      %956 = vmatpush.bf16.msra.mxu0 %v361
      %957 = vmatpush.bf16.msra.mxu0 %v359
      %958 = vmatpush.bf16.msra.mxu0 %v357
      %959 = vmatmul.bf16.gmra.mxu0 %v911
      %v960 = vpop.f32.mrf.mxu0
      %v961 = vadd.f32 %v948, %v960
      %v962 = vpop.f32.mrf.mxu0
      %963 = vdwg.mxu0
      %v964 = vmax.f32 %v935, 0.0
      %v965 = vmax.f32 %v961, 0.0
      %v966 = vpack.c.bf16 %v964, %v964
      %v967 = vpack.c.bf16 %v965, %v965
      %968 = vmatpush.bf16.msra.mxu0 %v607
      %969 = vmatpush.bf16.msra.mxu0 %v605
      %970 = vmatpush.bf16.msra.mxu0 %v603
      %971 = vmatpush.bf16.msra.mxu0 %v601
      %972 = vmatpush.bf16.msra.mxu0 %v599
      %973 = vmatpush.bf16.msra.mxu0 %v597
      %974 = vmatpush.bf16.msra.mxu0 %v595
      %975 = vmatpush.bf16.msra.mxu0 %v593
      %976 = vmatmul.bf16.gmra.mxu0 %v966
      %v977 = vpop.f32.mrf.mxu0
      %v978 = vadd.f32 %v658, %v977
      %v979 = vpop.f32.mrf.mxu0
      %980 = vdwg.mxu0
      %981 = vmatpush.bf16.msra.mxu0 %v623
      %982 = vmatpush.bf16.msra.mxu0 %v621
      %983 = vmatpush.bf16.msra.mxu0 %v619
      %984 = vmatpush.bf16.msra.mxu0 %v617
      %985 = vmatpush.bf16.msra.mxu0 %v615
      %986 = vmatpush.bf16.msra.mxu0 %v613
      %987 = vmatpush.bf16.msra.mxu0 %v611
      %988 = vmatpush.bf16.msra.mxu0 %v609
      %989 = vmatmul.bf16.gmra.mxu0 %v967
      %v990 = vpop.f32.mrf.mxu0
      %v991 = vadd.f32 %v978, %v990
      %v992 = vpop.f32.mrf.mxu0
      %993 = vdwg.mxu0
      %994 = vmatpush.bf16.msra.mxu0 %v608
      %995 = vmatpush.bf16.msra.mxu0 %v606
      %996 = vmatpush.bf16.msra.mxu0 %v604
      %997 = vmatpush.bf16.msra.mxu0 %v602
      %998 = vmatpush.bf16.msra.mxu0 %v600
      %999 = vmatpush.bf16.msra.mxu0 %v598
      %1000 = vmatpush.bf16.msra.mxu0 %v596
      %1001 = vmatpush.bf16.msra.mxu0 %v594
      %1002 = vmatmul.bf16.gmra.mxu0 %v966
      %v1003 = vpop.f32.mrf.mxu0
      %v1004 = vadd.f32 %v659, %v1003
      %v1005 = vpop.f32.mrf.mxu0
      %1006 = vdwg.mxu0
      %1007 = vmatpush.bf16.msra.mxu0 %v624
      %1008 = vmatpush.bf16.msra.mxu0 %v622
      %1009 = vmatpush.bf16.msra.mxu0 %v620
      %1010 = vmatpush.bf16.msra.mxu0 %v618
      %1011 = vmatpush.bf16.msra.mxu0 %v616
      %1012 = vmatpush.bf16.msra.mxu0 %v614
      %1013 = vmatpush.bf16.msra.mxu0 %v612
      %1014 = vmatpush.bf16.msra.mxu0 %v610
      %1015 = vmatmul.bf16.gmra.mxu0 %v967
      %v1016 = vpop.f32.mrf.mxu0
      %v1017 = vadd.f32 %v1004, %v1016
      %v1018 = vpop.f32.mrf.mxu0
      %1019 = vdwg.mxu0
      %v1020 = vmax.f32 %v991, 0.0
      %v1021 = vmax.f32 %v1017, 0.0
      %v1022 = vperm.slane %v1020, 0
      %v1023 = vperm.slane %v1021, 0
      %1024 = vst [vmem:[#allocation1] ss:$4 sm:$0xff] %v163
      %v1025 = vld.sshfl [vmem:[#allocation1] sm:$0xff pattern:$0x73625140]
      %v1026 = vld.sshfl [vmem:[#allocation1 + $0x8] sm:$0xff pattern:$0x73625140]
      %v1029 = vmul.f32 %v1022, %v1025
      %v1030 = vmul.f32 %v1023, %v1026
      %v1031 = vsel %vm726, %v1029, 0.0
      %v1032 = vsel %vm726, %v1030, 0.0
      %v1033 = vadd.f32 %v1031, %v1032
      %1034 = vadd.xlane.f32.xlu0 %v1033
      %v1035 = vpop.xlane.xlu0 %1034
      %v1036 = vadd.f32 %v1035, %v164
      %v1037 = vsub.f32 %v732, %v884
      %v1038 = vadd.f32 %v1037, %v1036
      %v1039 = vmul.f32 %v733, %v1038
      %v1040 = vadd.f32 %v172, %v1039
      %1042 = vset.pattern.permute.xlu0 0
      %1043 = vperm.xlu0 %1042, %v1040
      %v1044 = vpop.permute.xlu0 %1043
      %v1046 = vmul.f32 %v1044, %v181
      %v1047 = vmul.f32 %v1044, %v182
      %v1048 = vmul.f32 %v1044, %v187
      %v1049 = vmul.f32 %v1044, %v188
      %v1052 = vrot.slane %v1048, 1
      %v1053 = vrot.slane %v1049, 1
      %v1056 = vadd.f32 %v1046, %v1052
      %v1057 = vadd.f32 %v1047, %v1053
      %v1058 = vadd.f32 %v1056, %v202
      %v1059 = vadd.f32 %v1057, %v203
      %v1060 = vmax.f32 %v1058, 0.0
      %v1061 = vmax.f32 %v1059, 0.0
      %v1062 = vpack.c.bf16 %v1060, %v1060
      %v1063 = vpack.c.bf16 %v1061, %v1061
      %1064 = vmatpush.bf16.msra.mxu0 %v354
      %1065 = vmatpush.bf16.msra.mxu0 %v352
      %1066 = vmatpush.bf16.msra.mxu0 %v350
      %1067 = vmatpush.bf16.msra.mxu0 %v348
      %1068 = vmatpush.bf16.msra.mxu0 %v346
      %1069 = vmatpush.bf16.msra.mxu0 %v344
      %1070 = vmatpush.bf16.msra.mxu0 %v342
      %1071 = vmatpush.bf16.msra.mxu0 %v340
      %1072 = vmatmul.bf16.gmra.mxu0 %v1062
      %v1073 = vpop.f32.mrf.mxu0
      %v1074 = vadd.f32 %v405, %v1073
      %v1075 = vpop.f32.mrf.mxu0
      %1076 = vdwg.mxu0
      %1077 = vmatpush.bf16.msra.mxu0 %v370
      %1078 = vmatpush.bf16.msra.mxu0 %v368
      %1079 = vmatpush.bf16.msra.mxu0 %v366
      %1080 = vmatpush.bf16.msra.mxu0 %v364
      %1081 = vmatpush.bf16.msra.mxu0 %v362
      %1082 = vmatpush.bf16.msra.mxu0 %v360
      %1083 = vmatpush.bf16.msra.mxu0 %v358
      %1084 = vmatpush.bf16.msra.mxu0 %v356
      %1085 = vmatmul.bf16.gmra.mxu0 %v1063
      %v1086 = vpop.f32.mrf.mxu0
      %v1087 = vadd.f32 %v1074, %v1086
      %v1088 = vpop.f32.mrf.mxu0
      %1089 = vdwg.mxu0
      %1090 = vmatpush.bf16.msra.mxu0 %v355
      %1091 = vmatpush.bf16.msra.mxu0 %v353
      %1092 = vmatpush.bf16.msra.mxu0 %v351
      %1093 = vmatpush.bf16.msra.mxu0 %v349
      %1094 = vmatpush.bf16.msra.mxu0 %v347
      %1095 = vmatpush.bf16.msra.mxu0 %v345
      %1096 = vmatpush.bf16.msra.mxu0 %v343
      %1097 = vmatpush.bf16.msra.mxu0 %v341
      %1098 = vmatmul.bf16.gmra.mxu0 %v1062
      %v1099 = vpop.f32.mrf.mxu0
      %v1100 = vadd.f32 %v406, %v1099
      %v1101 = vpop.f32.mrf.mxu0
      %1102 = vdwg.mxu0
      %1103 = vmatpush.bf16.msra.mxu0 %v371
      %1104 = vmatpush.bf16.msra.mxu0 %v369
      %1105 = vmatpush.bf16.msra.mxu0 %v367
      %1106 = vmatpush.bf16.msra.mxu0 %v365
      %1107 = vmatpush.bf16.msra.mxu0 %v363
      %1108 = vmatpush.bf16.msra.mxu0 %v361
      %1109 = vmatpush.bf16.msra.mxu0 %v359
      %1110 = vmatpush.bf16.msra.mxu0 %v357
      %1111 = vmatmul.bf16.gmra.mxu0 %v1063
      %v1112 = vpop.f32.mrf.mxu0
      %v1113 = vadd.f32 %v1100, %v1112
      %v1114 = vpop.f32.mrf.mxu0
      %1115 = vdwg.mxu0
      %v1116 = vmax.f32 %v1087, 0.0
      %v1117 = vmax.f32 %v1113, 0.0
      %v1118 = vpack.c.bf16 %v1116, %v1116
      %v1119 = vpack.c.bf16 %v1117, %v1117
      %1120 = vmatpush.bf16.msra.mxu0 %v607
      %1121 = vmatpush.bf16.msra.mxu0 %v605
      %1122 = vmatpush.bf16.msra.mxu0 %v603
      %1123 = vmatpush.bf16.msra.mxu0 %v601
      %1124 = vmatpush.bf16.msra.mxu0 %v599
      %1125 = vmatpush.bf16.msra.mxu0 %v597
      %1126 = vmatpush.bf16.msra.mxu0 %v595
      %1127 = vmatpush.bf16.msra.mxu0 %v593
      %1128 = vmatmul.bf16.gmra.mxu0 %v1118
      %v1129 = vpop.f32.mrf.mxu0
      %v1130 = vadd.f32 %v658, %v1129
      %v1131 = vpop.f32.mrf.mxu0
      %1132 = vdwg.mxu0
      %1133 = vmatpush.bf16.msra.mxu0 %v623
      %1134 = vmatpush.bf16.msra.mxu0 %v621
      %1135 = vmatpush.bf16.msra.mxu0 %v619
      %1136 = vmatpush.bf16.msra.mxu0 %v617
      %1137 = vmatpush.bf16.msra.mxu0 %v615
      %1138 = vmatpush.bf16.msra.mxu0 %v613
      %1139 = vmatpush.bf16.msra.mxu0 %v611
      %1140 = vmatpush.bf16.msra.mxu0 %v609
      %1141 = vmatmul.bf16.gmra.mxu0 %v1119
      %v1142 = vpop.f32.mrf.mxu0
      %v1143 = vadd.f32 %v1130, %v1142
      %v1144 = vpop.f32.mrf.mxu0
      %1145 = vdwg.mxu0
      %1146 = vmatpush.bf16.msra.mxu0 %v608
      %1147 = vmatpush.bf16.msra.mxu0 %v606
      %1148 = vmatpush.bf16.msra.mxu0 %v604
      %1149 = vmatpush.bf16.msra.mxu0 %v602
      %1150 = vmatpush.bf16.msra.mxu0 %v600
      %1151 = vmatpush.bf16.msra.mxu0 %v598
      %1152 = vmatpush.bf16.msra.mxu0 %v596
      %1153 = vmatpush.bf16.msra.mxu0 %v594
      %1154 = vmatmul.bf16.gmra.mxu0 %v1118
      %v1155 = vpop.f32.mrf.mxu0
      %v1156 = vadd.f32 %v659, %v1155
      %v1157 = vpop.f32.mrf.mxu0
      %1158 = vdwg.mxu0
      %1159 = vmatpush.bf16.msra.mxu0 %v624
      %1160 = vmatpush.bf16.msra.mxu0 %v622
      %1161 = vmatpush.bf16.msra.mxu0 %v620
      %1162 = vmatpush.bf16.msra.mxu0 %v618
      %1163 = vmatpush.bf16.msra.mxu0 %v616
      %1164 = vmatpush.bf16.msra.mxu0 %v614
      %1165 = vmatpush.bf16.msra.mxu0 %v612
      %1166 = vmatpush.bf16.msra.mxu0 %v610
      %1167 = vmatmul.bf16.gmra.mxu0 %v1119
      %v1168 = vpop.f32.mrf.mxu0
      %v1169 = vadd.f32 %v1156, %v1168
      %v1170 = vpop.f32.mrf.mxu0
      %1171 = vdwg.mxu0
      %v1172 = vmax.f32 %v1143, 0.0
      %v1173 = vmax.f32 %v1169, 0.0
      %v1174 = vperm.slane %v1172, 0
      %v1175 = vperm.slane %v1173, 0
      %1176 = vst [vmem:[#allocation1] ss:$4 sm:$0xff] %v163
      %v1177 = vld.sshfl [vmem:[#allocation1] sm:$0xff pattern:$0x73625140]
      %v1178 = vld.sshfl [vmem:[#allocation1 + $0x8] sm:$0xff pattern:$0x73625140]
      %v1181 = vmul.f32 %v1174, %v1177
      %v1182 = vmul.f32 %v1175, %v1178
      %v1183 = vsel %vm726, %v1181, 0.0
      %v1184 = vsel %vm726, %v1182, 0.0
      %v1185 = vadd.f32 %v1183, %v1184
      %1186 = vadd.xlane.f32.xlu0 %v1185
      %v1187 = vpop.xlane.xlu0 %1186
      %v1188 = vadd.f32 %v1187, %v164
      %s1189 = smul.f32 %s174, 0.125
      %v1190 = vadd.f32 %v884, %v1036
      %v1191 = vmul.f32 %v1190, 3.0
      %v1192 = vadd.f32 %v732, %v1191
      %v1193 = vadd.f32 %v1192, %v1188
      %v1194 = vstv %s1189
      %v1195 = vmul.f32 %v1194, %v1193
      %v1196 = vadd.f32 %v172, %v1195
      %s1197 = sld [smem:[#allocation6 + %s173]]
      %p1198 = scmp.ge.s32.totalorder %s1197, 0
      // Predicated region
      $region89: #{tpu_custom_call.1} parent=85 // pred_check
        %p1199 = pneg %p1198
      $region90: #{tpu_custom_call.1} parent=85 // pred_check_branch
        %1201 = sbr.rel (%p1199) target = $region92
      $region91: #{tpu_custom_call.1} parent=85 // pred_region
        %s1202 = sld [smem:[#allocation7 + %s173]]
        %v1203 = vsub.f32 %v1196, %v172
        %v1204 = vstv %s1202
        %v1205 = vmul.f32 %v1204, %v1203
        %v1206 = vadd.f32 %v172, %v1205
        %s1207 = scalar_lea.vmem %s12, %s1197
        %vm1208 = vcmask 0
        %1209 = vst.msk [vmem:[%s1207] sm:$0x1] %vm1208, %v1206
        %1211 = vrot.lane.b32.xlu0 %v1206, 1
        %v1212 = vpop.permute.xlu0 %1211
        %vm1214 = vcmask 9225
        %1215 = vst.msk [vmem:[%s1207 - $0x1] sm:$0x2] %vm1214, %v1212
      $region92: #{tpu_custom_call.1} parent=85 // pred_fallthru
        _
      %s1216 = sadd.s32 %s173, 1
      %s1217 = sld [smem:[#allocation2 + %s1216]]
      %1219 = vset.pattern.permute.xlu0 0
      %1220 = vperm.xlu0 %1219, %v1196
      %v1221 = vpop.permute.xlu0 %1220
      %v1223 = vmul.f32 %v1221, %v181
      %v1224 = vmul.f32 %v1221, %v182
      %v1225 = vmul.f32 %v1221, %v187
      %v1226 = vmul.f32 %v1221, %v188
      %v1229 = vrot.slane %v1225, 1
      %v1230 = vrot.slane %v1226, 1
      %v1233 = vadd.f32 %v1223, %v1229
      %v1234 = vadd.f32 %v1224, %v1230
      %v1235 = vadd.f32 %v1233, %v202
      %v1236 = vadd.f32 %v1234, %v203
      %v1237 = vmax.f32 %v1235, 0.0
      %v1238 = vmax.f32 %v1236, 0.0
      %v1239 = vpack.c.bf16 %v1237, %v1237
      %v1240 = vpack.c.bf16 %v1238, %v1238
      %v1241 = vld [vmem:[#allocation12] sm:$0xff]
      %v1242 = vld [vmem:[#allocation12 + $0x8] sm:$0xff]
      %v1243 = vld [vmem:[#allocation12 + $0x10] sm:$0xff]
      %v1244 = vld [vmem:[#allocation12 + $0x18] sm:$0xff]
      %v1245 = vld [vmem:[#allocation12 + $0x20] sm:$0xff]
      %v1246 = vld [vmem:[#allocation12 + $0x28] sm:$0xff]
      %v1247 = vld [vmem:[#allocation12 + $0x30] sm:$0xff]
      %v1248 = vld [vmem:[#allocation12 + $0x38] sm:$0xff]
      %v1249 = vld [vmem:[#allocation12 + $0x40] sm:$0xff]
      %v1250 = vld [vmem:[#allocation12 + $0x48] sm:$0xff]
      %v1251 = vld [vmem:[#allocation12 + $0x50] sm:$0xff]
      %v1252 = vld [vmem:[#allocation12 + $0x58] sm:$0xff]
      %v1253 = vld [vmem:[#allocation12 + $0x60] sm:$0xff]
      %v1254 = vld [vmem:[#allocation12 + $0x68] sm:$0xff]
      %v1255 = vld [vmem:[#allocation12 + $0x70] sm:$0xff]
      %v1256 = vld [vmem:[#allocation12 + $0x78] sm:$0xff]
      %v1257 = vld [vmem:[#allocation12 + $0x80] sm:$0xff]
      %v1258 = vld [vmem:[#allocation12 + $0x88] sm:$0xff]
      %v1259 = vld [vmem:[#allocation12 + $0x90] sm:$0xff]
      %v1260 = vld [vmem:[#allocation12 + $0x98] sm:$0xff]
      %v1261 = vld [vmem:[#allocation12 + $0xa0] sm:$0xff]
      %v1262 = vld [vmem:[#allocation12 + $0xa8] sm:$0xff]
      %v1263 = vld [vmem:[#allocation12 + $0xb0] sm:$0xff]
      %v1264 = vld [vmem:[#allocation12 + $0xb8] sm:$0xff]
      %v1265 = vld [vmem:[#allocation12 + $0xc0] sm:$0xff]
      %v1266 = vld [vmem:[#allocation12 + $0xc8] sm:$0xff]
      %v1267 = vld [vmem:[#allocation12 + $0xd0] sm:$0xff]
      %v1268 = vld [vmem:[#allocation12 + $0xd8] sm:$0xff]
      %v1269 = vld [vmem:[#allocation12 + $0xe0] sm:$0xff]
      %v1270 = vld [vmem:[#allocation12 + $0xe8] sm:$0xff]
      %v1271 = vld [vmem:[#allocation12 + $0xf0] sm:$0xff]
      %v1272 = vld [vmem:[#allocation12 + $0xf8] sm:$0xff]
      %v1305 = vunpack.c.l.b16 %v1241
      %v1306 = vunpack.c.h.b16 %v1241
      %v1307 = vunpack.c.l.b16 %v1242
      %v1308 = vunpack.c.h.b16 %v1242
      %v1309 = vunpack.c.l.b16 %v1243
      %v1310 = vunpack.c.h.b16 %v1243
      %v1311 = vunpack.c.l.b16 %v1244
      %v1312 = vunpack.c.h.b16 %v1244
      %v1313 = vunpack.c.l.b16 %v1245
      %v1314 = vunpack.c.h.b16 %v1245
      %v1315 = vunpack.c.l.b16 %v1246
      %v1316 = vunpack.c.h.b16 %v1246
      %v1317 = vunpack.c.l.b16 %v1247
      %v1318 = vunpack.c.h.b16 %v1247
      %v1319 = vunpack.c.l.b16 %v1248
      %v1320 = vunpack.c.h.b16 %v1248
      %v1321 = vunpack.c.l.b16 %v1249
      %v1322 = vunpack.c.h.b16 %v1249
      %v1323 = vunpack.c.l.b16 %v1250
      %v1324 = vunpack.c.h.b16 %v1250
      %v1325 = vunpack.c.l.b16 %v1251
      %v1326 = vunpack.c.h.b16 %v1251
      %v1327 = vunpack.c.l.b16 %v1252
      %v1328 = vunpack.c.h.b16 %v1252
      %v1329 = vunpack.c.l.b16 %v1253
      %v1330 = vunpack.c.h.b16 %v1253
      %v1331 = vunpack.c.l.b16 %v1254
      %v1332 = vunpack.c.h.b16 %v1254
      %v1333 = vunpack.c.l.b16 %v1255
      %v1334 = vunpack.c.h.b16 %v1255
      %v1335 = vunpack.c.l.b16 %v1256
      %v1336 = vunpack.c.h.b16 %v1256
      %v1337 = vunpack.c.l.b16 %v1257
      %v1338 = vunpack.c.h.b16 %v1257
      %v1339 = vunpack.c.l.b16 %v1258
      %v1340 = vunpack.c.h.b16 %v1258
      %v1341 = vunpack.c.l.b16 %v1259
      %v1342 = vunpack.c.h.b16 %v1259
      %v1343 = vunpack.c.l.b16 %v1260
      %v1344 = vunpack.c.h.b16 %v1260
      %v1345 = vunpack.c.l.b16 %v1261
      %v1346 = vunpack.c.h.b16 %v1261
      %v1347 = vunpack.c.l.b16 %v1262
      %v1348 = vunpack.c.h.b16 %v1262
      %v1349 = vunpack.c.l.b16 %v1263
      %v1350 = vunpack.c.h.b16 %v1263
      %v1351 = vunpack.c.l.b16 %v1264
      %v1352 = vunpack.c.h.b16 %v1264
      %v1353 = vunpack.c.l.b16 %v1265
      %v1354 = vunpack.c.h.b16 %v1265
      %v1355 = vunpack.c.l.b16 %v1266
      %v1356 = vunpack.c.h.b16 %v1266
      %v1357 = vunpack.c.l.b16 %v1267
      %v1358 = vunpack.c.h.b16 %v1267
      %v1359 = vunpack.c.l.b16 %v1268
      %v1360 = vunpack.c.h.b16 %v1268
      %v1361 = vunpack.c.l.b16 %v1269
      %v1362 = vunpack.c.h.b16 %v1269
      %v1363 = vunpack.c.l.b16 %v1270
      %v1364 = vunpack.c.h.b16 %v1270
      %v1365 = vunpack.c.l.b16 %v1271
      %v1366 = vunpack.c.h.b16 %v1271
      %v1367 = vunpack.c.l.b16 %v1272
      %v1368 = vunpack.c.h.b16 %v1272
      %v1369 = vpack.c.b16 %v1307, %v1305
      %v1370 = vpack.c.b16 %v1308, %v1306
      %v1371 = vpack.c.b16 %v1311, %v1309
      %v1372 = vpack.c.b16 %v1312, %v1310
      %v1373 = vpack.c.b16 %v1315, %v1313
      %v1374 = vpack.c.b16 %v1316, %v1314
      %v1375 = vpack.c.b16 %v1319, %v1317
      %v1376 = vpack.c.b16 %v1320, %v1318
      %v1377 = vpack.c.b16 %v1323, %v1321
      %v1378 = vpack.c.b16 %v1324, %v1322
      %v1379 = vpack.c.b16 %v1327, %v1325
      %v1380 = vpack.c.b16 %v1328, %v1326
      %v1381 = vpack.c.b16 %v1331, %v1329
      %v1382 = vpack.c.b16 %v1332, %v1330
      %v1383 = vpack.c.b16 %v1335, %v1333
      %v1384 = vpack.c.b16 %v1336, %v1334
      %v1385 = vpack.c.b16 %v1339, %v1337
      %v1386 = vpack.c.b16 %v1340, %v1338
      %v1387 = vpack.c.b16 %v1343, %v1341
      %v1388 = vpack.c.b16 %v1344, %v1342
      %v1389 = vpack.c.b16 %v1347, %v1345
      %v1390 = vpack.c.b16 %v1348, %v1346
      %v1391 = vpack.c.b16 %v1351, %v1349
      %v1392 = vpack.c.b16 %v1352, %v1350
      %v1393 = vpack.c.b16 %v1355, %v1353
      %v1394 = vpack.c.b16 %v1356, %v1354
      %v1395 = vpack.c.b16 %v1359, %v1357
      %v1396 = vpack.c.b16 %v1360, %v1358
      %v1397 = vpack.c.b16 %v1363, %v1361
      %v1398 = vpack.c.b16 %v1364, %v1362
      %v1399 = vpack.c.b16 %v1367, %v1365
      %v1400 = vpack.c.b16 %v1368, %v1366
      %1433 = vmatpush.bf16.msra.mxu0 %v1383
      %1434 = vmatpush.bf16.msra.mxu0 %v1381
      %1435 = vmatpush.bf16.msra.mxu0 %v1379
      %1436 = vmatpush.bf16.msra.mxu0 %v1377
      %1437 = vmatpush.bf16.msra.mxu0 %v1375
      %1438 = vmatpush.bf16.msra.mxu0 %v1373
      %1439 = vmatpush.bf16.msra.mxu0 %v1371
      %1440 = vmatpush.bf16.msra.mxu0 %v1369
      %1441 = vmatmul.bf16.gmra.mxu0 %v1239
      %v1442 = vpop.f32.mrf.mxu0
      %v1443 = vadd.f32 %v405, %v1442
      %v1444 = vpop.f32.mrf.mxu0
      %1445 = vdwg.mxu0
      %1446 = vmatpush.bf16.msra.mxu0 %v1399
      %1447 = vmatpush.bf16.msra.mxu0 %v1397
      %1448 = vmatpush.bf16.msra.mxu0 %v1395
      %1449 = vmatpush.bf16.msra.mxu0 %v1393
      %1450 = vmatpush.bf16.msra.mxu0 %v1391
      %1451 = vmatpush.bf16.msra.mxu0 %v1389
      %1452 = vmatpush.bf16.msra.mxu0 %v1387
      %1453 = vmatpush.bf16.msra.mxu0 %v1385
      %1454 = vmatmul.bf16.gmra.mxu0 %v1240
      %v1455 = vpop.f32.mrf.mxu0
      %v1456 = vadd.f32 %v1443, %v1455
      %v1457 = vpop.f32.mrf.mxu0
      %1458 = vdwg.mxu0
      %1459 = vmatpush.bf16.msra.mxu0 %v1384
      %1460 = vmatpush.bf16.msra.mxu0 %v1382
      %1461 = vmatpush.bf16.msra.mxu0 %v1380
      %1462 = vmatpush.bf16.msra.mxu0 %v1378
      %1463 = vmatpush.bf16.msra.mxu0 %v1376
      %1464 = vmatpush.bf16.msra.mxu0 %v1374
      %1465 = vmatpush.bf16.msra.mxu0 %v1372
      %1466 = vmatpush.bf16.msra.mxu0 %v1370
      %1467 = vmatmul.bf16.gmra.mxu0 %v1239
      %v1468 = vpop.f32.mrf.mxu0
      %v1469 = vadd.f32 %v406, %v1468
      %v1470 = vpop.f32.mrf.mxu0
      %1471 = vdwg.mxu0
      %1472 = vmatpush.bf16.msra.mxu0 %v1400
      %1473 = vmatpush.bf16.msra.mxu0 %v1398
      %1474 = vmatpush.bf16.msra.mxu0 %v1396
      %1475 = vmatpush.bf16.msra.mxu0 %v1394
      %1476 = vmatpush.bf16.msra.mxu0 %v1392
      %1477 = vmatpush.bf16.msra.mxu0 %v1390
      %1478 = vmatpush.bf16.msra.mxu0 %v1388
      %1479 = vmatpush.bf16.msra.mxu0 %v1386
      %1480 = vmatmul.bf16.gmra.mxu0 %v1240
      %v1481 = vpop.f32.mrf.mxu0
      %v1482 = vadd.f32 %v1469, %v1481
      %v1483 = vpop.f32.mrf.mxu0
      %1484 = vdwg.mxu0
      %v1485 = vmax.f32 %v1456, 0.0
      %v1486 = vmax.f32 %v1482, 0.0
      %v1487 = vpack.c.bf16 %v1485, %v1485
      %v1488 = vpack.c.bf16 %v1486, %v1486
      %v1489 = vld [vmem:[#allocation15] sm:$0xff]
      %v1490 = vld [vmem:[#allocation15 + $0x8] sm:$0xff]
      %v1491 = vld [vmem:[#allocation15 + $0x10] sm:$0xff]
      %v1492 = vld [vmem:[#allocation15 + $0x18] sm:$0xff]
      %v1493 = vld [vmem:[#allocation15 + $0x20] sm:$0xff]
      %v1494 = vld [vmem:[#allocation15 + $0x28] sm:$0xff]
      %v1495 = vld [vmem:[#allocation15 + $0x30] sm:$0xff]
      %v1496 = vld [vmem:[#allocation15 + $0x38] sm:$0xff]
      %v1497 = vld [vmem:[#allocation15 + $0x40] sm:$0xff]
      %v1498 = vld [vmem:[#allocation15 + $0x48] sm:$0xff]
      %v1499 = vld [vmem:[#allocation15 + $0x50] sm:$0xff]
      %v1500 = vld [vmem:[#allocation15 + $0x58] sm:$0xff]
      %v1501 = vld [vmem:[#allocation15 + $0x60] sm:$0xff]
      %v1502 = vld [vmem:[#allocation15 + $0x68] sm:$0xff]
      %v1503 = vld [vmem:[#allocation15 + $0x70] sm:$0xff]
      %v1504 = vld [vmem:[#allocation15 + $0x78] sm:$0xff]
      %v1505 = vld [vmem:[#allocation15 + $0x80] sm:$0xff]
      %v1506 = vld [vmem:[#allocation15 + $0x88] sm:$0xff]
      %v1507 = vld [vmem:[#allocation15 + $0x90] sm:$0xff]
      %v1508 = vld [vmem:[#allocation15 + $0x98] sm:$0xff]
      %v1509 = vld [vmem:[#allocation15 + $0xa0] sm:$0xff]
      %v1510 = vld [vmem:[#allocation15 + $0xa8] sm:$0xff]
      %v1511 = vld [vmem:[#allocation15 + $0xb0] sm:$0xff]
      %v1512 = vld [vmem:[#allocation15 + $0xb8] sm:$0xff]
      %v1513 = vld [vmem:[#allocation15 + $0xc0] sm:$0xff]
      %v1514 = vld [vmem:[#allocation15 + $0xc8] sm:$0xff]
      %v1515 = vld [vmem:[#allocation15 + $0xd0] sm:$0xff]
      %v1516 = vld [vmem:[#allocation15 + $0xd8] sm:$0xff]
      %v1517 = vld [vmem:[#allocation15 + $0xe0] sm:$0xff]
      %v1518 = vld [vmem:[#allocation15 + $0xe8] sm:$0xff]
      %v1519 = vld [vmem:[#allocation15 + $0xf0] sm:$0xff]
      %v1520 = vld [vmem:[#allocation15 + $0xf8] sm:$0xff]
      %v1553 = vunpack.c.l.b16 %v1489
      %v1554 = vunpack.c.h.b16 %v1489
      %v1555 = vunpack.c.l.b16 %v1490
      %v1556 = vunpack.c.h.b16 %v1490
      %v1557 = vunpack.c.l.b16 %v1491
      %v1558 = vunpack.c.h.b16 %v1491
      %v1559 = vunpack.c.l.b16 %v1492
      %v1560 = vunpack.c.h.b16 %v1492
      %v1561 = vunpack.c.l.b16 %v1493
      %v1562 = vunpack.c.h.b16 %v1493
      %v1563 = vunpack.c.l.b16 %v1494
      %v1564 = vunpack.c.h.b16 %v1494
      %v1565 = vunpack.c.l.b16 %v1495
      %v1566 = vunpack.c.h.b16 %v1495
      %v1567 = vunpack.c.l.b16 %v1496
      %v1568 = vunpack.c.h.b16 %v1496
      %v1569 = vunpack.c.l.b16 %v1497
      %v1570 = vunpack.c.h.b16 %v1497
      %v1571 = vunpack.c.l.b16 %v1498
      %v1572 = vunpack.c.h.b16 %v1498
      %v1573 = vunpack.c.l.b16 %v1499
      %v1574 = vunpack.c.h.b16 %v1499
      %v1575 = vunpack.c.l.b16 %v1500
      %v1576 = vunpack.c.h.b16 %v1500
      %v1577 = vunpack.c.l.b16 %v1501
      %v1578 = vunpack.c.h.b16 %v1501
      %v1579 = vunpack.c.l.b16 %v1502
      %v1580 = vunpack.c.h.b16 %v1502
      %v1581 = vunpack.c.l.b16 %v1503
      %v1582 = vunpack.c.h.b16 %v1503
      %v1583 = vunpack.c.l.b16 %v1504
      %v1584 = vunpack.c.h.b16 %v1504
      %v1585 = vunpack.c.l.b16 %v1505
      %v1586 = vunpack.c.h.b16 %v1505
      %v1587 = vunpack.c.l.b16 %v1506
      %v1588 = vunpack.c.h.b16 %v1506
      %v1589 = vunpack.c.l.b16 %v1507
      %v1590 = vunpack.c.h.b16 %v1507
      %v1591 = vunpack.c.l.b16 %v1508
      %v1592 = vunpack.c.h.b16 %v1508
      %v1593 = vunpack.c.l.b16 %v1509
      %v1594 = vunpack.c.h.b16 %v1509
      %v1595 = vunpack.c.l.b16 %v1510
      %v1596 = vunpack.c.h.b16 %v1510
      %v1597 = vunpack.c.l.b16 %v1511
      %v1598 = vunpack.c.h.b16 %v1511
      %v1599 = vunpack.c.l.b16 %v1512
      %v1600 = vunpack.c.h.b16 %v1512
      %v1601 = vunpack.c.l.b16 %v1513
      %v1602 = vunpack.c.h.b16 %v1513
      %v1603 = vunpack.c.l.b16 %v1514
      %v1604 = vunpack.c.h.b16 %v1514
      %v1605 = vunpack.c.l.b16 %v1515
      %v1606 = vunpack.c.h.b16 %v1515
      %v1607 = vunpack.c.l.b16 %v1516
      %v1608 = vunpack.c.h.b16 %v1516
      %v1609 = vunpack.c.l.b16 %v1517
      %v1610 = vunpack.c.h.b16 %v1517
      %v1611 = vunpack.c.l.b16 %v1518
      %v1612 = vunpack.c.h.b16 %v1518
      %v1613 = vunpack.c.l.b16 %v1519
      %v1614 = vunpack.c.h.b16 %v1519
      %v1615 = vunpack.c.l.b16 %v1520
      %v1616 = vunpack.c.h.b16 %v1520
      %v1617 = vpack.c.b16 %v1555, %v1553
      %v1618 = vpack.c.b16 %v1556, %v1554
      %v1619 = vpack.c.b16 %v1559, %v1557
      %v1620 = vpack.c.b16 %v1560, %v1558
      %v1621 = vpack.c.b16 %v1563, %v1561
      %v1622 = vpack.c.b16 %v1564, %v1562
      %v1623 = vpack.c.b16 %v1567, %v1565
      %v1624 = vpack.c.b16 %v1568, %v1566
      %v1625 = vpack.c.b16 %v1571, %v1569
      %v1626 = vpack.c.b16 %v1572, %v1570
      %v1627 = vpack.c.b16 %v1575, %v1573
      %v1628 = vpack.c.b16 %v1576, %v1574
      %v1629 = vpack.c.b16 %v1579, %v1577
      %v1630 = vpack.c.b16 %v1580, %v1578
      %v1631 = vpack.c.b16 %v1583, %v1581
      %v1632 = vpack.c.b16 %v1584, %v1582
      %v1633 = vpack.c.b16 %v1587, %v1585
      %v1634 = vpack.c.b16 %v1588, %v1586
      %v1635 = vpack.c.b16 %v1591, %v1589
      %v1636 = vpack.c.b16 %v1592, %v1590
      %v1637 = vpack.c.b16 %v1595, %v1593
      %v1638 = vpack.c.b16 %v1596, %v1594
      %v1639 = vpack.c.b16 %v1599, %v1597
      %v1640 = vpack.c.b16 %v1600, %v1598
      %v1641 = vpack.c.b16 %v1603, %v1601
      %v1642 = vpack.c.b16 %v1604, %v1602
      %v1643 = vpack.c.b16 %v1607, %v1605
      %v1644 = vpack.c.b16 %v1608, %v1606
      %v1645 = vpack.c.b16 %v1611, %v1609
      %v1646 = vpack.c.b16 %v1612, %v1610
      %v1647 = vpack.c.b16 %v1615, %v1613
      %v1648 = vpack.c.b16 %v1616, %v1614
      %1681 = vmatpush.bf16.msra.mxu0 %v1631
      %1682 = vmatpush.bf16.msra.mxu0 %v1629
      %1683 = vmatpush.bf16.msra.mxu0 %v1627
      %1684 = vmatpush.bf16.msra.mxu0 %v1625
      %1685 = vmatpush.bf16.msra.mxu0 %v1623
      %1686 = vmatpush.bf16.msra.mxu0 %v1621
      %1687 = vmatpush.bf16.msra.mxu0 %v1619
      %1688 = vmatpush.bf16.msra.mxu0 %v1617
      %1689 = vmatmul.bf16.gmra.mxu0 %v1487
      %v1690 = vpop.f32.mrf.mxu0
      %v1691 = vadd.f32 %v658, %v1690
      %v1692 = vpop.f32.mrf.mxu0
      %1693 = vdwg.mxu0
      %1694 = vmatpush.bf16.msra.mxu0 %v1647
      %1695 = vmatpush.bf16.msra.mxu0 %v1645
      %1696 = vmatpush.bf16.msra.mxu0 %v1643
      %1697 = vmatpush.bf16.msra.mxu0 %v1641
      %1698 = vmatpush.bf16.msra.mxu0 %v1639
      %1699 = vmatpush.bf16.msra.mxu0 %v1637
      %1700 = vmatpush.bf16.msra.mxu0 %v1635
      %1701 = vmatpush.bf16.msra.mxu0 %v1633
      %1702 = vmatmul.bf16.gmra.mxu0 %v1488
      %v1703 = vpop.f32.mrf.mxu0
      %v1704 = vadd.f32 %v1691, %v1703
      %v1705 = vpop.f32.mrf.mxu0
      %1706 = vdwg.mxu0
      %1707 = vmatpush.bf16.msra.mxu0 %v1632
      %1708 = vmatpush.bf16.msra.mxu0 %v1630
      %1709 = vmatpush.bf16.msra.mxu0 %v1628
      %1710 = vmatpush.bf16.msra.mxu0 %v1626
      %1711 = vmatpush.bf16.msra.mxu0 %v1624
      %1712 = vmatpush.bf16.msra.mxu0 %v1622
      %1713 = vmatpush.bf16.msra.mxu0 %v1620
      %1714 = vmatpush.bf16.msra.mxu0 %v1618
      %1715 = vmatmul.bf16.gmra.mxu0 %v1487
      %v1716 = vpop.f32.mrf.mxu0
      %v1717 = vadd.f32 %v659, %v1716
      %v1718 = vpop.f32.mrf.mxu0
      %1719 = vdwg.mxu0
      %1720 = vmatpush.bf16.msra.mxu0 %v1648
      %1721 = vmatpush.bf16.msra.mxu0 %v1646
      %1722 = vmatpush.bf16.msra.mxu0 %v1644
      %1723 = vmatpush.bf16.msra.mxu0 %v1642
      %1724 = vmatpush.bf16.msra.mxu0 %v1640
      %1725 = vmatpush.bf16.msra.mxu0 %v1638
      %1726 = vmatpush.bf16.msra.mxu0 %v1636
      %1727 = vmatpush.bf16.msra.mxu0 %v1634
      %1728 = vmatmul.bf16.gmra.mxu0 %v1488
      %v1729 = vpop.f32.mrf.mxu0
      %v1730 = vadd.f32 %v1717, %v1729
      %v1731 = vpop.f32.mrf.mxu0
      %1732 = vdwg.mxu0
      %v1733 = vmax.f32 %v1704, 0.0
      %v1734 = vmax.f32 %v1730, 0.0
      %v1735 = vperm.slane %v1733, 0
      %v1736 = vperm.slane %v1734, 0
      %1737 = vst [vmem:[#allocation1] ss:$4 sm:$0xff] %v163
      %v1738 = vld.sshfl [vmem:[#allocation1] sm:$0xff pattern:$0x73625140]
      %v1739 = vld.sshfl [vmem:[#allocation1 + $0x8] sm:$0xff pattern:$0x73625140]
      %v1742 = vmul.f32 %v1735, %v1738
      %v1743 = vmul.f32 %v1736, %v1739
      %v1744 = vsel %vm726, %v1742, 0.0
      %v1745 = vsel %vm726, %v1743, 0.0
      %v1746 = vadd.f32 %v1744, %v1745
      %1747 = vadd.xlane.f32.xlu0 %v1746
      %v1748 = vpop.xlane.xlu0 %1747
      %v1749 = vadd.f32 %v1748, %v164
      %v1750 = vstv %s1217
      %v1751 = vmul.f32 %v1750, %v1749
      %v1752 = vmul.f32 %v1751, 0.33333334
      %v1753 = vadd.f32 %v1196, %v1752
      %1755 = vset.pattern.permute.xlu0 0
      %1756 = vperm.xlu0 %1755, %v1753
      %v1757 = vpop.permute.xlu0 %1756
      %v1759 = vmul.f32 %v1757, %v181
      %v1760 = vmul.f32 %v1757, %v182
      %v1761 = vmul.f32 %v1757, %v187
      %v1762 = vmul.f32 %v1757, %v188
      %v1765 = vrot.slane %v1761, 1
      %v1766 = vrot.slane %v1762, 1
      %v1769 = vadd.f32 %v1759, %v1765
      %v1770 = vadd.f32 %v1760, %v1766
      %v1771 = vadd.f32 %v1769, %v202
      %v1772 = vadd.f32 %v1770, %v203
      %v1773 = vmax.f32 %v1771, 0.0
      %v1774 = vmax.f32 %v1772, 0.0
      %v1775 = vpack.c.bf16 %v1773, %v1773
      %v1776 = vpack.c.bf16 %v1774, %v1774
      %1777 = vmatpush.bf16.msra.mxu0 %v1383
      %1778 = vmatpush.bf16.msra.mxu0 %v1381
      %1779 = vmatpush.bf16.msra.mxu0 %v1379
      %1780 = vmatpush.bf16.msra.mxu0 %v1377
      %1781 = vmatpush.bf16.msra.mxu0 %v1375
      %1782 = vmatpush.bf16.msra.mxu0 %v1373
      %1783 = vmatpush.bf16.msra.mxu0 %v1371
      %1784 = vmatpush.bf16.msra.mxu0 %v1369
      %1785 = vmatmul.bf16.gmra.mxu0 %v1775
      %v1786 = vpop.f32.mrf.mxu0
      %v1787 = vadd.f32 %v405, %v1786
      %v1788 = vpop.f32.mrf.mxu0
      %1789 = vdwg.mxu0
      %1790 = vmatpush.bf16.msra.mxu0 %v1399
      %1791 = vmatpush.bf16.msra.mxu0 %v1397
      %1792 = vmatpush.bf16.msra.mxu0 %v1395
      %1793 = vmatpush.bf16.msra.mxu0 %v1393
      %1794 = vmatpush.bf16.msra.mxu0 %v1391
      %1795 = vmatpush.bf16.msra.mxu0 %v1389
      %1796 = vmatpush.bf16.msra.mxu0 %v1387
      %1797 = vmatpush.bf16.msra.mxu0 %v1385
      %1798 = vmatmul.bf16.gmra.mxu0 %v1776
      %v1799 = vpop.f32.mrf.mxu0
      %v1800 = vadd.f32 %v1787, %v1799
      %v1801 = vpop.f32.mrf.mxu0
      %1802 = vdwg.mxu0
      %1803 = vmatpush.bf16.msra.mxu0 %v1384
      %1804 = vmatpush.bf16.msra.mxu0 %v1382
      %1805 = vmatpush.bf16.msra.mxu0 %v1380
      %1806 = vmatpush.bf16.msra.mxu0 %v1378
      %1807 = vmatpush.bf16.msra.mxu0 %v1376
      %1808 = vmatpush.bf16.msra.mxu0 %v1374
      %1809 = vmatpush.bf16.msra.mxu0 %v1372
      %1810 = vmatpush.bf16.msra.mxu0 %v1370
      %1811 = vmatmul.bf16.gmra.mxu0 %v1775
      %v1812 = vpop.f32.mrf.mxu0
      %v1813 = vadd.f32 %v406, %v1812
      %v1814 = vpop.f32.mrf.mxu0
      %1815 = vdwg.mxu0
      %1816 = vmatpush.bf16.msra.mxu0 %v1400
      %1817 = vmatpush.bf16.msra.mxu0 %v1398
      %1818 = vmatpush.bf16.msra.mxu0 %v1396
      %1819 = vmatpush.bf16.msra.mxu0 %v1394
      %1820 = vmatpush.bf16.msra.mxu0 %v1392
      %1821 = vmatpush.bf16.msra.mxu0 %v1390
      %1822 = vmatpush.bf16.msra.mxu0 %v1388
      %1823 = vmatpush.bf16.msra.mxu0 %v1386
      %1824 = vmatmul.bf16.gmra.mxu0 %v1776
      %v1825 = vpop.f32.mrf.mxu0
      %v1826 = vadd.f32 %v1813, %v1825
      %v1827 = vpop.f32.mrf.mxu0
      %1828 = vdwg.mxu0
      %v1829 = vmax.f32 %v1800, 0.0
      %v1830 = vmax.f32 %v1826, 0.0
      %v1831 = vpack.c.bf16 %v1829, %v1829
      %v1832 = vpack.c.bf16 %v1830, %v1830
      %1833 = vmatpush.bf16.msra.mxu0 %v1631
      %1834 = vmatpush.bf16.msra.mxu0 %v1629
      %1835 = vmatpush.bf16.msra.mxu0 %v1627
      %1836 = vmatpush.bf16.msra.mxu0 %v1625
      %1837 = vmatpush.bf16.msra.mxu0 %v1623
      %1838 = vmatpush.bf16.msra.mxu0 %v1621
      %1839 = vmatpush.bf16.msra.mxu0 %v1619
      %1840 = vmatpush.bf16.msra.mxu0 %v1617
      %1841 = vmatmul.bf16.gmra.mxu0 %v1831
      %v1842 = vpop.f32.mrf.mxu0
      %v1843 = vadd.f32 %v658, %v1842
      %v1844 = vpop.f32.mrf.mxu0
      %1845 = vdwg.mxu0
      %1846 = vmatpush.bf16.msra.mxu0 %v1647
      %1847 = vmatpush.bf16.msra.mxu0 %v1645
      %1848 = vmatpush.bf16.msra.mxu0 %v1643
      %1849 = vmatpush.bf16.msra.mxu0 %v1641
      %1850 = vmatpush.bf16.msra.mxu0 %v1639
      %1851 = vmatpush.bf16.msra.mxu0 %v1637
      %1852 = vmatpush.bf16.msra.mxu0 %v1635
      %1853 = vmatpush.bf16.msra.mxu0 %v1633
      %1854 = vmatmul.bf16.gmra.mxu0 %v1832
      %v1855 = vpop.f32.mrf.mxu0
      %v1856 = vadd.f32 %v1843, %v1855
      %v1857 = vpop.f32.mrf.mxu0
      %1858 = vdwg.mxu0
      %1859 = vmatpush.bf16.msra.mxu0 %v1632
      %1860 = vmatpush.bf16.msra.mxu0 %v1630
      %1861 = vmatpush.bf16.msra.mxu0 %v1628
      %1862 = vmatpush.bf16.msra.mxu0 %v1626
      %1863 = vmatpush.bf16.msra.mxu0 %v1624
      %1864 = vmatpush.bf16.msra.mxu0 %v1622
      %1865 = vmatpush.bf16.msra.mxu0 %v1620
      %1866 = vmatpush.bf16.msra.mxu0 %v1618
      %1867 = vmatmul.bf16.gmra.mxu0 %v1831
      %v1868 = vpop.f32.mrf.mxu0
      %v1869 = vadd.f32 %v659, %v1868
      %v1870 = vpop.f32.mrf.mxu0
      %1871 = vdwg.mxu0
      %1872 = vmatpush.bf16.msra.mxu0 %v1648
      %1873 = vmatpush.bf16.msra.mxu0 %v1646
      %1874 = vmatpush.bf16.msra.mxu0 %v1644
      %1875 = vmatpush.bf16.msra.mxu0 %v1642
      %1876 = vmatpush.bf16.msra.mxu0 %v1640
      %1877 = vmatpush.bf16.msra.mxu0 %v1638
      %1878 = vmatpush.bf16.msra.mxu0 %v1636
      %1879 = vmatpush.bf16.msra.mxu0 %v1634
      %1880 = vmatmul.bf16.gmra.mxu0 %v1832
      %v1881 = vpop.f32.mrf.mxu0
      %v1882 = vadd.f32 %v1869, %v1881
      %v1883 = vpop.f32.mrf.mxu0
      %1884 = vdwg.mxu0
      %v1885 = vmax.f32 %v1856, 0.0
      %v1886 = vmax.f32 %v1882, 0.0
      %v1887 = vperm.slane %v1885, 0
      %v1888 = vperm.slane %v1886, 0
      %1889 = vst [vmem:[#allocation1] ss:$4 sm:$0xff] %v163
      %v1890 = vld.sshfl [vmem:[#allocation1] sm:$0xff pattern:$0x73625140]
      %v1891 = vld.sshfl [vmem:[#allocation1 + $0x8] sm:$0xff pattern:$0x73625140]
      %v1894 = vmul.f32 %v1887, %v1890
      %v1895 = vmul.f32 %v1888, %v1891
      %v1896 = vsel %vm726, %v1894, 0.0
      %v1897 = vsel %vm726, %v1895, 0.0
      %v1898 = vadd.f32 %v1896, %v1897
      %1899 = vadd.xlane.f32.xlu0 %v1898
      %v1900 = vpop.xlane.xlu0 %1899
      %v1901 = vadd.f32 %v1900, %v164
      %v1902 = vmul.f32 %v1749, 0.33333334
      %v1903 = vsub.f32 %v1901, %v1902
      %v1904 = vmul.f32 %v1750, %v1903
      %v1905 = vadd.f32 %v1196, %v1904
      %1907 = vset.pattern.permute.xlu0 0
      %1908 = vperm.xlu0 %1907, %v1905
      %v1909 = vpop.permute.xlu0 %1908
      %v1911 = vmul.f32 %v1909, %v181
      %v1912 = vmul.f32 %v1909, %v182
      %v1913 = vmul.f32 %v1909, %v187
      %v1914 = vmul.f32 %v1909, %v188
      %v1917 = vrot.slane %v1913, 1
      %v1918 = vrot.slane %v1914, 1
      %v1921 = vadd.f32 %v1911, %v1917
      %v1922 = vadd.f32 %v1912, %v1918
      %v1923 = vadd.f32 %v1921, %v202
      %v1924 = vadd.f32 %v1922, %v203
      %v1925 = vmax.f32 %v1923, 0.0
      %v1926 = vmax.f32 %v1924, 0.0
      %v1927 = vpack.c.bf16 %v1925, %v1925
      %v1928 = vpack.c.bf16 %v1926, %v1926
      %1929 = vmatpush.bf16.msra.mxu0 %v1383
      %1930 = vmatpush.bf16.msra.mxu0 %v1381
      %1931 = vmatpush.bf16.msra.mxu0 %v1379
      %1932 = vmatpush.bf16.msra.mxu0 %v1377
      %1933 = vmatpush.bf16.msra.mxu0 %v1375
      %1934 = vmatpush.bf16.msra.mxu0 %v1373
      %1935 = vmatpush.bf16.msra.mxu0 %v1371
      %1936 = vmatpush.bf16.msra.mxu0 %v1369
      %1937 = vmatmul.bf16.gmra.mxu0 %v1927
      %v1938 = vpop.f32.mrf.mxu0
      %v1939 = vadd.f32 %v405, %v1938
      %v1940 = vpop.f32.mrf.mxu0
      %1941 = vdwg.mxu0
      %1942 = vmatpush.bf16.msra.mxu0 %v1399
      %1943 = vmatpush.bf16.msra.mxu0 %v1397
      %1944 = vmatpush.bf16.msra.mxu0 %v1395
      %1945 = vmatpush.bf16.msra.mxu0 %v1393
      %1946 = vmatpush.bf16.msra.mxu0 %v1391
      %1947 = vmatpush.bf16.msra.mxu0 %v1389
      %1948 = vmatpush.bf16.msra.mxu0 %v1387
      %1949 = vmatpush.bf16.msra.mxu0 %v1385
      %1950 = vmatmul.bf16.gmra.mxu0 %v1928
      %v1951 = vpop.f32.mrf.mxu0
      %v1952 = vadd.f32 %v1939, %v1951
      %v1953 = vpop.f32.mrf.mxu0
      %1954 = vdwg.mxu0
      %1955 = vmatpush.bf16.msra.mxu0 %v1384
      %1956 = vmatpush.bf16.msra.mxu0 %v1382
      %1957 = vmatpush.bf16.msra.mxu0 %v1380
      %1958 = vmatpush.bf16.msra.mxu0 %v1378
      %1959 = vmatpush.bf16.msra.mxu0 %v1376
      %1960 = vmatpush.bf16.msra.mxu0 %v1374
      %1961 = vmatpush.bf16.msra.mxu0 %v1372
      %1962 = vmatpush.bf16.msra.mxu0 %v1370
      %1963 = vmatmul.bf16.gmra.mxu0 %v1927
      %v1964 = vpop.f32.mrf.mxu0
      %v1965 = vadd.f32 %v406, %v1964
      %v1966 = vpop.f32.mrf.mxu0
      %1967 = vdwg.mxu0
      %1968 = vmatpush.bf16.msra.mxu0 %v1400
      %1969 = vmatpush.bf16.msra.mxu0 %v1398
      %1970 = vmatpush.bf16.msra.mxu0 %v1396
      %1971 = vmatpush.bf16.msra.mxu0 %v1394
      %1972 = vmatpush.bf16.msra.mxu0 %v1392
      %1973 = vmatpush.bf16.msra.mxu0 %v1390
      %1974 = vmatpush.bf16.msra.mxu0 %v1388
      %1975 = vmatpush.bf16.msra.mxu0 %v1386
      %1976 = vmatmul.bf16.gmra.mxu0 %v1928
      %v1977 = vpop.f32.mrf.mxu0
      %v1978 = vadd.f32 %v1965, %v1977
      %v1979 = vpop.f32.mrf.mxu0
      %1980 = vdwg.mxu0
      %v1981 = vmax.f32 %v1952, 0.0
      %v1982 = vmax.f32 %v1978, 0.0
      %v1983 = vpack.c.bf16 %v1981, %v1981
      %v1984 = vpack.c.bf16 %v1982, %v1982
      %1985 = vmatpush.bf16.msra.mxu0 %v1631
      %1986 = vmatpush.bf16.msra.mxu0 %v1629
      %1987 = vmatpush.bf16.msra.mxu0 %v1627
      %1988 = vmatpush.bf16.msra.mxu0 %v1625
      %1989 = vmatpush.bf16.msra.mxu0 %v1623
      %1990 = vmatpush.bf16.msra.mxu0 %v1621
      %1991 = vmatpush.bf16.msra.mxu0 %v1619
      %1992 = vmatpush.bf16.msra.mxu0 %v1617
      %1993 = vmatmul.bf16.gmra.mxu0 %v1983
      %v1994 = vpop.f32.mrf.mxu0
      %v1995 = vadd.f32 %v658, %v1994
      %v1996 = vpop.f32.mrf.mxu0
      %1997 = vdwg.mxu0
      %1998 = vmatpush.bf16.msra.mxu0 %v1647
      %1999 = vmatpush.bf16.msra.mxu0 %v1645
      %2000 = vmatpush.bf16.msra.mxu0 %v1643
      %2001 = vmatpush.bf16.msra.mxu0 %v1641
      %2002 = vmatpush.bf16.msra.mxu0 %v1639
      %2003 = vmatpush.bf16.msra.mxu0 %v1637
      %2004 = vmatpush.bf16.msra.mxu0 %v1635
      %2005 = vmatpush.bf16.msra.mxu0 %v1633
      %2006 = vmatmul.bf16.gmra.mxu0 %v1984
      %v2007 = vpop.f32.mrf.mxu0
      %v2008 = vadd.f32 %v1995, %v2007
      %v2009 = vpop.f32.mrf.mxu0
      %2010 = vdwg.mxu0
      %2011 = vmatpush.bf16.msra.mxu0 %v1632
      %2012 = vmatpush.bf16.msra.mxu0 %v1630
      %2013 = vmatpush.bf16.msra.mxu0 %v1628
      %2014 = vmatpush.bf16.msra.mxu0 %v1626
      %2015 = vmatpush.bf16.msra.mxu0 %v1624
      %2016 = vmatpush.bf16.msra.mxu0 %v1622
      %2017 = vmatpush.bf16.msra.mxu0 %v1620
      %2018 = vmatpush.bf16.msra.mxu0 %v1618
      %2019 = vmatmul.bf16.gmra.mxu0 %v1983
      %v2020 = vpop.f32.mrf.mxu0
      %v2021 = vadd.f32 %v659, %v2020
      %v2022 = vpop.f32.mrf.mxu0
      %2023 = vdwg.mxu0
      %2024 = vmatpush.bf16.msra.mxu0 %v1648
      %2025 = vmatpush.bf16.msra.mxu0 %v1646
      %2026 = vmatpush.bf16.msra.mxu0 %v1644
      %2027 = vmatpush.bf16.msra.mxu0 %v1642
      %2028 = vmatpush.bf16.msra.mxu0 %v1640
      %2029 = vmatpush.bf16.msra.mxu0 %v1638
      %2030 = vmatpush.bf16.msra.mxu0 %v1636
      %2031 = vmatpush.bf16.msra.mxu0 %v1634
      %2032 = vmatmul.bf16.gmra.mxu0 %v1984
      %v2033 = vpop.f32.mrf.mxu0
      %v2034 = vadd.f32 %v2021, %v2033
      %v2035 = vpop.f32.mrf.mxu0
      %2036 = vdwg.mxu0
      %v2037 = vmax.f32 %v2008, 0.0
      %v2038 = vmax.f32 %v2034, 0.0
      %v2039 = vperm.slane %v2037, 0
      %v2040 = vperm.slane %v2038, 0
      %2041 = vst [vmem:[#allocation1] ss:$4 sm:$0xff] %v163
      %v2042 = vld.sshfl [vmem:[#allocation1] sm:$0xff pattern:$0x73625140]
      %v2043 = vld.sshfl [vmem:[#allocation1 + $0x8] sm:$0xff pattern:$0x73625140]
      %v2046 = vmul.f32 %v2039, %v2042
      %v2047 = vmul.f32 %v2040, %v2043
      %v2048 = vsel %vm726, %v2046, 0.0
      %v2049 = vsel %vm726, %v2047, 0.0
      %v2050 = vadd.f32 %v2048, %v2049
      %2051 = vadd.xlane.f32.xlu0 %v2050
      %v2052 = vpop.xlane.xlu0 %2051
      %v2053 = vadd.f32 %v2052, %v164
      %v2054 = vsub.f32 %v1749, %v1901
      %v2055 = vadd.f32 %v2054, %v2053
      %v2056 = vmul.f32 %v1750, %v2055
      %v2057 = vadd.f32 %v1196, %v2056
      %2059 = vset.pattern.permute.xlu0 0
      %2060 = vperm.xlu0 %2059, %v2057
      %v2061 = vpop.permute.xlu0 %2060
      %v2063 = vmul.f32 %v2061, %v181
      %v2064 = vmul.f32 %v2061, %v182
      %v2065 = vmul.f32 %v2061, %v187
      %v2066 = vmul.f32 %v2061, %v188
      %v2069 = vrot.slane %v2065, 1
      %v2070 = vrot.slane %v2066, 1
      %v2073 = vadd.f32 %v2063, %v2069
      %v2074 = vadd.f32 %v2064, %v2070
      %v2075 = vadd.f32 %v2073, %v202
      %v2076 = vadd.f32 %v2074, %v203
      %v2077 = vmax.f32 %v2075, 0.0
      %v2078 = vmax.f32 %v2076, 0.0
      %v2079 = vpack.c.bf16 %v2077, %v2077
      %v2080 = vpack.c.bf16 %v2078, %v2078
      %2081 = vmatpush.bf16.msra.mxu0 %v1383
      %2082 = vmatpush.bf16.msra.mxu0 %v1381
      %2083 = vmatpush.bf16.msra.mxu0 %v1379
      %2084 = vmatpush.bf16.msra.mxu0 %v1377
      %2085 = vmatpush.bf16.msra.mxu0 %v1375
      %2086 = vmatpush.bf16.msra.mxu0 %v1373
      %2087 = vmatpush.bf16.msra.mxu0 %v1371
      %2088 = vmatpush.bf16.msra.mxu0 %v1369
      %2089 = vmatmul.bf16.gmra.mxu0 %v2079
      %v2090 = vpop.f32.mrf.mxu0
      %v2091 = vadd.f32 %v405, %v2090
      %v2092 = vpop.f32.mrf.mxu0
      %2093 = vdwg.mxu0
      %2094 = vmatpush.bf16.msra.mxu0 %v1399
      %2095 = vmatpush.bf16.msra.mxu0 %v1397
      %2096 = vmatpush.bf16.msra.mxu0 %v1395
      %2097 = vmatpush.bf16.msra.mxu0 %v1393
      %2098 = vmatpush.bf16.msra.mxu0 %v1391
      %2099 = vmatpush.bf16.msra.mxu0 %v1389
      %2100 = vmatpush.bf16.msra.mxu0 %v1387
      %2101 = vmatpush.bf16.msra.mxu0 %v1385
      %2102 = vmatmul.bf16.gmra.mxu0 %v2080
      %v2103 = vpop.f32.mrf.mxu0
      %v2104 = vadd.f32 %v2091, %v2103
      %v2105 = vpop.f32.mrf.mxu0
      %2106 = vdwg.mxu0
      %2107 = vmatpush.bf16.msra.mxu0 %v1384
      %2108 = vmatpush.bf16.msra.mxu0 %v1382
      %2109 = vmatpush.bf16.msra.mxu0 %v1380
      %2110 = vmatpush.bf16.msra.mxu0 %v1378
      %2111 = vmatpush.bf16.msra.mxu0 %v1376
      %2112 = vmatpush.bf16.msra.mxu0 %v1374
      %2113 = vmatpush.bf16.msra.mxu0 %v1372
      %2114 = vmatpush.bf16.msra.mxu0 %v1370
      %2115 = vmatmul.bf16.gmra.mxu0 %v2079
      %v2116 = vpop.f32.mrf.mxu0
      %v2117 = vadd.f32 %v406, %v2116
      %v2118 = vpop.f32.mrf.mxu0
      %2119 = vdwg.mxu0
      %2120 = vmatpush.bf16.msra.mxu0 %v1400
      %2121 = vmatpush.bf16.msra.mxu0 %v1398
      %2122 = vmatpush.bf16.msra.mxu0 %v1396
      %2123 = vmatpush.bf16.msra.mxu0 %v1394
      %2124 = vmatpush.bf16.msra.mxu0 %v1392
      %2125 = vmatpush.bf16.msra.mxu0 %v1390
      %2126 = vmatpush.bf16.msra.mxu0 %v1388
      %2127 = vmatpush.bf16.msra.mxu0 %v1386
      %2128 = vmatmul.bf16.gmra.mxu0 %v2080
      %v2129 = vpop.f32.mrf.mxu0
      %v2130 = vadd.f32 %v2117, %v2129
      %v2131 = vpop.f32.mrf.mxu0
      %2132 = vdwg.mxu0
      %v2133 = vmax.f32 %v2104, 0.0
      %v2134 = vmax.f32 %v2130, 0.0
      %v2135 = vpack.c.bf16 %v2133, %v2133
      %v2136 = vpack.c.bf16 %v2134, %v2134
      %2137 = vmatpush.bf16.msra.mxu0 %v1631
      %2138 = vmatpush.bf16.msra.mxu0 %v1629
      %2139 = vmatpush.bf16.msra.mxu0 %v1627
      %2140 = vmatpush.bf16.msra.mxu0 %v1625
      %2141 = vmatpush.bf16.msra.mxu0 %v1623
      %2142 = vmatpush.bf16.msra.mxu0 %v1621
      %2143 = vmatpush.bf16.msra.mxu0 %v1619
      %2144 = vmatpush.bf16.msra.mxu0 %v1617
      %2145 = vmatmul.bf16.gmra.mxu0 %v2135
      %v2146 = vpop.f32.mrf.mxu0
      %v2147 = vadd.f32 %v658, %v2146
      %v2148 = vpop.f32.mrf.mxu0
      %2149 = vdwg.mxu0
      %2150 = vmatpush.bf16.msra.mxu0 %v1647
      %2151 = vmatpush.bf16.msra.mxu0 %v1645
      %2152 = vmatpush.bf16.msra.mxu0 %v1643
      %2153 = vmatpush.bf16.msra.mxu0 %v1641
      %2154 = vmatpush.bf16.msra.mxu0 %v1639
      %2155 = vmatpush.bf16.msra.mxu0 %v1637
      %2156 = vmatpush.bf16.msra.mxu0 %v1635
      %2157 = vmatpush.bf16.msra.mxu0 %v1633
      %2158 = vmatmul.bf16.gmra.mxu0 %v2136
      %v2159 = vpop.f32.mrf.mxu0
      %v2160 = vadd.f32 %v2147, %v2159
      %v2161 = vpop.f32.mrf.mxu0
      %2162 = vdwg.mxu0
      %2163 = vmatpush.bf16.msra.mxu0 %v1632
      %2164 = vmatpush.bf16.msra.mxu0 %v1630
      %2165 = vmatpush.bf16.msra.mxu0 %v1628
      %2166 = vmatpush.bf16.msra.mxu0 %v1626
      %2167 = vmatpush.bf16.msra.mxu0 %v1624
      %2168 = vmatpush.bf16.msra.mxu0 %v1622
      %2169 = vmatpush.bf16.msra.mxu0 %v1620
      %2170 = vmatpush.bf16.msra.mxu0 %v1618
      %2171 = vmatmul.bf16.gmra.mxu0 %v2135
      %v2172 = vpop.f32.mrf.mxu0
      %v2173 = vadd.f32 %v659, %v2172
      %v2174 = vpop.f32.mrf.mxu0
      %2175 = vdwg.mxu0
      %2176 = vmatpush.bf16.msra.mxu0 %v1648
      %2177 = vmatpush.bf16.msra.mxu0 %v1646
      %2178 = vmatpush.bf16.msra.mxu0 %v1644
      %2179 = vmatpush.bf16.msra.mxu0 %v1642
      %2180 = vmatpush.bf16.msra.mxu0 %v1640
      %2181 = vmatpush.bf16.msra.mxu0 %v1638
      %2182 = vmatpush.bf16.msra.mxu0 %v1636
      %2183 = vmatpush.bf16.msra.mxu0 %v1634
      %2184 = vmatmul.bf16.gmra.mxu0 %v2136
      %v2185 = vpop.f32.mrf.mxu0
      %v2186 = vadd.f32 %v2173, %v2185
      %v2187 = vpop.f32.mrf.mxu0
      %2188 = vdwg.mxu0
      %v2189 = vmax.f32 %v2160, 0.0
      %v2190 = vmax.f32 %v2186, 0.0
      %v2191 = vperm.slane %v2189, 0
      %v2192 = vperm.slane %v2190, 0
      %2193 = vst [vmem:[#allocation1] ss:$4 sm:$0xff] %v163
      %v2194 = vld.sshfl [vmem:[#allocation1] sm:$0xff pattern:$0x73625140]
      %v2195 = vld.sshfl [vmem:[#allocation1 + $0x8] sm:$0xff pattern:$0x73625140]
      %v2198 = vmul.f32 %v2191, %v2194
      %v2199 = vmul.f32 %v2192, %v2195
      %v2200 = vsel %vm726, %v2198, 0.0
      %v2201 = vsel %vm726, %v2199, 0.0
      %v2202 = vadd.f32 %v2200, %v2201
      %2203 = vadd.xlane.f32.xlu0 %v2202
      %v2204 = vpop.xlane.xlu0 %2203
      %v2205 = vadd.f32 %v2204, %v164
      %s2206 = smul.f32 %s1217, 0.125
      %v2207 = vadd.f32 %v1901, %v2053
      %v2208 = vmul.f32 %v2207, 3.0
      %v2209 = vadd.f32 %v1749, %v2208
      %v2210 = vadd.f32 %v2209, %v2205
      %v2211 = vstv %s2206
      %v2212 = vmul.f32 %v2211, %v2210
      %v2213 = vadd.f32 %v1196, %v2212
      %s2214 = sld [smem:[#allocation6 + %s1216]]
      %p2215 = scmp.ge.s32.totalorder %s2214, 0
      // Predicated region
      $region93: #{tpu_custom_call.1} parent=85 // pred_check
        %p2216 = pneg %p2215
      $region94: #{tpu_custom_call.1} parent=85 // pred_check_branch
        %2218 = sbr.rel (%p2216) target = $region96
      $region95: #{tpu_custom_call.1} parent=85 // pred_region
        %s2219 = sld [smem:[#allocation7 + %s1216]]
        %v2220 = vsub.f32 %v2213, %v1196
        %v2221 = vstv %s2219
        %v2222 = vmul.f32 %v2221, %v2220
        %v2223 = vadd.f32 %v1196, %v2222
        %s2224 = scalar_lea.vmem %s12, %s2214
        %vm2225 = vcmask 0
        %2226 = vst.msk [vmem:[%s2224] sm:$0x1] %vm2225, %v2223
        %2228 = vrot.lane.b32.xlu0 %v2223, 1
        %v2229 = vpop.permute.xlu0 %2228
        %vm2231 = vcmask 9225
        %2232 = vst.msk [vmem:[%s2224 - $0x1] sm:$0x2] %vm2231, %v2229
      $region96: #{tpu_custom_call.1} parent=85 // pred_fallthru
        _
      %s2233 = sadd.s32 %s173, 2
      %s2234 = sld [smem:[#allocation2 + %s2233]]
      %2236 = vset.pattern.permute.xlu0 0
      %2237 = vperm.xlu0 %2236, %v2213
      %v2238 = vpop.permute.xlu0 %2237
      %v2240 = vmul.f32 %v2238, %v181
      %v2241 = vmul.f32 %v2238, %v182
      %v2242 = vmul.f32 %v2238, %v187
      %v2243 = vmul.f32 %v2238, %v188
      %v2246 = vrot.slane %v2242, 1
      %v2247 = vrot.slane %v2243, 1
      %v2250 = vadd.f32 %v2240, %v2246
      %v2251 = vadd.f32 %v2241, %v2247
      %v2252 = vadd.f32 %v2250, %v202
      %v2253 = vadd.f32 %v2251, %v203
      %v2254 = vmax.f32 %v2252, 0.0
      %v2255 = vmax.f32 %v2253, 0.0
      %v2256 = vpack.c.bf16 %v2254, %v2254
      %v2257 = vpack.c.bf16 %v2255, %v2255
      %v2258 = vld [vmem:[#allocation12] sm:$0xff]
      %v2259 = vld [vmem:[#allocation12 + $0x8] sm:$0xff]
      %v2260 = vld [vmem:[#allocation12 + $0x10] sm:$0xff]
      %v2261 = vld [vmem:[#allocation12 + $0x18] sm:$0xff]
      %v2262 = vld [vmem:[#allocation12 + $0x20] sm:$0xff]
      %v2263 = vld [vmem:[#allocation12 + $0x28] sm:$0xff]
      %v2264 = vld [vmem:[#allocation12 + $0x30] sm:$0xff]
      %v2265 = vld [vmem:[#allocation12 + $0x38] sm:$0xff]
      %v2266 = vld [vmem:[#allocation12 + $0x40] sm:$0xff]
      %v2267 = vld [vmem:[#allocation12 + $0x48] sm:$0xff]
      %v2268 = vld [vmem:[#allocation12 + $0x50] sm:$0xff]
      %v2269 = vld [vmem:[#allocation12 + $0x58] sm:$0xff]
      %v2270 = vld [vmem:[#allocation12 + $0x60] sm:$0xff]
      %v2271 = vld [vmem:[#allocation12 + $0x68] sm:$0xff]
      %v2272 = vld [vmem:[#allocation12 + $0x70] sm:$0xff]
      %v2273 = vld [vmem:[#allocation12 + $0x78] sm:$0xff]
      %v2274 = vld [vmem:[#allocation12 + $0x80] sm:$0xff]
      %v2275 = vld [vmem:[#allocation12 + $0x88] sm:$0xff]
      %v2276 = vld [vmem:[#allocation12 + $0x90] sm:$0xff]
      %v2277 = vld [vmem:[#allocation12 + $0x98] sm:$0xff]
      %v2278 = vld [vmem:[#allocation12 + $0xa0] sm:$0xff]
      %v2279 = vld [vmem:[#allocation12 + $0xa8] sm:$0xff]
      %v2280 = vld [vmem:[#allocation12 + $0xb0] sm:$0xff]
      %v2281 = vld [vmem:[#allocation12 + $0xb8] sm:$0xff]
      %v2282 = vld [vmem:[#allocation12 + $0xc0] sm:$0xff]
      %v2283 = vld [vmem:[#allocation12 + $0xc8] sm:$0xff]
      %v2284 = vld [vmem:[#allocation12 + $0xd0] sm:$0xff]
      %v2285 = vld [vmem:[#allocation12 + $0xd8] sm:$0xff]
      %v2286 = vld [vmem:[#allocation12 + $0xe0] sm:$0xff]
      %v2287 = vld [vmem:[#allocation12 + $0xe8] sm:$0xff]
      %v2288 = vld [vmem:[#allocation12 + $0xf0] sm:$0xff]
      %v2289 = vld [vmem:[#allocation12 + $0xf8] sm:$0xff]
      %v2322 = vunpack.c.l.b16 %v2258
      %v2323 = vunpack.c.h.b16 %v2258
      %v2324 = vunpack.c.l.b16 %v2259
      %v2325 = vunpack.c.h.b16 %v2259
      %v2326 = vunpack.c.l.b16 %v2260
      %v2327 = vunpack.c.h.b16 %v2260
      %v2328 = vunpack.c.l.b16 %v2261
      %v2329 = vunpack.c.h.b16 %v2261
      %v2330 = vunpack.c.l.b16 %v2262
      %v2331 = vunpack.c.h.b16 %v2262
      %v2332 = vunpack.c.l.b16 %v2263
      %v2333 = vunpack.c.h.b16 %v2263
      %v2334 = vunpack.c.l.b16 %v2264
      %v2335 = vunpack.c.h.b16 %v2264
      %v2336 = vunpack.c.l.b16 %v2265
      %v2337 = vunpack.c.h.b16 %v2265
      %v2338 = vunpack.c.l.b16 %v2266
      %v2339 = vunpack.c.h.b16 %v2266
      %v2340 = vunpack.c.l.b16 %v2267
      %v2341 = vunpack.c.h.b16 %v2267
      %v2342 = vunpack.c.l.b16 %v2268
      %v2343 = vunpack.c.h.b16 %v2268
      %v2344 = vunpack.c.l.b16 %v2269
      %v2345 = vunpack.c.h.b16 %v2269
      %v2346 = vunpack.c.l.b16 %v2270
      %v2347 = vunpack.c.h.b16 %v2270
      %v2348 = vunpack.c.l.b16 %v2271
      %v2349 = vunpack.c.h.b16 %v2271
      %v2350 = vunpack.c.l.b16 %v2272
      %v2351 = vunpack.c.h.b16 %v2272
      %v2352 = vunpack.c.l.b16 %v2273
      %v2353 = vunpack.c.h.b16 %v2273
      %v2354 = vunpack.c.l.b16 %v2274
      %v2355 = vunpack.c.h.b16 %v2274
      %v2356 = vunpack.c.l.b16 %v2275
      %v2357 = vunpack.c.h.b16 %v2275
      %v2358 = vunpack.c.l.b16 %v2276
      %v2359 = vunpack.c.h.b16 %v2276
      %v2360 = vunpack.c.l.b16 %v2277
      %v2361 = vunpack.c.h.b16 %v2277
      %v2362 = vunpack.c.l.b16 %v2278
      %v2363 = vunpack.c.h.b16 %v2278
      %v2364 = vunpack.c.l.b16 %v2279
      %v2365 = vunpack.c.h.b16 %v2279
      %v2366 = vunpack.c.l.b16 %v2280
      %v2367 = vunpack.c.h.b16 %v2280
      %v2368 = vunpack.c.l.b16 %v2281
      %v2369 = vunpack.c.h.b16 %v2281
      %v2370 = vunpack.c.l.b16 %v2282
      %v2371 = vunpack.c.h.b16 %v2282
      %v2372 = vunpack.c.l.b16 %v2283
      %v2373 = vunpack.c.h.b16 %v2283
      %v2374 = vunpack.c.l.b16 %v2284
      %v2375 = vunpack.c.h.b16 %v2284
      %v2376 = vunpack.c.l.b16 %v2285
      %v2377 = vunpack.c.h.b16 %v2285
      %v2378 = vunpack.c.l.b16 %v2286
      %v2379 = vunpack.c.h.b16 %v2286
      %v2380 = vunpack.c.l.b16 %v2287
      %v2381 = vunpack.c.h.b16 %v2287
      %v2382 = vunpack.c.l.b16 %v2288
      %v2383 = vunpack.c.h.b16 %v2288
      %v2384 = vunpack.c.l.b16 %v2289
      %v2385 = vunpack.c.h.b16 %v2289
      %v2386 = vpack.c.b16 %v2324, %v2322
      %v2387 = vpack.c.b16 %v2325, %v2323
      %v2388 = vpack.c.b16 %v2328, %v2326
      %v2389 = vpack.c.b16 %v2329, %v2327
      %v2390 = vpack.c.b16 %v2332, %v2330
      %v2391 = vpack.c.b16 %v2333, %v2331
      %v2392 = vpack.c.b16 %v2336, %v2334
      %v2393 = vpack.c.b16 %v2337, %v2335
      %v2394 = vpack.c.b16 %v2340, %v2338
      %v2395 = vpack.c.b16 %v2341, %v2339
      %v2396 = vpack.c.b16 %v2344, %v2342
      %v2397 = vpack.c.b16 %v2345, %v2343
      %v2398 = vpack.c.b16 %v2348, %v2346
      %v2399 = vpack.c.b16 %v2349, %v2347
      %v2400 = vpack.c.b16 %v2352, %v2350
      %v2401 = vpack.c.b16 %v2353, %v2351
      %v2402 = vpack.c.b16 %v2356, %v2354
      %v2403 = vpack.c.b16 %v2357, %v2355
      %v2404 = vpack.c.b16 %v2360, %v2358
      %v2405 = vpack.c.b16 %v2361, %v2359
      %v2406 = vpack.c.b16 %v2364, %v2362
      %v2407 = vpack.c.b16 %v2365, %v2363
      %v2408 = vpack.c.b16 %v2368, %v2366
      %v2409 = vpack.c.b16 %v2369, %v2367
      %v2410 = vpack.c.b16 %v2372, %v2370
      %v2411 = vpack.c.b16 %v2373, %v2371
      %v2412 = vpack.c.b16 %v2376, %v2374
      %v2413 = vpack.c.b16 %v2377, %v2375
      %v2414 = vpack.c.b16 %v2380, %v2378
      %v2415 = vpack.c.b16 %v2381, %v2379
      %v2416 = vpack.c.b16 %v2384, %v2382
      %v2417 = vpack.c.b16 %v2385, %v2383
      %2450 = vmatpush.bf16.msra.mxu0 %v2400
      %2451 = vmatpush.bf16.msra.mxu0 %v2398
      %2452 = vmatpush.bf16.msra.mxu0 %v2396
      %2453 = vmatpush.bf16.msra.mxu0 %v2394
      %2454 = vmatpush.bf16.msra.mxu0 %v2392
      %2455 = vmatpush.bf16.msra.mxu0 %v2390
      %2456 = vmatpush.bf16.msra.mxu0 %v2388
      %2457 = vmatpush.bf16.msra.mxu0 %v2386
      %2458 = vmatmul.bf16.gmra.mxu0 %v2256
      %v2459 = vpop.f32.mrf.mxu0
      %v2460 = vadd.f32 %v405, %v2459
      %v2461 = vpop.f32.mrf.mxu0
      %2462 = vdwg.mxu0
      %2463 = vmatpush.bf16.msra.mxu0 %v2416
      %2464 = vmatpush.bf16.msra.mxu0 %v2414
      %2465 = vmatpush.bf16.msra.mxu0 %v2412
      %2466 = vmatpush.bf16.msra.mxu0 %v2410
      %2467 = vmatpush.bf16.msra.mxu0 %v2408
      %2468 = vmatpush.bf16.msra.mxu0 %v2406
      %2469 = vmatpush.bf16.msra.mxu0 %v2404
      %2470 = vmatpush.bf16.msra.mxu0 %v2402
      %2471 = vmatmul.bf16.gmra.mxu0 %v2257
      %v2472 = vpop.f32.mrf.mxu0
      %v2473 = vadd.f32 %v2460, %v2472
      %v2474 = vpop.f32.mrf.mxu0
      %2475 = vdwg.mxu0
      %2476 = vmatpush.bf16.msra.mxu0 %v2401
      %2477 = vmatpush.bf16.msra.mxu0 %v2399
      %2478 = vmatpush.bf16.msra.mxu0 %v2397
      %2479 = vmatpush.bf16.msra.mxu0 %v2395
      %2480 = vmatpush.bf16.msra.mxu0 %v2393
      %2481 = vmatpush.bf16.msra.mxu0 %v2391
      %2482 = vmatpush.bf16.msra.mxu0 %v2389
      %2483 = vmatpush.bf16.msra.mxu0 %v2387
      %2484 = vmatmul.bf16.gmra.mxu0 %v2256
      %v2485 = vpop.f32.mrf.mxu0
      %v2486 = vadd.f32 %v406, %v2485
      %v2487 = vpop.f32.mrf.mxu0
      %2488 = vdwg.mxu0
      %2489 = vmatpush.bf16.msra.mxu0 %v2417
      %2490 = vmatpush.bf16.msra.mxu0 %v2415
      %2491 = vmatpush.bf16.msra.mxu0 %v2413
      %2492 = vmatpush.bf16.msra.mxu0 %v2411
      %2493 = vmatpush.bf16.msra.mxu0 %v2409
      %2494 = vmatpush.bf16.msra.mxu0 %v2407
      %2495 = vmatpush.bf16.msra.mxu0 %v2405
      %2496 = vmatpush.bf16.msra.mxu0 %v2403
      %2497 = vmatmul.bf16.gmra.mxu0 %v2257
      %v2498 = vpop.f32.mrf.mxu0
      %v2499 = vadd.f32 %v2486, %v2498
      %v2500 = vpop.f32.mrf.mxu0
      %2501 = vdwg.mxu0
      %v2502 = vmax.f32 %v2473, 0.0
      %v2503 = vmax.f32 %v2499, 0.0
      %v2504 = vpack.c.bf16 %v2502, %v2502
      %v2505 = vpack.c.bf16 %v2503, %v2503
      %v2506 = vld [vmem:[#allocation15] sm:$0xff]
      %v2507 = vld [vmem:[#allocation15 + $0x8] sm:$0xff]
      %v2508 = vld [vmem:[#allocation15 + $0x10] sm:$0xff]
      %v2509 = vld [vmem:[#allocation15 + $0x18] sm:$0xff]
      %v2510 = vld [vmem:[#allocation15 + $0x20] sm:$0xff]
      %v2511 = vld [vmem:[#allocation15 + $0x28] sm:$0xff]
      %v2512 = vld [vmem:[#allocation15 + $0x30] sm:$0xff]
      %v2513 = vld [vmem:[#allocation15 + $0x38] sm:$0xff]
      %v2514 = vld [vmem:[#allocation15 + $0x40] sm:$0xff]
      %v2515 = vld [vmem:[#allocation15 + $0x48] sm:$0xff]
      %v2516 = vld [vmem:[#allocation15 + $0x50] sm:$0xff]
      %v2517 = vld [vmem:[#allocation15 + $0x58] sm:$0xff]
      %v2518 = vld [vmem:[#allocation15 + $0x60] sm:$0xff]
      %v2519 = vld [vmem:[#allocation15 + $0x68] sm:$0xff]
      %v2520 = vld [vmem:[#allocation15 + $0x70] sm:$0xff]
      %v2521 = vld [vmem:[#allocation15 + $0x78] sm:$0xff]
      %v2522 = vld [vmem:[#allocation15 + $0x80] sm:$0xff]
      %v2523 = vld [vmem:[#allocation15 + $0x88] sm:$0xff]
      %v2524 = vld [vmem:[#allocation15 + $0x90] sm:$0xff]
      %v2525 = vld [vmem:[#allocation15 + $0x98] sm:$0xff]
      %v2526 = vld [vmem:[#allocation15 + $0xa0] sm:$0xff]
      %v2527 = vld [vmem:[#allocation15 + $0xa8] sm:$0xff]
      %v2528 = vld [vmem:[#allocation15 + $0xb0] sm:$0xff]
      %v2529 = vld [vmem:[#allocation15 + $0xb8] sm:$0xff]
      %v2530 = vld [vmem:[#allocation15 + $0xc0] sm:$0xff]
      %v2531 = vld [vmem:[#allocation15 + $0xc8] sm:$0xff]
      %v2532 = vld [vmem:[#allocation15 + $0xd0] sm:$0xff]
      %v2533 = vld [vmem:[#allocation15 + $0xd8] sm:$0xff]
      %v2534 = vld [vmem:[#allocation15 + $0xe0] sm:$0xff]
      %v2535 = vld [vmem:[#allocation15 + $0xe8] sm:$0xff]
      %v2536 = vld [vmem:[#allocation15 + $0xf0] sm:$0xff]
      %v2537 = vld [vmem:[#allocation15 + $0xf8] sm:$0xff]
      %v2570 = vunpack.c.l.b16 %v2506
      %v2571 = vunpack.c.h.b16 %v2506
      %v2572 = vunpack.c.l.b16 %v2507
      %v2573 = vunpack.c.h.b16 %v2507
      %v2574 = vunpack.c.l.b16 %v2508
      %v2575 = vunpack.c.h.b16 %v2508
      %v2576 = vunpack.c.l.b16 %v2509
      %v2577 = vunpack.c.h.b16 %v2509
      %v2578 = vunpack.c.l.b16 %v2510
      %v2579 = vunpack.c.h.b16 %v2510
      %v2580 = vunpack.c.l.b16 %v2511
      %v2581 = vunpack.c.h.b16 %v2511
      %v2582 = vunpack.c.l.b16 %v2512
      %v2583 = vunpack.c.h.b16 %v2512
      %v2584 = vunpack.c.l.b16 %v2513
      %v2585 = vunpack.c.h.b16 %v2513
      %v2586 = vunpack.c.l.b16 %v2514
      %v2587 = vunpack.c.h.b16 %v2514
      %v2588 = vunpack.c.l.b16 %v2515
      %v2589 = vunpack.c.h.b16 %v2515
      %v2590 = vunpack.c.l.b16 %v2516
      %v2591 = vunpack.c.h.b16 %v2516
      %v2592 = vunpack.c.l.b16 %v2517
      %v2593 = vunpack.c.h.b16 %v2517
      %v2594 = vunpack.c.l.b16 %v2518
      %v2595 = vunpack.c.h.b16 %v2518
      %v2596 = vunpack.c.l.b16 %v2519
      %v2597 = vunpack.c.h.b16 %v2519
      %v2598 = vunpack.c.l.b16 %v2520
      %v2599 = vunpack.c.h.b16 %v2520
      %v2600 = vunpack.c.l.b16 %v2521
      %v2601 = vunpack.c.h.b16 %v2521
      %v2602 = vunpack.c.l.b16 %v2522
      %v2603 = vunpack.c.h.b16 %v2522
      %v2604 = vunpack.c.l.b16 %v2523
      %v2605 = vunpack.c.h.b16 %v2523
      %v2606 = vunpack.c.l.b16 %v2524
      %v2607 = vunpack.c.h.b16 %v2524
      %v2608 = vunpack.c.l.b16 %v2525
      %v2609 = vunpack.c.h.b16 %v2525
      %v2610 = vunpack.c.l.b16 %v2526
      %v2611 = vunpack.c.h.b16 %v2526
      %v2612 = vunpack.c.l.b16 %v2527
      %v2613 = vunpack.c.h.b16 %v2527
      %v2614 = vunpack.c.l.b16 %v2528
      %v2615 = vunpack.c.h.b16 %v2528
      %v2616 = vunpack.c.l.b16 %v2529
      %v2617 = vunpack.c.h.b16 %v2529
      %v2618 = vunpack.c.l.b16 %v2530
      %v2619 = vunpack.c.h.b16 %v2530
      %v2620 = vunpack.c.l.b16 %v2531
      %v2621 = vunpack.c.h.b16 %v2531
      %v2622 = vunpack.c.l.b16 %v2532
      %v2623 = vunpack.c.h.b16 %v2532
      %v2624 = vunpack.c.l.b16 %v2533
      %v2625 = vunpack.c.h.b16 %v2533
      %v2626 = vunpack.c.l.b16 %v2534
      %v2627 = vunpack.c.h.b16 %v2534
      %v2628 = vunpack.c.l.b16 %v2535
      %v2629 = vunpack.c.h.b16 %v2535
      %v2630 = vunpack.c.l.b16 %v2536
      %v2631 = vunpack.c.h.b16 %v2536
      %v2632 = vunpack.c.l.b16 %v2537
      %v2633 = vunpack.c.h.b16 %v2537
      %v2634 = vpack.c.b16 %v2572, %v2570
      %v2635 = vpack.c.b16 %v2573, %v2571
      %v2636 = vpack.c.b16 %v2576, %v2574
      %v2637 = vpack.c.b16 %v2577, %v2575
      %v2638 = vpack.c.b16 %v2580, %v2578
      %v2639 = vpack.c.b16 %v2581, %v2579
      %v2640 = vpack.c.b16 %v2584, %v2582
      %v2641 = vpack.c.b16 %v2585, %v2583
      %v2642 = vpack.c.b16 %v2588, %v2586
      %v2643 = vpack.c.b16 %v2589, %v2587
      %v2644 = vpack.c.b16 %v2592, %v2590
      %v2645 = vpack.c.b16 %v2593, %v2591
      %v2646 = vpack.c.b16 %v2596, %v2594
      %v2647 = vpack.c.b16 %v2597, %v2595
      %v2648 = vpack.c.b16 %v2600, %v2598
      %v2649 = vpack.c.b16 %v2601, %v2599
      %v2650 = vpack.c.b16 %v2604, %v2602
      %v2651 = vpack.c.b16 %v2605, %v2603
      %v2652 = vpack.c.b16 %v2608, %v2606
      %v2653 = vpack.c.b16 %v2609, %v2607
      %v2654 = vpack.c.b16 %v2612, %v2610
      %v2655 = vpack.c.b16 %v2613, %v2611
      %v2656 = vpack.c.b16 %v2616, %v2614
      %v2657 = vpack.c.b16 %v2617, %v2615
      %v2658 = vpack.c.b16 %v2620, %v2618
      %v2659 = vpack.c.b16 %v2621, %v2619
      %v2660 = vpack.c.b16 %v2624, %v2622
      %v2661 = vpack.c.b16 %v2625, %v2623
      %v2662 = vpack.c.b16 %v2628, %v2626
      %v2663 = vpack.c.b16 %v2629, %v2627
      %v2664 = vpack.c.b16 %v2632, %v2630
      %v2665 = vpack.c.b16 %v2633, %v2631
      %2698 = vmatpush.bf16.msra.mxu0 %v2648
      %2699 = vmatpush.bf16.msra.mxu0 %v2646
      %2700 = vmatpush.bf16.msra.mxu0 %v2644
      %2701 = vmatpush.bf16.msra.mxu0 %v2642
      %2702 = vmatpush.bf16.msra.mxu0 %v2640
      %2703 = vmatpush.bf16.msra.mxu0 %v2638
      %2704 = vmatpush.bf16.msra.mxu0 %v2636
      %2705 = vmatpush.bf16.msra.mxu0 %v2634
      %2706 = vmatmul.bf16.gmra.mxu0 %v2504
      %v2707 = vpop.f32.mrf.mxu0
      %v2708 = vadd.f32 %v658, %v2707
      %v2709 = vpop.f32.mrf.mxu0
      %2710 = vdwg.mxu0
      %2711 = vmatpush.bf16.msra.mxu0 %v2664
      %2712 = vmatpush.bf16.msra.mxu0 %v2662
      %2713 = vmatpush.bf16.msra.mxu0 %v2660
      %2714 = vmatpush.bf16.msra.mxu0 %v2658
      %2715 = vmatpush.bf16.msra.mxu0 %v2656
      %2716 = vmatpush.bf16.msra.mxu0 %v2654
      %2717 = vmatpush.bf16.msra.mxu0 %v2652
      %2718 = vmatpush.bf16.msra.mxu0 %v2650
      %2719 = vmatmul.bf16.gmra.mxu0 %v2505
      %v2720 = vpop.f32.mrf.mxu0
      %v2721 = vadd.f32 %v2708, %v2720
      %v2722 = vpop.f32.mrf.mxu0
      %2723 = vdwg.mxu0
      %2724 = vmatpush.bf16.msra.mxu0 %v2649
      %2725 = vmatpush.bf16.msra.mxu0 %v2647
      %2726 = vmatpush.bf16.msra.mxu0 %v2645
      %2727 = vmatpush.bf16.msra.mxu0 %v2643
      %2728 = vmatpush.bf16.msra.mxu0 %v2641
      %2729 = vmatpush.bf16.msra.mxu0 %v2639
      %2730 = vmatpush.bf16.msra.mxu0 %v2637
      %2731 = vmatpush.bf16.msra.mxu0 %v2635
      %2732 = vmatmul.bf16.gmra.mxu0 %v2504
      %v2733 = vpop.f32.mrf.mxu0
      %v2734 = vadd.f32 %v659, %v2733
      %v2735 = vpop.f32.mrf.mxu0
      %2736 = vdwg.mxu0
      %2737 = vmatpush.bf16.msra.mxu0 %v2665
      %2738 = vmatpush.bf16.msra.mxu0 %v2663
      %2739 = vmatpush.bf16.msra.mxu0 %v2661
      %2740 = vmatpush.bf16.msra.mxu0 %v2659
      %2741 = vmatpush.bf16.msra.mxu0 %v2657
      %2742 = vmatpush.bf16.msra.mxu0 %v2655
      %2743 = vmatpush.bf16.msra.mxu0 %v2653
      %2744 = vmatpush.bf16.msra.mxu0 %v2651
      %2745 = vmatmul.bf16.gmra.mxu0 %v2505
      %v2746 = vpop.f32.mrf.mxu0
      %v2747 = vadd.f32 %v2734, %v2746
      %v2748 = vpop.f32.mrf.mxu0
      %2749 = vdwg.mxu0
      %v2750 = vmax.f32 %v2721, 0.0
      %v2751 = vmax.f32 %v2747, 0.0
      %v2752 = vperm.slane %v2750, 0
      %v2753 = vperm.slane %v2751, 0
      %2754 = vst [vmem:[#allocation1] ss:$4 sm:$0xff] %v163
      %v2755 = vld.sshfl [vmem:[#allocation1] sm:$0xff pattern:$0x73625140]
      %v2756 = vld.sshfl [vmem:[#allocation1 + $0x8] sm:$0xff pattern:$0x73625140]
      %v2759 = vmul.f32 %v2752, %v2755
      %v2760 = vmul.f32 %v2753, %v2756
      %v2761 = vsel %vm726, %v2759, 0.0
      %v2762 = vsel %vm726, %v2760, 0.0
      %v2763 = vadd.f32 %v2761, %v2762
      %2764 = vadd.xlane.f32.xlu0 %v2763
      %v2765 = vpop.xlane.xlu0 %2764
      %v2766 = vadd.f32 %v2765, %v164
      %v2767 = vstv %s2234
      %v2768 = vmul.f32 %v2767, %v2766
      %v2769 = vmul.f32 %v2768, 0.33333334
      %v2770 = vadd.f32 %v2213, %v2769
      %2772 = vset.pattern.permute.xlu0 0
      %2773 = vperm.xlu0 %2772, %v2770
      %v2774 = vpop.permute.xlu0 %2773
      %v2776 = vmul.f32 %v2774, %v181
      %v2777 = vmul.f32 %v2774, %v182
      %v2778 = vmul.f32 %v2774, %v187
      %v2779 = vmul.f32 %v2774, %v188
      %v2782 = vrot.slane %v2778, 1
      %v2783 = vrot.slane %v2779, 1
      %v2786 = vadd.f32 %v2776, %v2782
      %v2787 = vadd.f32 %v2777, %v2783
      %v2788 = vadd.f32 %v2786, %v202
      %v2789 = vadd.f32 %v2787, %v203
      %v2790 = vmax.f32 %v2788, 0.0
      %v2791 = vmax.f32 %v2789, 0.0
      %v2792 = vpack.c.bf16 %v2790, %v2790
      %v2793 = vpack.c.bf16 %v2791, %v2791
      %2794 = vmatpush.bf16.msra.mxu0 %v2400
      %2795 = vmatpush.bf16.msra.mxu0 %v2398
      %2796 = vmatpush.bf16.msra.mxu0 %v2396
      %2797 = vmatpush.bf16.msra.mxu0 %v2394
      %2798 = vmatpush.bf16.msra.mxu0 %v2392
      %2799 = vmatpush.bf16.msra.mxu0 %v2390
      %2800 = vmatpush.bf16.msra.mxu0 %v2388
      %2801 = vmatpush.bf16.msra.mxu0 %v2386
      %2802 = vmatmul.bf16.gmra.mxu0 %v2792
      %v2803 = vpop.f32.mrf.mxu0
      %v2804 = vadd.f32 %v405, %v2803
      %v2805 = vpop.f32.mrf.mxu0
      %2806 = vdwg.mxu0
      %2807 = vmatpush.bf16.msra.mxu0 %v2416
      %2808 = vmatpush.bf16.msra.mxu0 %v2414
      %2809 = vmatpush.bf16.msra.mxu0 %v2412
      %2810 = vmatpush.bf16.msra.mxu0 %v2410
      %2811 = vmatpush.bf16.msra.mxu0 %v2408
      %2812 = vmatpush.bf16.msra.mxu0 %v2406
      %2813 = vmatpush.bf16.msra.mxu0 %v2404
      %2814 = vmatpush.bf16.msra.mxu0 %v2402
      %2815 = vmatmul.bf16.gmra.mxu0 %v2793
      %v2816 = vpop.f32.mrf.mxu0
      %v2817 = vadd.f32 %v2804, %v2816
      %v2818 = vpop.f32.mrf.mxu0
      %2819 = vdwg.mxu0
      %2820 = vmatpush.bf16.msra.mxu0 %v2401
      %2821 = vmatpush.bf16.msra.mxu0 %v2399
      %2822 = vmatpush.bf16.msra.mxu0 %v2397
      %2823 = vmatpush.bf16.msra.mxu0 %v2395
      %2824 = vmatpush.bf16.msra.mxu0 %v2393
      %2825 = vmatpush.bf16.msra.mxu0 %v2391
      %2826 = vmatpush.bf16.msra.mxu0 %v2389
      %2827 = vmatpush.bf16.msra.mxu0 %v2387
      %2828 = vmatmul.bf16.gmra.mxu0 %v2792
      %v2829 = vpop.f32.mrf.mxu0
      %v2830 = vadd.f32 %v406, %v2829
      %v2831 = vpop.f32.mrf.mxu0
      %2832 = vdwg.mxu0
      %2833 = vmatpush.bf16.msra.mxu0 %v2417
      %2834 = vmatpush.bf16.msra.mxu0 %v2415
      %2835 = vmatpush.bf16.msra.mxu0 %v2413
      %2836 = vmatpush.bf16.msra.mxu0 %v2411
      %2837 = vmatpush.bf16.msra.mxu0 %v2409
      %2838 = vmatpush.bf16.msra.mxu0 %v2407
      %2839 = vmatpush.bf16.msra.mxu0 %v2405
      %2840 = vmatpush.bf16.msra.mxu0 %v2403
      %2841 = vmatmul.bf16.gmra.mxu0 %v2793
      %v2842 = vpop.f32.mrf.mxu0
      %v2843 = vadd.f32 %v2830, %v2842
      %v2844 = vpop.f32.mrf.mxu0
      %2845 = vdwg.mxu0
      %v2846 = vmax.f32 %v2817, 0.0
      %v2847 = vmax.f32 %v2843, 0.0
      %v2848 = vpack.c.bf16 %v2846, %v2846
      %v2849 = vpack.c.bf16 %v2847, %v2847
      %2850 = vmatpush.bf16.msra.mxu0 %v2648
      %2851 = vmatpush.bf16.msra.mxu0 %v2646
      %2852 = vmatpush.bf16.msra.mxu0 %v2644
      %2853 = vmatpush.bf16.msra.mxu0 %v2642
      %2854 = vmatpush.bf16.msra.mxu0 %v2640
      %2855 = vmatpush.bf16.msra.mxu0 %v2638
      %2856 = vmatpush.bf16.msra.mxu0 %v2636
      %2857 = vmatpush.bf16.msra.mxu0 %v2634
      %2858 = vmatmul.bf16.gmra.mxu0 %v2848
      %v2859 = vpop.f32.mrf.mxu0
      %v2860 = vadd.f32 %v658, %v2859
      %v2861 = vpop.f32.mrf.mxu0
      %2862 = vdwg.mxu0
      %2863 = vmatpush.bf16.msra.mxu0 %v2664
      %2864 = vmatpush.bf16.msra.mxu0 %v2662
      %2865 = vmatpush.bf16.msra.mxu0 %v2660
      %2866 = vmatpush.bf16.msra.mxu0 %v2658
      %2867 = vmatpush.bf16.msra.mxu0 %v2656
      %2868 = vmatpush.bf16.msra.mxu0 %v2654
      %2869 = vmatpush.bf16.msra.mxu0 %v2652
      %2870 = vmatpush.bf16.msra.mxu0 %v2650
      %2871 = vmatmul.bf16.gmra.mxu0 %v2849
      %v2872 = vpop.f32.mrf.mxu0
      %v2873 = vadd.f32 %v2860, %v2872
      %v2874 = vpop.f32.mrf.mxu0
      %2875 = vdwg.mxu0
      %2876 = vmatpush.bf16.msra.mxu0 %v2649
      %2877 = vmatpush.bf16.msra.mxu0 %v2647
      %2878 = vmatpush.bf16.msra.mxu0 %v2645
      %2879 = vmatpush.bf16.msra.mxu0 %v2643
      %2880 = vmatpush.bf16.msra.mxu0 %v2641
      %2881 = vmatpush.bf16.msra.mxu0 %v2639
      %2882 = vmatpush.bf16.msra.mxu0 %v2637
      %2883 = vmatpush.bf16.msra.mxu0 %v2635
      %2884 = vmatmul.bf16.gmra.mxu0 %v2848
      %v2885 = vpop.f32.mrf.mxu0
      %v2886 = vadd.f32 %v659, %v2885
      %v2887 = vpop.f32.mrf.mxu0
      %2888 = vdwg.mxu0
      %2889 = vmatpush.bf16.msra.mxu0 %v2665
      %2890 = vmatpush.bf16.msra.mxu0 %v2663
      %2891 = vmatpush.bf16.msra.mxu0 %v2661
      %2892 = vmatpush.bf16.msra.mxu0 %v2659
      %2893 = vmatpush.bf16.msra.mxu0 %v2657
      %2894 = vmatpush.bf16.msra.mxu0 %v2655
      %2895 = vmatpush.bf16.msra.mxu0 %v2653
      %2896 = vmatpush.bf16.msra.mxu0 %v2651
      %2897 = vmatmul.bf16.gmra.mxu0 %v2849
      %v2898 = vpop.f32.mrf.mxu0
      %v2899 = vadd.f32 %v2886, %v2898
      %v2900 = vpop.f32.mrf.mxu0
      %2901 = vdwg.mxu0
      %v2902 = vmax.f32 %v2873, 0.0
      %v2903 = vmax.f32 %v2899, 0.0
      %v2904 = vperm.slane %v2902, 0
      %v2905 = vperm.slane %v2903, 0
      %2906 = vst [vmem:[#allocation1] ss:$4 sm:$0xff] %v163
      %v2907 = vld.sshfl [vmem:[#allocation1] sm:$0xff pattern:$0x73625140]
      %v2908 = vld.sshfl [vmem:[#allocation1 + $0x8] sm:$0xff pattern:$0x73625140]
      %v2911 = vmul.f32 %v2904, %v2907
      %v2912 = vmul.f32 %v2905, %v2908
      %v2913 = vsel %vm726, %v2911, 0.0
      %v2914 = vsel %vm726, %v2912, 0.0
      %v2915 = vadd.f32 %v2913, %v2914
      %2916 = vadd.xlane.f32.xlu0 %v2915
      %v2917 = vpop.xlane.xlu0 %2916
      %v2918 = vadd.f32 %v2917, %v164
      %v2919 = vmul.f32 %v2766, 0.33333334
      %v2920 = vsub.f32 %v2918, %v2919
      %v2921 = vmul.f32 %v2767, %v2920
      %v2922 = vadd.f32 %v2213, %v2921
      %2924 = vset.pattern.permute.xlu0 0
      %2925 = vperm.xlu0 %2924, %v2922
      %v2926 = vpop.permute.xlu0 %2925
      %v2928 = vmul.f32 %v2926, %v181
      %v2929 = vmul.f32 %v2926, %v182
      %v2930 = vmul.f32 %v2926, %v187
      %v2931 = vmul.f32 %v2926, %v188
      %v2934 = vrot.slane %v2930, 1
      %v2935 = vrot.slane %v2931, 1
      %v2938 = vadd.f32 %v2928, %v2934
      %v2939 = vadd.f32 %v2929, %v2935
      %v2940 = vadd.f32 %v2938, %v202
      %v2941 = vadd.f32 %v2939, %v203
      %v2942 = vmax.f32 %v2940, 0.0
      %v2943 = vmax.f32 %v2941, 0.0
      %v2944 = vpack.c.bf16 %v2942, %v2942
      %v2945 = vpack.c.bf16 %v2943, %v2943
      %2946 = vmatpush.bf16.msra.mxu0 %v2400
      %2947 = vmatpush.bf16.msra.mxu0 %v2398
      %2948 = vmatpush.bf16.msra.mxu0 %v2396
      %2949 = vmatpush.bf16.msra.mxu0 %v2394
      %2950 = vmatpush.bf16.msra.mxu0 %v2392
      %2951 = vmatpush.bf16.msra.mxu0 %v2390
      %2952 = vmatpush.bf16.msra.mxu0 %v2388
      %2953 = vmatpush.bf16.msra.mxu0 %v2386
      %2954 = vmatmul.bf16.gmra.mxu0 %v2944
      %v2955 = vpop.f32.mrf.mxu0
      %v2956 = vadd.f32 %v405, %v2955
      %v2957 = vpop.f32.mrf.mxu0
      %2958 = vdwg.mxu0
      %2959 = vmatpush.bf16.msra.mxu0 %v2416
      %2960 = vmatpush.bf16.msra.mxu0 %v2414
      %2961 = vmatpush.bf16.msra.mxu0 %v2412
      %2962 = vmatpush.bf16.msra.mxu0 %v2410
      %2963 = vmatpush.bf16.msra.mxu0 %v2408
      %2964 = vmatpush.bf16.msra.mxu0 %v2406
      %2965 = vmatpush.bf16.msra.mxu0 %v2404
      %2966 = vmatpush.bf16.msra.mxu0 %v2402
      %2967 = vmatmul.bf16.gmra.mxu0 %v2945
      %v2968 = vpop.f32.mrf.mxu0
      %v2969 = vadd.f32 %v2956, %v2968
      %v2970 = vpop.f32.mrf.mxu0
      %2971 = vdwg.mxu0
      %2972 = vmatpush.bf16.msra.mxu0 %v2401
      %2973 = vmatpush.bf16.msra.mxu0 %v2399
      %2974 = vmatpush.bf16.msra.mxu0 %v2397
      %2975 = vmatpush.bf16.msra.mxu0 %v2395
      %2976 = vmatpush.bf16.msra.mxu0 %v2393
      %2977 = vmatpush.bf16.msra.mxu0 %v2391
      %2978 = vmatpush.bf16.msra.mxu0 %v2389
      %2979 = vmatpush.bf16.msra.mxu0 %v2387
      %2980 = vmatmul.bf16.gmra.mxu0 %v2944
      %v2981 = vpop.f32.mrf.mxu0
      %v2982 = vadd.f32 %v406, %v2981
      %v2983 = vpop.f32.mrf.mxu0
      %2984 = vdwg.mxu0
      %2985 = vmatpush.bf16.msra.mxu0 %v2417
      %2986 = vmatpush.bf16.msra.mxu0 %v2415
      %2987 = vmatpush.bf16.msra.mxu0 %v2413
      %2988 = vmatpush.bf16.msra.mxu0 %v2411
      %2989 = vmatpush.bf16.msra.mxu0 %v2409
      %2990 = vmatpush.bf16.msra.mxu0 %v2407
      %2991 = vmatpush.bf16.msra.mxu0 %v2405
      %2992 = vmatpush.bf16.msra.mxu0 %v2403
      %2993 = vmatmul.bf16.gmra.mxu0 %v2945
      %v2994 = vpop.f32.mrf.mxu0
      %v2995 = vadd.f32 %v2982, %v2994
      %v2996 = vpop.f32.mrf.mxu0
      %2997 = vdwg.mxu0
      %v2998 = vmax.f32 %v2969, 0.0
      %v2999 = vmax.f32 %v2995, 0.0
      %v3000 = vpack.c.bf16 %v2998, %v2998
      %v3001 = vpack.c.bf16 %v2999, %v2999
      %3002 = vmatpush.bf16.msra.mxu0 %v2648
      %3003 = vmatpush.bf16.msra.mxu0 %v2646
      %3004 = vmatpush.bf16.msra.mxu0 %v2644
      %3005 = vmatpush.bf16.msra.mxu0 %v2642
      %3006 = vmatpush.bf16.msra.mxu0 %v2640
      %3007 = vmatpush.bf16.msra.mxu0 %v2638
      %3008 = vmatpush.bf16.msra.mxu0 %v2636
      %3009 = vmatpush.bf16.msra.mxu0 %v2634
      %3010 = vmatmul.bf16.gmra.mxu0 %v3000
      %v3011 = vpop.f32.mrf.mxu0
      %v3012 = vadd.f32 %v658, %v3011
      %v3013 = vpop.f32.mrf.mxu0
      %3014 = vdwg.mxu0
      %3015 = vmatpush.bf16.msra.mxu0 %v2664
      %3016 = vmatpush.bf16.msra.mxu0 %v2662
      %3017 = vmatpush.bf16.msra.mxu0 %v2660
      %3018 = vmatpush.bf16.msra.mxu0 %v2658
      %3019 = vmatpush.bf16.msra.mxu0 %v2656
      %3020 = vmatpush.bf16.msra.mxu0 %v2654
      %3021 = vmatpush.bf16.msra.mxu0 %v2652
      %3022 = vmatpush.bf16.msra.mxu0 %v2650
      %3023 = vmatmul.bf16.gmra.mxu0 %v3001
      %v3024 = vpop.f32.mrf.mxu0
      %v3025 = vadd.f32 %v3012, %v3024
      %v3026 = vpop.f32.mrf.mxu0
      %3027 = vdwg.mxu0
      %3028 = vmatpush.bf16.msra.mxu0 %v2649
      %3029 = vmatpush.bf16.msra.mxu0 %v2647
      %3030 = vmatpush.bf16.msra.mxu0 %v2645
      %3031 = vmatpush.bf16.msra.mxu0 %v2643
      %3032 = vmatpush.bf16.msra.mxu0 %v2641
      %3033 = vmatpush.bf16.msra.mxu0 %v2639
      %3034 = vmatpush.bf16.msra.mxu0 %v2637
      %3035 = vmatpush.bf16.msra.mxu0 %v2635
      %3036 = vmatmul.bf16.gmra.mxu0 %v3000
      %v3037 = vpop.f32.mrf.mxu0
      %v3038 = vadd.f32 %v659, %v3037
      %v3039 = vpop.f32.mrf.mxu0
      %3040 = vdwg.mxu0
      %3041 = vmatpush.bf16.msra.mxu0 %v2665
      %3042 = vmatpush.bf16.msra.mxu0 %v2663
      %3043 = vmatpush.bf16.msra.mxu0 %v2661
      %3044 = vmatpush.bf16.msra.mxu0 %v2659
      %3045 = vmatpush.bf16.msra.mxu0 %v2657
      %3046 = vmatpush.bf16.msra.mxu0 %v2655
      %3047 = vmatpush.bf16.msra.mxu0 %v2653
      %3048 = vmatpush.bf16.msra.mxu0 %v2651
      %3049 = vmatmul.bf16.gmra.mxu0 %v3001
      %v3050 = vpop.f32.mrf.mxu0
      %v3051 = vadd.f32 %v3038, %v3050
      %v3052 = vpop.f32.mrf.mxu0
      %3053 = vdwg.mxu0
      %v3054 = vmax.f32 %v3025, 0.0
      %v3055 = vmax.f32 %v3051, 0.0
      %v3056 = vperm.slane %v3054, 0
      %v3057 = vperm.slane %v3055, 0
      %3058 = vst [vmem:[#allocation1] ss:$4 sm:$0xff] %v163
      %v3059 = vld.sshfl [vmem:[#allocation1] sm:$0xff pattern:$0x73625140]
      %v3060 = vld.sshfl [vmem:[#allocation1 + $0x8] sm:$0xff pattern:$0x73625140]
      %v3063 = vmul.f32 %v3056, %v3059
      %v3064 = vmul.f32 %v3057, %v3060
      %v3065 = vsel %vm726, %v3063, 0.0
      %v3066 = vsel %vm726, %v3064, 0.0
      %v3067 = vadd.f32 %v3065, %v3066
      %3068 = vadd.xlane.f32.xlu0 %v3067
      %v3069 = vpop.xlane.xlu0 %3068
      %v3070 = vadd.f32 %v3069, %v164
      %v3071 = vsub.f32 %v2766, %v2918
      %v3072 = vadd.f32 %v3071, %v3070
      %v3073 = vmul.f32 %v2767, %v3072
      %v3074 = vadd.f32 %v2213, %v3073
      %3076 = vset.pattern.permute.xlu0 0
      %3077 = vperm.xlu0 %3076, %v3074
      %v3078 = vpop.permute.xlu0 %3077
      %v3080 = vmul.f32 %v3078, %v181
      %v3081 = vmul.f32 %v3078, %v182
      %v3082 = vmul.f32 %v3078, %v187
      %v3083 = vmul.f32 %v3078, %v188
      %v3086 = vrot.slane %v3082, 1
      %v3087 = vrot.slane %v3083, 1
      %v3090 = vadd.f32 %v3080, %v3086
      %v3091 = vadd.f32 %v3081, %v3087
      %v3092 = vadd.f32 %v3090, %v202
      %v3093 = vadd.f32 %v3091, %v203
      %v3094 = vmax.f32 %v3092, 0.0
      %v3095 = vmax.f32 %v3093, 0.0
      %v3096 = vpack.c.bf16 %v3094, %v3094
      %v3097 = vpack.c.bf16 %v3095, %v3095
      %3098 = vmatpush.bf16.msra.mxu0 %v2400
      %3099 = vmatpush.bf16.msra.mxu0 %v2398
      %3100 = vmatpush.bf16.msra.mxu0 %v2396
      %3101 = vmatpush.bf16.msra.mxu0 %v2394
      %3102 = vmatpush.bf16.msra.mxu0 %v2392
      %3103 = vmatpush.bf16.msra.mxu0 %v2390
      %3104 = vmatpush.bf16.msra.mxu0 %v2388
      %3105 = vmatpush.bf16.msra.mxu0 %v2386
      %3106 = vmatmul.bf16.gmra.mxu0 %v3096
      %v3107 = vpop.f32.mrf.mxu0
      %v3108 = vadd.f32 %v405, %v3107
      %v3109 = vpop.f32.mrf.mxu0
      %3110 = vdwg.mxu0
      %3111 = vmatpush.bf16.msra.mxu0 %v2416
      %3112 = vmatpush.bf16.msra.mxu0 %v2414
      %3113 = vmatpush.bf16.msra.mxu0 %v2412
      %3114 = vmatpush.bf16.msra.mxu0 %v2410
      %3115 = vmatpush.bf16.msra.mxu0 %v2408
      %3116 = vmatpush.bf16.msra.mxu0 %v2406
      %3117 = vmatpush.bf16.msra.mxu0 %v2404
      %3118 = vmatpush.bf16.msra.mxu0 %v2402
      %3119 = vmatmul.bf16.gmra.mxu0 %v3097
      %v3120 = vpop.f32.mrf.mxu0
      %v3121 = vadd.f32 %v3108, %v3120
      %v3122 = vpop.f32.mrf.mxu0
      %3123 = vdwg.mxu0
      %3124 = vmatpush.bf16.msra.mxu0 %v2401
      %3125 = vmatpush.bf16.msra.mxu0 %v2399
      %3126 = vmatpush.bf16.msra.mxu0 %v2397
      %3127 = vmatpush.bf16.msra.mxu0 %v2395
      %3128 = vmatpush.bf16.msra.mxu0 %v2393
      %3129 = vmatpush.bf16.msra.mxu0 %v2391
      %3130 = vmatpush.bf16.msra.mxu0 %v2389
      %3131 = vmatpush.bf16.msra.mxu0 %v2387
      %3132 = vmatmul.bf16.gmra.mxu0 %v3096
      %v3133 = vpop.f32.mrf.mxu0
      %v3134 = vadd.f32 %v406, %v3133
      %v3135 = vpop.f32.mrf.mxu0
      %3136 = vdwg.mxu0
      %3137 = vmatpush.bf16.msra.mxu0 %v2417
      %3138 = vmatpush.bf16.msra.mxu0 %v2415
      %3139 = vmatpush.bf16.msra.mxu0 %v2413
      %3140 = vmatpush.bf16.msra.mxu0 %v2411
      %3141 = vmatpush.bf16.msra.mxu0 %v2409
      %3142 = vmatpush.bf16.msra.mxu0 %v2407
      %3143 = vmatpush.bf16.msra.mxu0 %v2405
      %3144 = vmatpush.bf16.msra.mxu0 %v2403
      %3145 = vmatmul.bf16.gmra.mxu0 %v3097
      %v3146 = vpop.f32.mrf.mxu0
      %v3147 = vadd.f32 %v3134, %v3146
      %v3148 = vpop.f32.mrf.mxu0
      %3149 = vdwg.mxu0
      %v3150 = vmax.f32 %v3121, 0.0
      %v3151 = vmax.f32 %v3147, 0.0
      %v3152 = vpack.c.bf16 %v3150, %v3150
      %v3153 = vpack.c.bf16 %v3151, %v3151
      %3154 = vmatpush.bf16.msra.mxu0 %v2648
      %3155 = vmatpush.bf16.msra.mxu0 %v2646
      %3156 = vmatpush.bf16.msra.mxu0 %v2644
      %3157 = vmatpush.bf16.msra.mxu0 %v2642
      %3158 = vmatpush.bf16.msra.mxu0 %v2640
      %3159 = vmatpush.bf16.msra.mxu0 %v2638
      %3160 = vmatpush.bf16.msra.mxu0 %v2636
      %3161 = vmatpush.bf16.msra.mxu0 %v2634
      %3162 = vmatmul.bf16.gmra.mxu0 %v3152
      %v3163 = vpop.f32.mrf.mxu0
      %v3164 = vadd.f32 %v658, %v3163
      %v3165 = vpop.f32.mrf.mxu0
      %3166 = vdwg.mxu0
      %3167 = vmatpush.bf16.msra.mxu0 %v2664
      %3168 = vmatpush.bf16.msra.mxu0 %v2662
      %3169 = vmatpush.bf16.msra.mxu0 %v2660
      %3170 = vmatpush.bf16.msra.mxu0 %v2658
      %3171 = vmatpush.bf16.msra.mxu0 %v2656
      %3172 = vmatpush.bf16.msra.mxu0 %v2654
      %3173 = vmatpush.bf16.msra.mxu0 %v2652
      %3174 = vmatpush.bf16.msra.mxu0 %v2650
      %3175 = vmatmul.bf16.gmra.mxu0 %v3153
      %v3176 = vpop.f32.mrf.mxu0
      %v3177 = vadd.f32 %v3164, %v3176
      %v3178 = vpop.f32.mrf.mxu0
      %3179 = vdwg.mxu0
      %3180 = vmatpush.bf16.msra.mxu0 %v2649
      %3181 = vmatpush.bf16.msra.mxu0 %v2647
      %3182 = vmatpush.bf16.msra.mxu0 %v2645
      %3183 = vmatpush.bf16.msra.mxu0 %v2643
      %3184 = vmatpush.bf16.msra.mxu0 %v2641
      %3185 = vmatpush.bf16.msra.mxu0 %v2639
      %3186 = vmatpush.bf16.msra.mxu0 %v2637
      %3187 = vmatpush.bf16.msra.mxu0 %v2635
      %3188 = vmatmul.bf16.gmra.mxu0 %v3152
      %v3189 = vpop.f32.mrf.mxu0
      %v3190 = vadd.f32 %v659, %v3189
      %v3191 = vpop.f32.mrf.mxu0
      %3192 = vdwg.mxu0
      %3193 = vmatpush.bf16.msra.mxu0 %v2665
      %3194 = vmatpush.bf16.msra.mxu0 %v2663
      %3195 = vmatpush.bf16.msra.mxu0 %v2661
      %3196 = vmatpush.bf16.msra.mxu0 %v2659
      %3197 = vmatpush.bf16.msra.mxu0 %v2657
      %3198 = vmatpush.bf16.msra.mxu0 %v2655
      %3199 = vmatpush.bf16.msra.mxu0 %v2653
      %3200 = vmatpush.bf16.msra.mxu0 %v2651
      %3201 = vmatmul.bf16.gmra.mxu0 %v3153
      %v3202 = vpop.f32.mrf.mxu0
      %v3203 = vadd.f32 %v3190, %v3202
      %v3204 = vpop.f32.mrf.mxu0
      %3205 = vdwg.mxu0
      %v3206 = vmax.f32 %v3177, 0.0
      %v3207 = vmax.f32 %v3203, 0.0
      %v3208 = vperm.slane %v3206, 0
      %v3209 = vperm.slane %v3207, 0
      %3210 = vst [vmem:[#allocation1] ss:$4 sm:$0xff] %v163
      %v3211 = vld.sshfl [vmem:[#allocation1] sm:$0xff pattern:$0x73625140]
      %v3212 = vld.sshfl [vmem:[#allocation1 + $0x8] sm:$0xff pattern:$0x73625140]
      %v3215 = vmul.f32 %v3208, %v3211
      %v3216 = vmul.f32 %v3209, %v3212
      %v3217 = vsel %vm726, %v3215, 0.0
      %v3218 = vsel %vm726, %v3216, 0.0
      %v3219 = vadd.f32 %v3217, %v3218
      %3220 = vadd.xlane.f32.xlu0 %v3219
      %v3221 = vpop.xlane.xlu0 %3220
      %v3222 = vadd.f32 %v3221, %v164
      %s3223 = smul.f32 %s2234, 0.125
      %v3224 = vadd.f32 %v2918, %v3070
      %v3225 = vmul.f32 %v3224, 3.0
      %v3226 = vadd.f32 %v2766, %v3225
      %v3227 = vadd.f32 %v3226, %v3222
      %v3228 = vstv %s3223
      %v3229 = vmul.f32 %v3228, %v3227
      %v3230 = vadd.f32 %v2213, %v3229
      %s3231 = sld [smem:[#allocation6 + %s2233]]
      %p3232 = scmp.ge.s32.totalorder %s3231, 0
      // Predicated region
      $region97: #{tpu_custom_call.1} parent=85 // pred_check
        %p3233 = pneg %p3232
      $region98: #{tpu_custom_call.1} parent=85 // pred_check_branch
        %3235 = sbr.rel (%p3233) target = $region100
      $region99: #{tpu_custom_call.1} parent=85 // pred_region
        %s3236 = sld [smem:[#allocation7 + %s2233]]
        %v3237 = vsub.f32 %v3230, %v2213
        %v3238 = vstv %s3236
        %v3239 = vmul.f32 %v3238, %v3237
        %v3240 = vadd.f32 %v2213, %v3239
        %s3241 = scalar_lea.vmem %s12, %s3231
        %vm3242 = vcmask 0
        %3243 = vst.msk [vmem:[%s3241] sm:$0x1] %vm3242, %v3240
        %3245 = vrot.lane.b32.xlu0 %v3240, 1
        %v3246 = vpop.permute.xlu0 %3245
        %vm3248 = vcmask 9225
        %3249 = vst.msk [vmem:[%s3241 - $0x1] sm:$0x2] %vm3248, %v3246
      $region100: #{tpu_custom_call.1} parent=85 // pred_fallthru
        _
      %s3250 = sadd.s32 %s173, 3
      %s3251 = sld [smem:[#allocation2 + %s3250]]
      %3253 = vset.pattern.permute.xlu0 0
      %3254 = vperm.xlu0 %3253, %v3230
      %v3255 = vpop.permute.xlu0 %3254
      %v3257 = vmul.f32 %v3255, %v181
      %v3258 = vmul.f32 %v3255, %v182
      %v3259 = vmul.f32 %v3255, %v187
      %v3260 = vmul.f32 %v3255, %v188
      %v3263 = vrot.slane %v3259, 1
      %v3264 = vrot.slane %v3260, 1
      %v3267 = vadd.f32 %v3257, %v3263
      %v3268 = vadd.f32 %v3258, %v3264
      %v3269 = vadd.f32 %v3267, %v202
      %v3270 = vadd.f32 %v3268, %v203
      %v3271 = vmax.f32 %v3269, 0.0
      %v3272 = vmax.f32 %v3270, 0.0
      %v3273 = vpack.c.bf16 %v3271, %v3271
      %v3274 = vpack.c.bf16 %v3272, %v3272
      %v3275 = vld [vmem:[#allocation12] sm:$0xff]
      %v3276 = vld [vmem:[#allocation12 + $0x8] sm:$0xff]
      %v3277 = vld [vmem:[#allocation12 + $0x10] sm:$0xff]
      %v3278 = vld [vmem:[#allocation12 + $0x18] sm:$0xff]
      %v3279 = vld [vmem:[#allocation12 + $0x20] sm:$0xff]
      %v3280 = vld [vmem:[#allocation12 + $0x28] sm:$0xff]
      %v3281 = vld [vmem:[#allocation12 + $0x30] sm:$0xff]
      %v3282 = vld [vmem:[#allocation12 + $0x38] sm:$0xff]
      %v3283 = vld [vmem:[#allocation12 + $0x40] sm:$0xff]
      %v3284 = vld [vmem:[#allocation12 + $0x48] sm:$0xff]
      %v3285 = vld [vmem:[#allocation12 + $0x50] sm:$0xff]
      %v3286 = vld [vmem:[#allocation12 + $0x58] sm:$0xff]
      %v3287 = vld [vmem:[#allocation12 + $0x60] sm:$0xff]
      %v3288 = vld [vmem:[#allocation12 + $0x68] sm:$0xff]
      %v3289 = vld [vmem:[#allocation12 + $0x70] sm:$0xff]
      %v3290 = vld [vmem:[#allocation12 + $0x78] sm:$0xff]
      %v3291 = vld [vmem:[#allocation12 + $0x80] sm:$0xff]
      %v3292 = vld [vmem:[#allocation12 + $0x88] sm:$0xff]
      %v3293 = vld [vmem:[#allocation12 + $0x90] sm:$0xff]
      %v3294 = vld [vmem:[#allocation12 + $0x98] sm:$0xff]
      %v3295 = vld [vmem:[#allocation12 + $0xa0] sm:$0xff]
      %v3296 = vld [vmem:[#allocation12 + $0xa8] sm:$0xff]
      %v3297 = vld [vmem:[#allocation12 + $0xb0] sm:$0xff]
      %v3298 = vld [vmem:[#allocation12 + $0xb8] sm:$0xff]
      %v3299 = vld [vmem:[#allocation12 + $0xc0] sm:$0xff]
      %v3300 = vld [vmem:[#allocation12 + $0xc8] sm:$0xff]
      %v3301 = vld [vmem:[#allocation12 + $0xd0] sm:$0xff]
      %v3302 = vld [vmem:[#allocation12 + $0xd8] sm:$0xff]
      %v3303 = vld [vmem:[#allocation12 + $0xe0] sm:$0xff]
      %v3304 = vld [vmem:[#allocation12 + $0xe8] sm:$0xff]
      %v3305 = vld [vmem:[#allocation12 + $0xf0] sm:$0xff]
      %v3306 = vld [vmem:[#allocation12 + $0xf8] sm:$0xff]
      %v3339 = vunpack.c.l.b16 %v3275
      %v3340 = vunpack.c.h.b16 %v3275
      %v3341 = vunpack.c.l.b16 %v3276
      %v3342 = vunpack.c.h.b16 %v3276
      %v3343 = vunpack.c.l.b16 %v3277
      %v3344 = vunpack.c.h.b16 %v3277
      %v3345 = vunpack.c.l.b16 %v3278
      %v3346 = vunpack.c.h.b16 %v3278
      %v3347 = vunpack.c.l.b16 %v3279
      %v3348 = vunpack.c.h.b16 %v3279
      %v3349 = vunpack.c.l.b16 %v3280
      %v3350 = vunpack.c.h.b16 %v3280
      %v3351 = vunpack.c.l.b16 %v3281
      %v3352 = vunpack.c.h.b16 %v3281
      %v3353 = vunpack.c.l.b16 %v3282
      %v3354 = vunpack.c.h.b16 %v3282
      %v3355 = vunpack.c.l.b16 %v3283
      %v3356 = vunpack.c.h.b16 %v3283
      %v3357 = vunpack.c.l.b16 %v3284
      %v3358 = vunpack.c.h.b16 %v3284
      %v3359 = vunpack.c.l.b16 %v3285
      %v3360 = vunpack.c.h.b16 %v3285
      %v3361 = vunpack.c.l.b16 %v3286
      %v3362 = vunpack.c.h.b16 %v3286
      %v3363 = vunpack.c.l.b16 %v3287
      %v3364 = vunpack.c.h.b16 %v3287
      %v3365 = vunpack.c.l.b16 %v3288
      %v3366 = vunpack.c.h.b16 %v3288
      %v3367 = vunpack.c.l.b16 %v3289
      %v3368 = vunpack.c.h.b16 %v3289
      %v3369 = vunpack.c.l.b16 %v3290
      %v3370 = vunpack.c.h.b16 %v3290
      %v3371 = vunpack.c.l.b16 %v3291
      %v3372 = vunpack.c.h.b16 %v3291
      %v3373 = vunpack.c.l.b16 %v3292
      %v3374 = vunpack.c.h.b16 %v3292
      %v3375 = vunpack.c.l.b16 %v3293
      %v3376 = vunpack.c.h.b16 %v3293
      %v3377 = vunpack.c.l.b16 %v3294
      %v3378 = vunpack.c.h.b16 %v3294
      %v3379 = vunpack.c.l.b16 %v3295
      %v3380 = vunpack.c.h.b16 %v3295
      %v3381 = vunpack.c.l.b16 %v3296
      %v3382 = vunpack.c.h.b16 %v3296
      %v3383 = vunpack.c.l.b16 %v3297
      %v3384 = vunpack.c.h.b16 %v3297
      %v3385 = vunpack.c.l.b16 %v3298
      %v3386 = vunpack.c.h.b16 %v3298
      %v3387 = vunpack.c.l.b16 %v3299
      %v3388 = vunpack.c.h.b16 %v3299
      %v3389 = vunpack.c.l.b16 %v3300
      %v3390 = vunpack.c.h.b16 %v3300
      %v3391 = vunpack.c.l.b16 %v3301
      %v3392 = vunpack.c.h.b16 %v3301
      %v3393 = vunpack.c.l.b16 %v3302
      %v3394 = vunpack.c.h.b16 %v3302
      %v3395 = vunpack.c.l.b16 %v3303
      %v3396 = vunpack.c.h.b16 %v3303
      %v3397 = vunpack.c.l.b16 %v3304
      %v3398 = vunpack.c.h.b16 %v3304
      %v3399 = vunpack.c.l.b16 %v3305
      %v3400 = vunpack.c.h.b16 %v3305
      %v3401 = vunpack.c.l.b16 %v3306
      %v3402 = vunpack.c.h.b16 %v3306
      %v3403 = vpack.c.b16 %v3341, %v3339
      %v3404 = vpack.c.b16 %v3342, %v3340
      %v3405 = vpack.c.b16 %v3345, %v3343
      %v3406 = vpack.c.b16 %v3346, %v3344
      %v3407 = vpack.c.b16 %v3349, %v3347
      %v3408 = vpack.c.b16 %v3350, %v3348
      %v3409 = vpack.c.b16 %v3353, %v3351
      %v3410 = vpack.c.b16 %v3354, %v3352
      %v3411 = vpack.c.b16 %v3357, %v3355
      %v3412 = vpack.c.b16 %v3358, %v3356
      %v3413 = vpack.c.b16 %v3361, %v3359
      %v3414 = vpack.c.b16 %v3362, %v3360
      %v3415 = vpack.c.b16 %v3365, %v3363
      %v3416 = vpack.c.b16 %v3366, %v3364
      %v3417 = vpack.c.b16 %v3369, %v3367
      %v3418 = vpack.c.b16 %v3370, %v3368
      %v3419 = vpack.c.b16 %v3373, %v3371
      %v3420 = vpack.c.b16 %v3374, %v3372
      %v3421 = vpack.c.b16 %v3377, %v3375
      %v3422 = vpack.c.b16 %v3378, %v3376
      %v3423 = vpack.c.b16 %v3381, %v3379
      %v3424 = vpack.c.b16 %v3382, %v3380
      %v3425 = vpack.c.b16 %v3385, %v3383
      %v3426 = vpack.c.b16 %v3386, %v3384
      %v3427 = vpack.c.b16 %v3389, %v3387
      %v3428 = vpack.c.b16 %v3390, %v3388
      %v3429 = vpack.c.b16 %v3393, %v3391
      %v3430 = vpack.c.b16 %v3394, %v3392
      %v3431 = vpack.c.b16 %v3397, %v3395
      %v3432 = vpack.c.b16 %v3398, %v3396
      %v3433 = vpack.c.b16 %v3401, %v3399
      %v3434 = vpack.c.b16 %v3402, %v3400
      %3467 = vmatpush.bf16.msra.mxu0 %v3417
      %3468 = vmatpush.bf16.msra.mxu0 %v3415
      %3469 = vmatpush.bf16.msra.mxu0 %v3413
      %3470 = vmatpush.bf16.msra.mxu0 %v3411
      %3471 = vmatpush.bf16.msra.mxu0 %v3409
      %3472 = vmatpush.bf16.msra.mxu0 %v3407
      %3473 = vmatpush.bf16.msra.mxu0 %v3405
      %3474 = vmatpush.bf16.msra.mxu0 %v3403
      %3475 = vmatmul.bf16.gmra.mxu0 %v3273
      %v3476 = vpop.f32.mrf.mxu0
      %v3477 = vadd.f32 %v405, %v3476
      %v3478 = vpop.f32.mrf.mxu0
      %3479 = vdwg.mxu0
      %3480 = vmatpush.bf16.msra.mxu0 %v3433
      %3481 = vmatpush.bf16.msra.mxu0 %v3431
      %3482 = vmatpush.bf16.msra.mxu0 %v3429
      %3483 = vmatpush.bf16.msra.mxu0 %v3427
      %3484 = vmatpush.bf16.msra.mxu0 %v3425
      %3485 = vmatpush.bf16.msra.mxu0 %v3423
      %3486 = vmatpush.bf16.msra.mxu0 %v3421
      %3487 = vmatpush.bf16.msra.mxu0 %v3419
      %3488 = vmatmul.bf16.gmra.mxu0 %v3274
      %v3489 = vpop.f32.mrf.mxu0
      %v3490 = vadd.f32 %v3477, %v3489
      %v3491 = vpop.f32.mrf.mxu0
      %3492 = vdwg.mxu0
      %3493 = vmatpush.bf16.msra.mxu0 %v3418
      %3494 = vmatpush.bf16.msra.mxu0 %v3416
      %3495 = vmatpush.bf16.msra.mxu0 %v3414
      %3496 = vmatpush.bf16.msra.mxu0 %v3412
      %3497 = vmatpush.bf16.msra.mxu0 %v3410
      %3498 = vmatpush.bf16.msra.mxu0 %v3408
      %3499 = vmatpush.bf16.msra.mxu0 %v3406
      %3500 = vmatpush.bf16.msra.mxu0 %v3404
      %3501 = vmatmul.bf16.gmra.mxu0 %v3273
      %v3502 = vpop.f32.mrf.mxu0
      %v3503 = vadd.f32 %v406, %v3502
      %v3504 = vpop.f32.mrf.mxu0
      %3505 = vdwg.mxu0
      %3506 = vmatpush.bf16.msra.mxu0 %v3434
      %3507 = vmatpush.bf16.msra.mxu0 %v3432
      %3508 = vmatpush.bf16.msra.mxu0 %v3430
      %3509 = vmatpush.bf16.msra.mxu0 %v3428
      %3510 = vmatpush.bf16.msra.mxu0 %v3426
      %3511 = vmatpush.bf16.msra.mxu0 %v3424
      %3512 = vmatpush.bf16.msra.mxu0 %v3422
      %3513 = vmatpush.bf16.msra.mxu0 %v3420
      %3514 = vmatmul.bf16.gmra.mxu0 %v3274
      %v3515 = vpop.f32.mrf.mxu0
      %v3516 = vadd.f32 %v3503, %v3515
      %v3517 = vpop.f32.mrf.mxu0
      %3518 = vdwg.mxu0
      %v3519 = vmax.f32 %v3490, 0.0
      %v3520 = vmax.f32 %v3516, 0.0
      %v3521 = vpack.c.bf16 %v3519, %v3519
      %v3522 = vpack.c.bf16 %v3520, %v3520
      %v3523 = vld [vmem:[#allocation15] sm:$0xff]
      %v3524 = vld [vmem:[#allocation15 + $0x8] sm:$0xff]
      %v3525 = vld [vmem:[#allocation15 + $0x10] sm:$0xff]
      %v3526 = vld [vmem:[#allocation15 + $0x18] sm:$0xff]
      %v3527 = vld [vmem:[#allocation15 + $0x20] sm:$0xff]
      %v3528 = vld [vmem:[#allocation15 + $0x28] sm:$0xff]
      %v3529 = vld [vmem:[#allocation15 + $0x30] sm:$0xff]
      %v3530 = vld [vmem:[#allocation15 + $0x38] sm:$0xff]
      %v3531 = vld [vmem:[#allocation15 + $0x40] sm:$0xff]
      %v3532 = vld [vmem:[#allocation15 + $0x48] sm:$0xff]
      %v3533 = vld [vmem:[#allocation15 + $0x50] sm:$0xff]
      %v3534 = vld [vmem:[#allocation15 + $0x58] sm:$0xff]
      %v3535 = vld [vmem:[#allocation15 + $0x60] sm:$0xff]
      %v3536 = vld [vmem:[#allocation15 + $0x68] sm:$0xff]
      %v3537 = vld [vmem:[#allocation15 + $0x70] sm:$0xff]
      %v3538 = vld [vmem:[#allocation15 + $0x78] sm:$0xff]
      %v3539 = vld [vmem:[#allocation15 + $0x80] sm:$0xff]
      %v3540 = vld [vmem:[#allocation15 + $0x88] sm:$0xff]
      %v3541 = vld [vmem:[#allocation15 + $0x90] sm:$0xff]
      %v3542 = vld [vmem:[#allocation15 + $0x98] sm:$0xff]
      %v3543 = vld [vmem:[#allocation15 + $0xa0] sm:$0xff]
      %v3544 = vld [vmem:[#allocation15 + $0xa8] sm:$0xff]
      %v3545 = vld [vmem:[#allocation15 + $0xb0] sm:$0xff]
      %v3546 = vld [vmem:[#allocation15 + $0xb8] sm:$0xff]
      %v3547 = vld [vmem:[#allocation15 + $0xc0] sm:$0xff]
      %v3548 = vld [vmem:[#allocation15 + $0xc8] sm:$0xff]
      %v3549 = vld [vmem:[#allocation15 + $0xd0] sm:$0xff]
      %v3550 = vld [vmem:[#allocation15 + $0xd8] sm:$0xff]
      %v3551 = vld [vmem:[#allocation15 + $0xe0] sm:$0xff]
      %v3552 = vld [vmem:[#allocation15 + $0xe8] sm:$0xff]
      %v3553 = vld [vmem:[#allocation15 + $0xf0] sm:$0xff]
      %v3554 = vld [vmem:[#allocation15 + $0xf8] sm:$0xff]
      %v3587 = vunpack.c.l.b16 %v3523
      %v3588 = vunpack.c.h.b16 %v3523
      %v3589 = vunpack.c.l.b16 %v3524
      %v3590 = vunpack.c.h.b16 %v3524
      %v3591 = vunpack.c.l.b16 %v3525
      %v3592 = vunpack.c.h.b16 %v3525
      %v3593 = vunpack.c.l.b16 %v3526
      %v3594 = vunpack.c.h.b16 %v3526
      %v3595 = vunpack.c.l.b16 %v3527
      %v3596 = vunpack.c.h.b16 %v3527
      %v3597 = vunpack.c.l.b16 %v3528
      %v3598 = vunpack.c.h.b16 %v3528
      %v3599 = vunpack.c.l.b16 %v3529
      %v3600 = vunpack.c.h.b16 %v3529
      %v3601 = vunpack.c.l.b16 %v3530
      %v3602 = vunpack.c.h.b16 %v3530
      %v3603 = vunpack.c.l.b16 %v3531
      %v3604 = vunpack.c.h.b16 %v3531
      %v3605 = vunpack.c.l.b16 %v3532
      %v3606 = vunpack.c.h.b16 %v3532
      %v3607 = vunpack.c.l.b16 %v3533
      %v3608 = vunpack.c.h.b16 %v3533
      %v3609 = vunpack.c.l.b16 %v3534
      %v3610 = vunpack.c.h.b16 %v3534
      %v3611 = vunpack.c.l.b16 %v3535
      %v3612 = vunpack.c.h.b16 %v3535
      %v3613 = vunpack.c.l.b16 %v3536
      %v3614 = vunpack.c.h.b16 %v3536
      %v3615 = vunpack.c.l.b16 %v3537
      %v3616 = vunpack.c.h.b16 %v3537
      %v3617 = vunpack.c.l.b16 %v3538
      %v3618 = vunpack.c.h.b16 %v3538
      %v3619 = vunpack.c.l.b16 %v3539
      %v3620 = vunpack.c.h.b16 %v3539
      %v3621 = vunpack.c.l.b16 %v3540
      %v3622 = vunpack.c.h.b16 %v3540
      %v3623 = vunpack.c.l.b16 %v3541
      %v3624 = vunpack.c.h.b16 %v3541
      %v3625 = vunpack.c.l.b16 %v3542
      %v3626 = vunpack.c.h.b16 %v3542
      %v3627 = vunpack.c.l.b16 %v3543
      %v3628 = vunpack.c.h.b16 %v3543
      %v3629 = vunpack.c.l.b16 %v3544
      %v3630 = vunpack.c.h.b16 %v3544
      %v3631 = vunpack.c.l.b16 %v3545
      %v3632 = vunpack.c.h.b16 %v3545
      %v3633 = vunpack.c.l.b16 %v3546
      %v3634 = vunpack.c.h.b16 %v3546
      %v3635 = vunpack.c.l.b16 %v3547
      %v3636 = vunpack.c.h.b16 %v3547
      %v3637 = vunpack.c.l.b16 %v3548
      %v3638 = vunpack.c.h.b16 %v3548
      %v3639 = vunpack.c.l.b16 %v3549
      %v3640 = vunpack.c.h.b16 %v3549
      %v3641 = vunpack.c.l.b16 %v3550
      %v3642 = vunpack.c.h.b16 %v3550
      %v3643 = vunpack.c.l.b16 %v3551
      %v3644 = vunpack.c.h.b16 %v3551
      %v3645 = vunpack.c.l.b16 %v3552
      %v3646 = vunpack.c.h.b16 %v3552
      %v3647 = vunpack.c.l.b16 %v3553
      %v3648 = vunpack.c.h.b16 %v3553
      %v3649 = vunpack.c.l.b16 %v3554
      %v3650 = vunpack.c.h.b16 %v3554
      %v3651 = vpack.c.b16 %v3589, %v3587
      %v3652 = vpack.c.b16 %v3590, %v3588
      %v3653 = vpack.c.b16 %v3593, %v3591
      %v3654 = vpack.c.b16 %v3594, %v3592
      %v3655 = vpack.c.b16 %v3597, %v3595
      %v3656 = vpack.c.b16 %v3598, %v3596
      %v3657 = vpack.c.b16 %v3601, %v3599
      %v3658 = vpack.c.b16 %v3602, %v3600
      %v3659 = vpack.c.b16 %v3605, %v3603
      %v3660 = vpack.c.b16 %v3606, %v3604
      %v3661 = vpack.c.b16 %v3609, %v3607
      %v3662 = vpack.c.b16 %v3610, %v3608
      %v3663 = vpack.c.b16 %v3613, %v3611
      %v3664 = vpack.c.b16 %v3614, %v3612
      %v3665 = vpack.c.b16 %v3617, %v3615
      %v3666 = vpack.c.b16 %v3618, %v3616
      %v3667 = vpack.c.b16 %v3621, %v3619
      %v3668 = vpack.c.b16 %v3622, %v3620
      %v3669 = vpack.c.b16 %v3625, %v3623
      %v3670 = vpack.c.b16 %v3626, %v3624
      %v3671 = vpack.c.b16 %v3629, %v3627
      %v3672 = vpack.c.b16 %v3630, %v3628
      %v3673 = vpack.c.b16 %v3633, %v3631
      %v3674 = vpack.c.b16 %v3634, %v3632
      %v3675 = vpack.c.b16 %v3637, %v3635
      %v3676 = vpack.c.b16 %v3638, %v3636
      %v3677 = vpack.c.b16 %v3641, %v3639
      %v3678 = vpack.c.b16 %v3642, %v3640
      %v3679 = vpack.c.b16 %v3645, %v3643
      %v3680 = vpack.c.b16 %v3646, %v3644
      %v3681 = vpack.c.b16 %v3649, %v3647
      %v3682 = vpack.c.b16 %v3650, %v3648
      %3715 = vmatpush.bf16.msra.mxu0 %v3665
      %3716 = vmatpush.bf16.msra.mxu0 %v3663
      %3717 = vmatpush.bf16.msra.mxu0 %v3661
      %3718 = vmatpush.bf16.msra.mxu0 %v3659
      %3719 = vmatpush.bf16.msra.mxu0 %v3657
      %3720 = vmatpush.bf16.msra.mxu0 %v3655
      %3721 = vmatpush.bf16.msra.mxu0 %v3653
      %3722 = vmatpush.bf16.msra.mxu0 %v3651
      %3723 = vmatmul.bf16.gmra.mxu0 %v3521
      %v3724 = vpop.f32.mrf.mxu0
      %v3725 = vadd.f32 %v658, %v3724
      %v3726 = vpop.f32.mrf.mxu0
      %3727 = vdwg.mxu0
      %3728 = vmatpush.bf16.msra.mxu0 %v3681
      %3729 = vmatpush.bf16.msra.mxu0 %v3679
      %3730 = vmatpush.bf16.msra.mxu0 %v3677
      %3731 = vmatpush.bf16.msra.mxu0 %v3675
      %3732 = vmatpush.bf16.msra.mxu0 %v3673
      %3733 = vmatpush.bf16.msra.mxu0 %v3671
      %3734 = vmatpush.bf16.msra.mxu0 %v3669
      %3735 = vmatpush.bf16.msra.mxu0 %v3667
      %3736 = vmatmul.bf16.gmra.mxu0 %v3522
      %v3737 = vpop.f32.mrf.mxu0
      %v3738 = vadd.f32 %v3725, %v3737
      %v3739 = vpop.f32.mrf.mxu0
      %3740 = vdwg.mxu0
      %3741 = vmatpush.bf16.msra.mxu0 %v3666
      %3742 = vmatpush.bf16.msra.mxu0 %v3664
      %3743 = vmatpush.bf16.msra.mxu0 %v3662
      %3744 = vmatpush.bf16.msra.mxu0 %v3660
      %3745 = vmatpush.bf16.msra.mxu0 %v3658
      %3746 = vmatpush.bf16.msra.mxu0 %v3656
      %3747 = vmatpush.bf16.msra.mxu0 %v3654
      %3748 = vmatpush.bf16.msra.mxu0 %v3652
      %3749 = vmatmul.bf16.gmra.mxu0 %v3521
      %v3750 = vpop.f32.mrf.mxu0
      %v3751 = vadd.f32 %v659, %v3750
      %v3752 = vpop.f32.mrf.mxu0
      %3753 = vdwg.mxu0
      %3754 = vmatpush.bf16.msra.mxu0 %v3682
      %3755 = vmatpush.bf16.msra.mxu0 %v3680
      %3756 = vmatpush.bf16.msra.mxu0 %v3678
      %3757 = vmatpush.bf16.msra.mxu0 %v3676
      %3758 = vmatpush.bf16.msra.mxu0 %v3674
      %3759 = vmatpush.bf16.msra.mxu0 %v3672
      %3760 = vmatpush.bf16.msra.mxu0 %v3670
      %3761 = vmatpush.bf16.msra.mxu0 %v3668
      %3762 = vmatmul.bf16.gmra.mxu0 %v3522
      %v3763 = vpop.f32.mrf.mxu0
      %v3764 = vadd.f32 %v3751, %v3763
      %v3765 = vpop.f32.mrf.mxu0
      %3766 = vdwg.mxu0
      %v3767 = vmax.f32 %v3738, 0.0
      %v3768 = vmax.f32 %v3764, 0.0
      %v3769 = vperm.slane %v3767, 0
      %v3770 = vperm.slane %v3768, 0
      %3771 = vst [vmem:[#allocation1] ss:$4 sm:$0xff] %v163
      %v3772 = vld.sshfl [vmem:[#allocation1] sm:$0xff pattern:$0x73625140]
      %v3773 = vld.sshfl [vmem:[#allocation1 + $0x8] sm:$0xff pattern:$0x73625140]
      %v3776 = vmul.f32 %v3769, %v3772
      %v3777 = vmul.f32 %v3770, %v3773
      %v3778 = vsel %vm726, %v3776, 0.0
      %v3779 = vsel %vm726, %v3777, 0.0
      %v3780 = vadd.f32 %v3778, %v3779
      %3781 = vadd.xlane.f32.xlu0 %v3780
      %v3782 = vpop.xlane.xlu0 %3781
      %v3783 = vadd.f32 %v3782, %v164
      %v3784 = vstv %s3251
      %v3785 = vmul.f32 %v3784, %v3783
      %v3786 = vmul.f32 %v3785, 0.33333334
      %v3787 = vadd.f32 %v3230, %v3786
      %3789 = vset.pattern.permute.xlu0 0
      %3790 = vperm.xlu0 %3789, %v3787
      %v3791 = vpop.permute.xlu0 %3790
      %v3793 = vmul.f32 %v3791, %v181
      %v3794 = vmul.f32 %v3791, %v182
      %v3795 = vmul.f32 %v3791, %v187
      %v3796 = vmul.f32 %v3791, %v188
      %v3799 = vrot.slane %v3795, 1
      %v3800 = vrot.slane %v3796, 1
      %v3803 = vadd.f32 %v3793, %v3799
      %v3804 = vadd.f32 %v3794, %v3800
      %v3805 = vadd.f32 %v3803, %v202
      %v3806 = vadd.f32 %v3804, %v203
      %v3807 = vmax.f32 %v3805, 0.0
      %v3808 = vmax.f32 %v3806, 0.0
      %v3809 = vpack.c.bf16 %v3807, %v3807
      %v3810 = vpack.c.bf16 %v3808, %v3808
      %3811 = vmatpush.bf16.msra.mxu0 %v3417
      %3812 = vmatpush.bf16.msra.mxu0 %v3415
      %3813 = vmatpush.bf16.msra.mxu0 %v3413
      %3814 = vmatpush.bf16.msra.mxu0 %v3411
      %3815 = vmatpush.bf16.msra.mxu0 %v3409
      %3816 = vmatpush.bf16.msra.mxu0 %v3407
      %3817 = vmatpush.bf16.msra.mxu0 %v3405
      %3818 = vmatpush.bf16.msra.mxu0 %v3403
      %3819 = vmatmul.bf16.gmra.mxu0 %v3809
      %v3820 = vpop.f32.mrf.mxu0
      %v3821 = vadd.f32 %v405, %v3820
      %v3822 = vpop.f32.mrf.mxu0
      %3823 = vdwg.mxu0
      %3824 = vmatpush.bf16.msra.mxu0 %v3433
      %3825 = vmatpush.bf16.msra.mxu0 %v3431
      %3826 = vmatpush.bf16.msra.mxu0 %v3429
      %3827 = vmatpush.bf16.msra.mxu0 %v3427
      %3828 = vmatpush.bf16.msra.mxu0 %v3425
      %3829 = vmatpush.bf16.msra.mxu0 %v3423
      %3830 = vmatpush.bf16.msra.mxu0 %v3421
      %3831 = vmatpush.bf16.msra.mxu0 %v3419
      %3832 = vmatmul.bf16.gmra.mxu0 %v3810
      %v3833 = vpop.f32.mrf.mxu0
      %v3834 = vadd.f32 %v3821, %v3833
      %v3835 = vpop.f32.mrf.mxu0
      %3836 = vdwg.mxu0
      %3837 = vmatpush.bf16.msra.mxu0 %v3418
      %3838 = vmatpush.bf16.msra.mxu0 %v3416
      %3839 = vmatpush.bf16.msra.mxu0 %v3414
      %3840 = vmatpush.bf16.msra.mxu0 %v3412
      %3841 = vmatpush.bf16.msra.mxu0 %v3410
      %3842 = vmatpush.bf16.msra.mxu0 %v3408
      %3843 = vmatpush.bf16.msra.mxu0 %v3406
      %3844 = vmatpush.bf16.msra.mxu0 %v3404
      %3845 = vmatmul.bf16.gmra.mxu0 %v3809
      %v3846 = vpop.f32.mrf.mxu0
      %v3847 = vadd.f32 %v406, %v3846
      %v3848 = vpop.f32.mrf.mxu0
      %3849 = vdwg.mxu0
      %3850 = vmatpush.bf16.msra.mxu0 %v3434
      %3851 = vmatpush.bf16.msra.mxu0 %v3432
      %3852 = vmatpush.bf16.msra.mxu0 %v3430
      %3853 = vmatpush.bf16.msra.mxu0 %v3428
      %3854 = vmatpush.bf16.msra.mxu0 %v3426
      %3855 = vmatpush.bf16.msra.mxu0 %v3424
      %3856 = vmatpush.bf16.msra.mxu0 %v3422
      %3857 = vmatpush.bf16.msra.mxu0 %v3420
      %3858 = vmatmul.bf16.gmra.mxu0 %v3810
      %v3859 = vpop.f32.mrf.mxu0
      %v3860 = vadd.f32 %v3847, %v3859
      %v3861 = vpop.f32.mrf.mxu0
      %3862 = vdwg.mxu0
      %v3863 = vmax.f32 %v3834, 0.0
      %v3864 = vmax.f32 %v3860, 0.0
      %v3865 = vpack.c.bf16 %v3863, %v3863
      %v3866 = vpack.c.bf16 %v3864, %v3864
      %3867 = vmatpush.bf16.msra.mxu0 %v3665
      %3868 = vmatpush.bf16.msra.mxu0 %v3663
      %3869 = vmatpush.bf16.msra.mxu0 %v3661
      %3870 = vmatpush.bf16.msra.mxu0 %v3659
      %3871 = vmatpush.bf16.msra.mxu0 %v3657
      %3872 = vmatpush.bf16.msra.mxu0 %v3655
      %3873 = vmatpush.bf16.msra.mxu0 %v3653
      %3874 = vmatpush.bf16.msra.mxu0 %v3651
      %3875 = vmatmul.bf16.gmra.mxu0 %v3865
      %v3876 = vpop.f32.mrf.mxu0
      %v3877 = vadd.f32 %v658, %v3876
      %v3878 = vpop.f32.mrf.mxu0
      %3879 = vdwg.mxu0
      %3880 = vmatpush.bf16.msra.mxu0 %v3681
      %3881 = vmatpush.bf16.msra.mxu0 %v3679
      %3882 = vmatpush.bf16.msra.mxu0 %v3677
      %3883 = vmatpush.bf16.msra.mxu0 %v3675
      %3884 = vmatpush.bf16.msra.mxu0 %v3673
      %3885 = vmatpush.bf16.msra.mxu0 %v3671
      %3886 = vmatpush.bf16.msra.mxu0 %v3669
      %3887 = vmatpush.bf16.msra.mxu0 %v3667
      %3888 = vmatmul.bf16.gmra.mxu0 %v3866
      %v3889 = vpop.f32.mrf.mxu0
      %v3890 = vadd.f32 %v3877, %v3889
      %v3891 = vpop.f32.mrf.mxu0
      %3892 = vdwg.mxu0
      %3893 = vmatpush.bf16.msra.mxu0 %v3666
      %3894 = vmatpush.bf16.msra.mxu0 %v3664
      %3895 = vmatpush.bf16.msra.mxu0 %v3662
      %3896 = vmatpush.bf16.msra.mxu0 %v3660
      %3897 = vmatpush.bf16.msra.mxu0 %v3658
      %3898 = vmatpush.bf16.msra.mxu0 %v3656
      %3899 = vmatpush.bf16.msra.mxu0 %v3654
      %3900 = vmatpush.bf16.msra.mxu0 %v3652
      %3901 = vmatmul.bf16.gmra.mxu0 %v3865
      %v3902 = vpop.f32.mrf.mxu0
      %v3903 = vadd.f32 %v659, %v3902
      %v3904 = vpop.f32.mrf.mxu0
      %3905 = vdwg.mxu0
      %3906 = vmatpush.bf16.msra.mxu0 %v3682
      %3907 = vmatpush.bf16.msra.mxu0 %v3680
      %3908 = vmatpush.bf16.msra.mxu0 %v3678
      %3909 = vmatpush.bf16.msra.mxu0 %v3676
      %3910 = vmatpush.bf16.msra.mxu0 %v3674
      %3911 = vmatpush.bf16.msra.mxu0 %v3672
      %3912 = vmatpush.bf16.msra.mxu0 %v3670
      %3913 = vmatpush.bf16.msra.mxu0 %v3668
      %3914 = vmatmul.bf16.gmra.mxu0 %v3866
      %v3915 = vpop.f32.mrf.mxu0
      %v3916 = vadd.f32 %v3903, %v3915
      %v3917 = vpop.f32.mrf.mxu0
      %3918 = vdwg.mxu0
      %v3919 = vmax.f32 %v3890, 0.0
      %v3920 = vmax.f32 %v3916, 0.0
      %v3921 = vperm.slane %v3919, 0
      %v3922 = vperm.slane %v3920, 0
      %3923 = vst [vmem:[#allocation1] ss:$4 sm:$0xff] %v163
      %v3924 = vld.sshfl [vmem:[#allocation1] sm:$0xff pattern:$0x73625140]
      %v3925 = vld.sshfl [vmem:[#allocation1 + $0x8] sm:$0xff pattern:$0x73625140]
      %v3928 = vmul.f32 %v3921, %v3924
      %v3929 = vmul.f32 %v3922, %v3925
      %v3930 = vsel %vm726, %v3928, 0.0
      %v3931 = vsel %vm726, %v3929, 0.0
      %v3932 = vadd.f32 %v3930, %v3931
      %3933 = vadd.xlane.f32.xlu0 %v3932
      %v3934 = vpop.xlane.xlu0 %3933
      %v3935 = vadd.f32 %v3934, %v164
      %v3936 = vmul.f32 %v3783, 0.33333334
      %v3937 = vsub.f32 %v3935, %v3936
      %v3938 = vmul.f32 %v3784, %v3937
      %v3939 = vadd.f32 %v3230, %v3938
      %3941 = vset.pattern.permute.xlu0 0
      %3942 = vperm.xlu0 %3941, %v3939
      %v3943 = vpop.permute.xlu0 %3942
      %v3945 = vmul.f32 %v3943, %v181
      %v3946 = vmul.f32 %v3943, %v182
      %v3947 = vmul.f32 %v3943, %v187
      %v3948 = vmul.f32 %v3943, %v188
      %v3951 = vrot.slane %v3947, 1
      %v3952 = vrot.slane %v3948, 1
      %v3955 = vadd.f32 %v3945, %v3951
      %v3956 = vadd.f32 %v3946, %v3952
      %v3957 = vadd.f32 %v3955, %v202
      %v3958 = vadd.f32 %v3956, %v203
      %v3959 = vmax.f32 %v3957, 0.0
      %v3960 = vmax.f32 %v3958, 0.0
      %v3961 = vpack.c.bf16 %v3959, %v3959
      %v3962 = vpack.c.bf16 %v3960, %v3960
      %3963 = vmatpush.bf16.msra.mxu0 %v3417
      %3964 = vmatpush.bf16.msra.mxu0 %v3415
      %3965 = vmatpush.bf16.msra.mxu0 %v3413
      %3966 = vmatpush.bf16.msra.mxu0 %v3411
      %3967 = vmatpush.bf16.msra.mxu0 %v3409
      %3968 = vmatpush.bf16.msra.mxu0 %v3407
      %3969 = vmatpush.bf16.msra.mxu0 %v3405
      %3970 = vmatpush.bf16.msra.mxu0 %v3403
      %3971 = vmatmul.bf16.gmra.mxu0 %v3961
      %v3972 = vpop.f32.mrf.mxu0
      %v3973 = vadd.f32 %v405, %v3972
      %v3974 = vpop.f32.mrf.mxu0
      %3975 = vdwg.mxu0
      %3976 = vmatpush.bf16.msra.mxu0 %v3433
      %3977 = vmatpush.bf16.msra.mxu0 %v3431
      %3978 = vmatpush.bf16.msra.mxu0 %v3429
      %3979 = vmatpush.bf16.msra.mxu0 %v3427
      %3980 = vmatpush.bf16.msra.mxu0 %v3425
      %3981 = vmatpush.bf16.msra.mxu0 %v3423
      %3982 = vmatpush.bf16.msra.mxu0 %v3421
      %3983 = vmatpush.bf16.msra.mxu0 %v3419
      %3984 = vmatmul.bf16.gmra.mxu0 %v3962
      %v3985 = vpop.f32.mrf.mxu0
      %v3986 = vadd.f32 %v3973, %v3985
      %v3987 = vpop.f32.mrf.mxu0
      %3988 = vdwg.mxu0
      %3989 = vmatpush.bf16.msra.mxu0 %v3418
      %3990 = vmatpush.bf16.msra.mxu0 %v3416
      %3991 = vmatpush.bf16.msra.mxu0 %v3414
      %3992 = vmatpush.bf16.msra.mxu0 %v3412
      %3993 = vmatpush.bf16.msra.mxu0 %v3410
      %3994 = vmatpush.bf16.msra.mxu0 %v3408
      %3995 = vmatpush.bf16.msra.mxu0 %v3406
      %3996 = vmatpush.bf16.msra.mxu0 %v3404
      %3997 = vmatmul.bf16.gmra.mxu0 %v3961
      %v3998 = vpop.f32.mrf.mxu0
      %v3999 = vadd.f32 %v406, %v3998
      %v4000 = vpop.f32.mrf.mxu0
      %4001 = vdwg.mxu0
      %4002 = vmatpush.bf16.msra.mxu0 %v3434
      %4003 = vmatpush.bf16.msra.mxu0 %v3432
      %4004 = vmatpush.bf16.msra.mxu0 %v3430
      %4005 = vmatpush.bf16.msra.mxu0 %v3428
      %4006 = vmatpush.bf16.msra.mxu0 %v3426
      %4007 = vmatpush.bf16.msra.mxu0 %v3424
      %4008 = vmatpush.bf16.msra.mxu0 %v3422
      %4009 = vmatpush.bf16.msra.mxu0 %v3420
      %4010 = vmatmul.bf16.gmra.mxu0 %v3962
      %v4011 = vpop.f32.mrf.mxu0
      %v4012 = vadd.f32 %v3999, %v4011
      %v4013 = vpop.f32.mrf.mxu0
      %4014 = vdwg.mxu0
      %v4015 = vmax.f32 %v3986, 0.0
      %v4016 = vmax.f32 %v4012, 0.0
      %v4017 = vpack.c.bf16 %v4015, %v4015
      %v4018 = vpack.c.bf16 %v4016, %v4016
      %4019 = vmatpush.bf16.msra.mxu0 %v3665
      %4020 = vmatpush.bf16.msra.mxu0 %v3663
      %4021 = vmatpush.bf16.msra.mxu0 %v3661
      %4022 = vmatpush.bf16.msra.mxu0 %v3659
      %4023 = vmatpush.bf16.msra.mxu0 %v3657
      %4024 = vmatpush.bf16.msra.mxu0 %v3655
      %4025 = vmatpush.bf16.msra.mxu0 %v3653
      %4026 = vmatpush.bf16.msra.mxu0 %v3651
      %4027 = vmatmul.bf16.gmra.mxu0 %v4017
      %v4028 = vpop.f32.mrf.mxu0
      %v4029 = vadd.f32 %v658, %v4028
      %v4030 = vpop.f32.mrf.mxu0
      %4031 = vdwg.mxu0
      %4032 = vmatpush.bf16.msra.mxu0 %v3681
      %4033 = vmatpush.bf16.msra.mxu0 %v3679
      %4034 = vmatpush.bf16.msra.mxu0 %v3677
      %4035 = vmatpush.bf16.msra.mxu0 %v3675
      %4036 = vmatpush.bf16.msra.mxu0 %v3673
      %4037 = vmatpush.bf16.msra.mxu0 %v3671
      %4038 = vmatpush.bf16.msra.mxu0 %v3669
      %4039 = vmatpush.bf16.msra.mxu0 %v3667
      %4040 = vmatmul.bf16.gmra.mxu0 %v4018
      %v4041 = vpop.f32.mrf.mxu0
      %v4042 = vadd.f32 %v4029, %v4041
      %v4043 = vpop.f32.mrf.mxu0
      %4044 = vdwg.mxu0
      %4045 = vmatpush.bf16.msra.mxu0 %v3666
      %4046 = vmatpush.bf16.msra.mxu0 %v3664
      %4047 = vmatpush.bf16.msra.mxu0 %v3662
      %4048 = vmatpush.bf16.msra.mxu0 %v3660
      %4049 = vmatpush.bf16.msra.mxu0 %v3658
      %4050 = vmatpush.bf16.msra.mxu0 %v3656
      %4051 = vmatpush.bf16.msra.mxu0 %v3654
      %4052 = vmatpush.bf16.msra.mxu0 %v3652
      %4053 = vmatmul.bf16.gmra.mxu0 %v4017
      %v4054 = vpop.f32.mrf.mxu0
      %v4055 = vadd.f32 %v659, %v4054
      %v4056 = vpop.f32.mrf.mxu0
      %4057 = vdwg.mxu0
      %4058 = vmatpush.bf16.msra.mxu0 %v3682
      %4059 = vmatpush.bf16.msra.mxu0 %v3680
      %4060 = vmatpush.bf16.msra.mxu0 %v3678
      %4061 = vmatpush.bf16.msra.mxu0 %v3676
      %4062 = vmatpush.bf16.msra.mxu0 %v3674
      %4063 = vmatpush.bf16.msra.mxu0 %v3672
      %4064 = vmatpush.bf16.msra.mxu0 %v3670
      %4065 = vmatpush.bf16.msra.mxu0 %v3668
      %4066 = vmatmul.bf16.gmra.mxu0 %v4018
      %v4067 = vpop.f32.mrf.mxu0
      %v4068 = vadd.f32 %v4055, %v4067
      %v4069 = vpop.f32.mrf.mxu0
      %4070 = vdwg.mxu0
      %v4071 = vmax.f32 %v4042, 0.0
      %v4072 = vmax.f32 %v4068, 0.0
      %v4073 = vperm.slane %v4071, 0
      %v4074 = vperm.slane %v4072, 0
      %4075 = vst [vmem:[#allocation1] ss:$4 sm:$0xff] %v163
      %v4076 = vld.sshfl [vmem:[#allocation1] sm:$0xff pattern:$0x73625140]
      %v4077 = vld.sshfl [vmem:[#allocation1 + $0x8] sm:$0xff pattern:$0x73625140]
      %v4080 = vmul.f32 %v4073, %v4076
      %v4081 = vmul.f32 %v4074, %v4077
      %v4082 = vsel %vm726, %v4080, 0.0
      %v4083 = vsel %vm726, %v4081, 0.0
      %v4084 = vadd.f32 %v4082, %v4083
      %4085 = vadd.xlane.f32.xlu0 %v4084
      %v4086 = vpop.xlane.xlu0 %4085
      %v4087 = vadd.f32 %v4086, %v164
      %v4088 = vsub.f32 %v3783, %v3935
      %v4089 = vadd.f32 %v4088, %v4087
      %v4090 = vmul.f32 %v3784, %v4089
      %v4091 = vadd.f32 %v3230, %v4090
      %4093 = vset.pattern.permute.xlu0 0
      %4094 = vperm.xlu0 %4093, %v4091
      %v4095 = vpop.permute.xlu0 %4094
      %v4097 = vmul.f32 %v4095, %v181
      %v4098 = vmul.f32 %v4095, %v182
      %v4099 = vmul.f32 %v4095, %v187
      %v4100 = vmul.f32 %v4095, %v188
      %v4103 = vrot.slane %v4099, 1
      %v4104 = vrot.slane %v4100, 1
      %v4107 = vadd.f32 %v4097, %v4103
      %v4108 = vadd.f32 %v4098, %v4104
      %v4109 = vadd.f32 %v4107, %v202
      %v4110 = vadd.f32 %v4108, %v203
      %v4111 = vmax.f32 %v4109, 0.0
      %v4112 = vmax.f32 %v4110, 0.0
      %v4113 = vpack.c.bf16 %v4111, %v4111
      %v4114 = vpack.c.bf16 %v4112, %v4112
      %4115 = vmatpush.bf16.msra.mxu0 %v3417
      %4116 = vmatpush.bf16.msra.mxu0 %v3415
      %4117 = vmatpush.bf16.msra.mxu0 %v3413
      %4118 = vmatpush.bf16.msra.mxu0 %v3411
      %4119 = vmatpush.bf16.msra.mxu0 %v3409
      %4120 = vmatpush.bf16.msra.mxu0 %v3407
      %4121 = vmatpush.bf16.msra.mxu0 %v3405
      %4122 = vmatpush.bf16.msra.mxu0 %v3403
      %4123 = vmatmul.bf16.gmra.mxu0 %v4113
      %v4124 = vpop.f32.mrf.mxu0
      %v4125 = vadd.f32 %v405, %v4124
      %v4126 = vpop.f32.mrf.mxu0
      %4127 = vdwg.mxu0
      %4128 = vmatpush.bf16.msra.mxu0 %v3433
      %4129 = vmatpush.bf16.msra.mxu0 %v3431
      %4130 = vmatpush.bf16.msra.mxu0 %v3429
      %4131 = vmatpush.bf16.msra.mxu0 %v3427
      %4132 = vmatpush.bf16.msra.mxu0 %v3425
      %4133 = vmatpush.bf16.msra.mxu0 %v3423
      %4134 = vmatpush.bf16.msra.mxu0 %v3421
      %4135 = vmatpush.bf16.msra.mxu0 %v3419
      %4136 = vmatmul.bf16.gmra.mxu0 %v4114
      %v4137 = vpop.f32.mrf.mxu0
      %v4138 = vadd.f32 %v4125, %v4137
      %v4139 = vpop.f32.mrf.mxu0
      %4140 = vdwg.mxu0
      %4141 = vmatpush.bf16.msra.mxu0 %v3418
      %4142 = vmatpush.bf16.msra.mxu0 %v3416
      %4143 = vmatpush.bf16.msra.mxu0 %v3414
      %4144 = vmatpush.bf16.msra.mxu0 %v3412
      %4145 = vmatpush.bf16.msra.mxu0 %v3410
      %4146 = vmatpush.bf16.msra.mxu0 %v3408
      %4147 = vmatpush.bf16.msra.mxu0 %v3406
      %4148 = vmatpush.bf16.msra.mxu0 %v3404
      %4149 = vmatmul.bf16.gmra.mxu0 %v4113
      %v4150 = vpop.f32.mrf.mxu0
      %v4151 = vadd.f32 %v406, %v4150
      %v4152 = vpop.f32.mrf.mxu0
      %4153 = vdwg.mxu0
      %4154 = vmatpush.bf16.msra.mxu0 %v3434
      %4155 = vmatpush.bf16.msra.mxu0 %v3432
      %4156 = vmatpush.bf16.msra.mxu0 %v3430
      %4157 = vmatpush.bf16.msra.mxu0 %v3428
      %4158 = vmatpush.bf16.msra.mxu0 %v3426
      %4159 = vmatpush.bf16.msra.mxu0 %v3424
      %4160 = vmatpush.bf16.msra.mxu0 %v3422
      %4161 = vmatpush.bf16.msra.mxu0 %v3420
      %4162 = vmatmul.bf16.gmra.mxu0 %v4114
      %v4163 = vpop.f32.mrf.mxu0
      %v4164 = vadd.f32 %v4151, %v4163
      %v4165 = vpop.f32.mrf.mxu0
      %4166 = vdwg.mxu0
      %v4167 = vmax.f32 %v4138, 0.0
      %v4168 = vmax.f32 %v4164, 0.0
      %v4169 = vpack.c.bf16 %v4167, %v4167
      %v4170 = vpack.c.bf16 %v4168, %v4168
      %4171 = vmatpush.bf16.msra.mxu0 %v3665
      %4172 = vmatpush.bf16.msra.mxu0 %v3663
      %4173 = vmatpush.bf16.msra.mxu0 %v3661
      %4174 = vmatpush.bf16.msra.mxu0 %v3659
      %4175 = vmatpush.bf16.msra.mxu0 %v3657
      %4176 = vmatpush.bf16.msra.mxu0 %v3655
      %4177 = vmatpush.bf16.msra.mxu0 %v3653
      %4178 = vmatpush.bf16.msra.mxu0 %v3651
      %4179 = vmatmul.bf16.gmra.mxu0 %v4169
      %v4180 = vpop.f32.mrf.mxu0
      %v4181 = vadd.f32 %v658, %v4180
      %v4182 = vpop.f32.mrf.mxu0
      %4183 = vdwg.mxu0
      %4184 = vmatpush.bf16.msra.mxu0 %v3681
      %4185 = vmatpush.bf16.msra.mxu0 %v3679
      %4186 = vmatpush.bf16.msra.mxu0 %v3677
      %4187 = vmatpush.bf16.msra.mxu0 %v3675
      %4188 = vmatpush.bf16.msra.mxu0 %v3673
      %4189 = vmatpush.bf16.msra.mxu0 %v3671
      %4190 = vmatpush.bf16.msra.mxu0 %v3669
      %4191 = vmatpush.bf16.msra.mxu0 %v3667
      %4192 = vmatmul.bf16.gmra.mxu0 %v4170
      %v4193 = vpop.f32.mrf.mxu0
      %v4194 = vadd.f32 %v4181, %v4193
      %v4195 = vpop.f32.mrf.mxu0
      %4196 = vdwg.mxu0
      %4197 = vmatpush.bf16.msra.mxu0 %v3666
      %4198 = vmatpush.bf16.msra.mxu0 %v3664
      %4199 = vmatpush.bf16.msra.mxu0 %v3662
      %4200 = vmatpush.bf16.msra.mxu0 %v3660
      %4201 = vmatpush.bf16.msra.mxu0 %v3658
      %4202 = vmatpush.bf16.msra.mxu0 %v3656
      %4203 = vmatpush.bf16.msra.mxu0 %v3654
      %4204 = vmatpush.bf16.msra.mxu0 %v3652
      %4205 = vmatmul.bf16.gmra.mxu0 %v4169
      %v4206 = vpop.f32.mrf.mxu0
      %v4207 = vadd.f32 %v659, %v4206
      %v4208 = vpop.f32.mrf.mxu0
      %4209 = vdwg.mxu0
      %4210 = vmatpush.bf16.msra.mxu0 %v3682
      %4211 = vmatpush.bf16.msra.mxu0 %v3680
      %4212 = vmatpush.bf16.msra.mxu0 %v3678
      %4213 = vmatpush.bf16.msra.mxu0 %v3676
      %4214 = vmatpush.bf16.msra.mxu0 %v3674
      %4215 = vmatpush.bf16.msra.mxu0 %v3672
      %4216 = vmatpush.bf16.msra.mxu0 %v3670
      %4217 = vmatpush.bf16.msra.mxu0 %v3668
      %4218 = vmatmul.bf16.gmra.mxu0 %v4170
      %v4219 = vpop.f32.mrf.mxu0
      %v4220 = vadd.f32 %v4207, %v4219
      %v4221 = vpop.f32.mrf.mxu0
      %4222 = vdwg.mxu0
      %v4223 = vmax.f32 %v4194, 0.0
      %v4224 = vmax.f32 %v4220, 0.0
      %v4225 = vperm.slane %v4223, 0
      %v4226 = vperm.slane %v4224, 0
      %4227 = vst [vmem:[#allocation1] ss:$4 sm:$0xff] %v163
      %v4228 = vld.sshfl [vmem:[#allocation1] sm:$0xff pattern:$0x73625140]
      %v4229 = vld.sshfl [vmem:[#allocation1 + $0x8] sm:$0xff pattern:$0x73625140]
      %v4232 = vmul.f32 %v4225, %v4228
      %v4233 = vmul.f32 %v4226, %v4229
      %v4234 = vsel %vm726, %v4232, 0.0
      %v4235 = vsel %vm726, %v4233, 0.0
      %v4236 = vadd.f32 %v4234, %v4235
      %4237 = vadd.xlane.f32.xlu0 %v4236
      %v4238 = vpop.xlane.xlu0 %4237
      %v4239 = vadd.f32 %v4238, %v164
      %s4240 = smul.f32 %s3251, 0.125
      %v4241 = vadd.f32 %v3935, %v4087
      %v4242 = vmul.f32 %v4241, 3.0
      %v4243 = vadd.f32 %v3783, %v4242
      %v4244 = vadd.f32 %v4243, %v4239
      %v4245 = vstv %s4240
      %v4246 = vmul.f32 %v4245, %v4244
      %v4247 = vadd.f32 %v3230, %v4246
      %s4248 = sld [smem:[#allocation6 + %s3250]]
      %p4249 = scmp.ge.s32.totalorder %s4248, 0
      // Predicated region
      $region101: #{tpu_custom_call.1} parent=85 // pred_check
        %p4250 = pneg %p4249
      $region102: #{tpu_custom_call.1} parent=85 // pred_check_branch
        %4252 = sbr.rel (%p4250) target = $region104
      $region103: #{tpu_custom_call.1} parent=85 // pred_region
        %s4253 = sld [smem:[#allocation7 + %s3250]]
        %v4254 = vsub.f32 %v4247, %v3230
        %v4255 = vstv %s4253
        %v4256 = vmul.f32 %v4255, %v4254
        %v4257 = vadd.f32 %v3230, %v4256
        %s4258 = scalar_lea.vmem %s12, %s4248
        %vm4259 = vcmask 0
        %4260 = vst.msk [vmem:[%s4258] sm:$0x1] %vm4259, %v4257
        %4262 = vrot.lane.b32.xlu0 %v4257, 1
        %v4263 = vpop.permute.xlu0 %4262
        %vm4265 = vcmask 9225
        %4266 = vst.msk [vmem:[%s4258 - $0x1] sm:$0x2] %vm4265, %v4263
      $region104: #{tpu_custom_call.1} parent=85 // pred_fallthru
        _
    $region86: #{tpu_custom_call.1} parent=1 // loop_footer
      %s171 = sadd.s32 1, %s167
    $region87: #{tpu_custom_call.1} parent=1 // loop_footer_branch
      %166 = sbr.rel target = $region83
    $region88: #{tpu_custom_call.1} parent=1 // loop_exit
      _
    // Predicated region
    $region105: #{tpu_custom_call.1} parent=1 // pred_check
      _
    $region106: #{tpu_custom_call.1} parent=1 // pred_check_branch
      %4268 = sbr.rel (0) target = $region108
    $region107: #{tpu_custom_call.1} parent=1 // pred_region
      _
    $region108: #{tpu_custom_call.1} parent=1 // pred_fallthru
      _
    // Predicated region
    $region109: #{tpu_custom_call.1} parent=1 // pred_check
      _
    $region110: #{tpu_custom_call.1} parent=1 // pred_check_branch
      %4270 = sbr.rel (0) target = $region112
    $region111: #{tpu_custom_call.1} parent=1 // pred_region
      _
    $region112: #{tpu_custom_call.1} parent=1 // pred_fallthru
      _
    %4271 = vsyncpa [#allocation3], 1
    %4272 = vsyncpa [#allocation11], 1
    %4273 = vsyncpa [#allocation14], 1
    %4274 = vsyncpa [#allocation4], 1
    %4275 = vsyncpa [#allocation8], 1
    %4276 = vsyncpa [#allocation5], 1

</llo_original>
